<compile_context>
chip_gen: v7x
topology: tpu7x:2x2x1
jax: 0.10.0
libtpu: 0.0.40
codegen_flags: <defaults>
</compile_context>

<pallas_src>
import math

import jax
import jax.numpy as jnp
from jax.experimental import pallas as pl
from jax.experimental.pallas import tpu as pltpu


def _round_up(x, m):
    return ((x + m - 1) // m) * m


def _vmem_limit_bytes():
    """Per-generation VMEM budget (~7/8 of physical), with a safe fallback."""
    try:
        cap = getattr(pltpu.get_tpu_info(), "vmem_capacity_bytes", None)
        if cap:
            return int(cap) * 7 // 8      # ~112 MiB on v5e/v6e, ~56 MiB on v7x
    except Exception:
        pass
    return 48 * 1024 * 1024


# ----------------------------------------------------------------------------
# Kernel 1: one grid step == one TransformerEncoderLayer (post-norm, ReLU)
# applied to a (TB, S, D) batch slab.  grid = (ceil(B/TB), L): batch-block
# outer ("parallel", megacore on v7x), layer inner ("arbitrary").  Residual
# and mask bias live in VMEM scratch across the layer loop; the output is
# written (bf16) only at the last layer.
# ----------------------------------------------------------------------------
def make_layer_kernel(TB, S, D, H, eps=1e-5):
    assert D % H == 0
    hd = D // H
    scale = 1.0 / math.sqrt(hd)
    NEG = -1e30

    def _ln(x, w, b):                      # f32 LayerNorm over the feature dim
        mu = jnp.mean(x, axis=-1, keepdims=True)
        var = jnp.mean(jnp.square(x - mu), axis=-1, keepdims=True)
        return (x - mu) * jax.lax.rsqrt(var + eps) * w + b

    def kernel(len_ref,                    # SMEM (B_pad,) int32 (scalar prefetch)
               x_ref,                      # (TB, S, D) f32 embedded+pos input
               wqkv_ref, bqkv_ref, wo_ref, bo_ref, ln1w_ref, ln1b_ref,
               w1_ref, b1_ref, w2_ref, b2_ref, ln2w_ref, ln2b_ref,
               h_out_ref,                  # (TB, S, D) bf16, written at last layer
               bias_sc,                    # (TB, S, S) f32 scratch (mask bias)
               h_acc):                     # (TB, S, D) f32 scratch (residual)
        nb = pl.program_id(0)
        layer = pl.program_id(1)

        @pl.when(layer == 0)
        def _():
            h_acc[...] = x_ref[...]
            # causal + key-padding additive bias, built once per batch block.
            q_pos = jax.lax.broadcasted_iota(jnp.int32, (S, S), 0)
            k_pos = jax.lax.broadcasted_iota(jnp.int32, (S, S), 1)
            causal = k_pos <= q_pos
            for i in range(TB):            # TB is small & static -> unrolled
                len_i = len_ref[nb * TB + i]
                valid = causal & (k_pos < len_i)
                bias_sc[i] = jnp.where(valid, 0.0, NEG).astype(jnp.float32)

        h = h_acc[...]                                        # (TB, S, D) f32
        h_flat = h.reshape(TB * S, D)
        bias = bias_sc[...]                                   # (TB, S, S) f32

        # ---- fused QKV projection: bf16 on the MXU, f32 accumulate ----------
        qkv = jnp.dot(h_flat.astype(jnp.bfloat16), wqkv_ref[...],
                      preferred_element_type=jnp.float32) + bqkv_ref[...]
        qkv = jnp.swapaxes(qkv.reshape(TB, S, 3 * H, hd), 1, 2)  # (TB,3H,S,hd)
        BH = TB * H
        q = qkv[:, 0:H].reshape(BH, S, hd).astype(jnp.bfloat16)
        k = qkv[:, H:2 * H].reshape(BH, S, hd).astype(jnp.bfloat16)
        v = qkv[:, 2 * H:3 * H].reshape(BH, S, hd).astype(jnp.bfloat16)

        # ---- batched multi-head attention (single TB*H batch dim) -----------
        # TODO(synk): for production S (>=~512), replace the dense (TB*H,S,S)
        # scores with a KV-block online-softmax (flash) loop + causal tile skip.
        s = jnp.einsum('bqd,bkd->bqk', q, k,
                       preferred_element_type=jnp.float32) * scale
        s = (s.reshape(TB, H, S, S) + bias[:, None, :, :]).reshape(BH, S, S)
        m = jnp.max(s, axis=-1, keepdims=True)
        p = jnp.exp(s - m)                                    # unnormalized
        denom = jnp.sum(p, axis=-1, keepdims=True)
        ctx = jnp.einsum('bqk,bkd->bqd', p.astype(jnp.bfloat16), v,
                         preferred_element_type=jnp.float32)  # (BH, S, hd)
        # deferred softmax normalization + EUP reciprocal (approx)
        ctx = ctx * pl.reciprocal(denom, approx=True)
        ctx = jnp.swapaxes(ctx.reshape(TB, H, S, hd), 1, 2).reshape(TB * S, D)

        attn = jnp.dot(ctx.astype(jnp.bfloat16), wo_ref[...],
                       preferred_element_type=jnp.float32) + bo_ref[...]
        h1 = _ln(h_flat + attn, ln1w_ref[...], ln1b_ref[...])

        # ---- feed-forward (ReLU) ---------------------------------------------
        # TODO(synk): tile over Dff (extra grid axis / emit_pipeline) for v7x
        # at large D so resident FFN weights + (TB*S, Dff) stay under 64 MiB.
        ff = jnp.dot(h1.astype(jnp.bfloat16), w1_ref[...],
                     preferred_element_type=jnp.float32) + b1_ref[...]
        ff = jnp.maximum(ff, 0.0)
        ff = jnp.dot(ff.astype(jnp.bfloat16), w2_ref[...],
                     preferred_element_type=jnp.float32) + b2_ref[...]
        h_new = _ln(h1 + ff, ln2w_ref[...], ln2b_ref[...])

        h_acc[...] = h_new.reshape(TB, S, D)

        @pl.when(layer == pl.num_programs(1) - 1)
        def _():
            h_out_ref[...] = h_acc[...].astype(jnp.bfloat16)

    return kernel


# ----------------------------------------------------------------------------
# Kernel 2: vocab projection, lane-dense over a 128-padded vocab.
# Remainder-safe (rows padded to the row tile) and row-block resident across
# the vocab axis so the (D, Vp) weight streams from HBM ~ceil(N/TM) times.
# ----------------------------------------------------------------------------
def _vocab_projection(h2d_bf16, wout, bout, vmem_limit):
    N, D = h2d_bf16.shape
    Vp = wout.shape[1]
    TN = 512 if Vp % 512 == 0 else (256 if Vp % 256 == 0 else 128)
    TM = min(512, _round_up(N, 16))        # 16: bf16 sublane packing
    Np = _round_up(N, TM)
    if Np != N:
        h2d_bf16 = jnp.pad(h2d_bf16, ((0, Np - N), (0, 0)))

    def kernel(h_ref, w_ref, b_ref, o_ref):
        o_ref[...] = jnp.dot(h_ref[...], w_ref[...],
                             preferred_element_type=jnp.float32) + b_ref[...]

    out = pl.pallas_call(
        kernel,
        out_shape=jax.ShapeDtypeStruct((Np, Vp), jnp.float32),
        grid_spec=pltpu.PrefetchScalarGridSpec(
            num_scalar_prefetch=0,
            grid=(Np // TM, Vp // TN),
            in_specs=[pl.BlockSpec((TM, D), lambda i, j: (i, 0)),
                      pl.BlockSpec((D, TN), lambda i, j: (0, j)),
                      pl.BlockSpec((1, TN), lambda i, j: (0, j))],
            out_specs=pl.BlockSpec((TM, TN), lambda i, j: (i, j))),
        compiler_params=pltpu.CompilerParams(
            dimension_semantics=("parallel", "parallel"),
            vmem_limit_bytes=vmem_limit),
    )(h2d_bf16, wout, bout)
    return out[:N]


# ----------------------------------------------------------------------------
# One-time weight preparation: transpose to (in, out), cast matmul weights to
# bf16, pad the vocab to a multiple of 128 for lane-dense logits stores.
# ----------------------------------------------------------------------------
def prepare_params(params, *, nhead):
    D = params['embedding'].shape[1]
    L = params['wqkv'].shape[0]
    Dff = params['w1'].shape[1]            # w1 stored (L, Dff, D) (out, in)
    V = params['wout'].shape[0]
    Vp = _round_up(V, 128)

    prep = {
        'H': nhead, 'V': V,
        'embedding': params['embedding'].astype(jnp.float32),
        'pe': params['pe'].astype(jnp.float32),
        'wqkv': jnp.transpose(params['wqkv'], (0, 2, 1)).astype(jnp.bfloat16),
        'bqkv': params['bqkv'].reshape(L, 1, 3 * D).astype(jnp.float32),
        'wo': jnp.transpose(params['wo'], (0, 2, 1)).astype(jnp.bfloat16),
        'bo': params['bo'].reshape(L, 1, D).astype(jnp.float32),
        'w1': jnp.transpose(params['w1'], (0, 2, 1)).astype(jnp.bfloat16),
        'b1': params['b1'].reshape(L, 1, Dff).astype(jnp.float32),
        'w2': jnp.transpose(params['w2'], (0, 2, 1)).astype(jnp.bfloat16),
        'b2': params['b2'].reshape(L, 1, D).astype(jnp.float32),
        'ln1w': params['ln1w'].reshape(L, 1, D).astype(jnp.float32),
        'ln1b': params['ln1b'].reshape(L, 1, D).astype(jnp.float32),
        'ln2w': params['ln2w'].reshape(L, 1, D).astype(jnp.float32),
        'ln2b': params['ln2b'].reshape(L, 1, D).astype(jnp.float32),
        'wout': jnp.pad(params['wout'].T,
                        ((0, 0), (0, Vp - V))).astype(jnp.bfloat16),   # (D, Vp)
        'bout': jnp.pad(params['bout'], (0, Vp - V)).reshape(1, Vp)
                   .astype(jnp.float32),
    }
    return prep


# ----------------------------------------------------------------------------
# Forward: embedding + positional encoding in JAX, stack + vocab in Pallas
# ----------------------------------------------------------------------------
def transformer_decoder_lm_forward(src, src_len, prep):
    B, S = src.shape
    L, D, _ = prep['wqkv'].shape
    H = prep['H']
    V = prep['V']
    vmem_limit = _vmem_limit_bytes()

    # glue: input_embed + pos_embed (scale_mode='none'; dropout is identity)
    x = (prep['embedding'][src] + prep['pe'][:S][None, :, :]).astype(jnp.float32)
    src_len = src_len.astype(jnp.int32)

    # Batch blocking: process TB batch rows per layer step (whole batch when it
    # fits) so layer weights stream from HBM ceil(B/TB) times instead of B.
    def _act_bytes(tb):        # rough resident-activation estimate
        return 3 * tb * H * S * S * 4 + 6 * tb * S * D * 4
    TB = B
    while TB > 1 and _act_bytes(TB) > vmem_limit // 3:
        TB -= 1
    B_pad = _round_up(B, TB)
    NB = B_pad // TB
    if B_pad != B:             # padded rows get src_len=0 (fully masked, finite)
        x = jnp.pad(x, ((0, B_pad - B), (0, 0), (0, 0)))
        src_len_k = jnp.pad(src_len, (0, B_pad - B))
    else:
        src_len_k = src_len

    kernel = make_layer_kernel(TB, S, D, H)

    def per_layer(arr):   # stacked (L, a, b); layer dim squeezed in the kernel
        return pl.BlockSpec((None,) + tuple(arr.shape[1:]),
                            lambda nb, l, lens: (l, 0, 0))

    slab_spec = pl.BlockSpec((TB, S, D), lambda nb, l, lens: (nb, 0, 0))

    h = pl.pallas_call(
        kernel,
        out_shape=jax.ShapeDtypeStruct((B_pad, S, D), jnp.bfloat16),
        grid_spec=pltpu.PrefetchScalarGridSpec(
            num_scalar_prefetch=1,          # src_len -> SMEM
            grid=(NB, L),                   # batch-block outer, layer inner
            in_specs=[
                slab_spec,                  # embedded+pos input (layer-0 init)
                per_layer(prep['wqkv']), per_layer(prep['bqkv']),
                per_layer(prep['wo']), per_layer(prep['bo']),
                per_layer(prep['ln1w']), per_layer(prep['ln1b']),
                per_layer(prep['w1']), per_layer(prep['b1']),
                per_layer(prep['w2']), per_layer(prep['b2']),
                per_layer(prep['ln2w']), per_layer(prep['ln2b']),
            ],
            out_specs=slab_spec,            # resident over layers, bf16 handoff
            scratch_shapes=[pltpu.VMEM((TB, S, S), jnp.float32),   # mask bias
                            pltpu.VMEM((TB, S, D), jnp.float32)]), # residual
        compiler_params=pltpu.CompilerParams(
            dimension_semantics=("parallel", "arbitrary"),
            vmem_limit_bytes=vmem_limit),
    )(src_len_k, x,
      prep['wqkv'], prep['bqkv'], prep['wo'], prep['bo'],
      prep['ln1w'], prep['ln1b'], prep['w1'], prep['b1'],
      prep['w2'], prep['b2'], prep['ln2w'], prep['ln2b'])

    h2d = h[:B].reshape(B * S, D)           # bf16 handoff, no per-tile cast
    logits_p = _vocab_projection(h2d, prep['wout'], prep['bout'], vmem_limit)
    logits = logits_p[:, :V].reshape(B, S, V)

    # TransformerResult.create(logits, src_len) -> (data, length)
    return logits, src_len


# ----------------------------------------------------------------------------
# Deterministic parameter init (mirrors module __init__ shapes / conventions)
# ----------------------------------------------------------------------------
def init_params(key, *, n_input_tokens, state_size, nhead, nlayers,
                ff_multiplier, max_len, use_sos=True):
    D = state_size
    Dff = int(D * ff_multiplier)
    V = n_input_tokens + 1 + (1 if use_sos else 0)
    L = nlayers

    def xavier(k, shape):  # (out, in) PyTorch convention
        limit = math.sqrt(6.0 / (shape[0] + shape[1]))
        return jax.random.uniform(k, shape, jnp.float32, -limit, limit)

    ks = iter(jax.random.split(key, 4 * L + 4))

    params = {
        'embedding': jax.random.normal(next(ks), (V, D), jnp.float32),
        'wout': xavier(next(ks), (V, D)),
        'bout': jnp.zeros((V,), jnp.float32),
        'wqkv': jnp.stack([xavier(next(ks), (3 * D, D)) for _ in range(L)]),
        'bqkv': jnp.zeros((L, 3 * D), jnp.float32),
        'wo': jnp.stack([xavier(next(ks), (D, D)) for _ in range(L)]),
        'bo': jnp.zeros((L, D), jnp.float32),
        'w1': jnp.stack([xavier(next(ks), (Dff, D)) for _ in range(L)]),
        'b1': jnp.zeros((L, Dff), jnp.float32),
        'w2': jnp.stack([xavier(next(ks), (D, Dff)) for _ in range(L)]),
        'b2': jnp.zeros((L, D), jnp.float32),
        'ln1w': jnp.ones((L, D), jnp.float32),
        'ln1b': jnp.zeros((L, D), jnp.float32),
        'ln2w': jnp.ones((L, D), jnp.float32),
        'ln2b': jnp.zeros((L, D), jnp.float32),
    }

    # sinusoidal positional encoding (scale=1.0, scale_mode='none')
    pos = jnp.arange(max_len, dtype=jnp.float32)[:, None]
    div = jnp.exp(jnp.arange(0, D, 2, dtype=jnp.float32)
                  * (-math.log(10000.0) / D))
    pe = jnp.zeros((max_len, D), jnp.float32)
    pe = pe.at[:, 0::2].set(jnp.sin(pos * div))
    pe = pe.at[:, 1::2].set(jnp.cos(pos * div))
    params['pe'] = pe

    # TODO(synk): dropout layers (p=0.1) are identity here (inference mode).
    return params


# ----------------------------------------------------------------------------
# Pure-JAX f32 reference for tolerance testing
# ----------------------------------------------------------------------------
def reference_forward(src, src_len, params, *, nhead):
    B, S = src.shape
    D = params['embedding'].shape[1]
    L = params['wqkv'].shape[0]
    H = nhead
    hd = D // H

    x = params['embedding'][src] + params['pe'][:S][None]
    idx = jnp.arange(S)
    causal = idx[None, :] <= idx[:, None]
    key_valid = idx[None, :] < src_len[:, None]
    bias = jnp.where(causal[None] & key_valid[:, None, :], 0.0, -1e30)

    def ln(y, w, b, eps=1e-5):
        mu = y.mean(-1, keepdims=True)
        var = ((y - mu) ** 2).mean(-1, keepdims=True)
        return (y - mu) / jnp.sqrt(var + eps) * w + b

    h = x
    for l in range(L):
        qkv = h @ params['wqkv'][l].T + params['bqkv'][l]
        q, k, v = jnp.split(qkv, 3, axis=-1)
        q = q.reshape(B, S, H, hd).transpose(0, 2, 1, 3)
        k = k.reshape(B, S, H, hd).transpose(0, 2, 1, 3)
        v = v.reshape(B, S, H, hd).transpose(0, 2, 1, 3)
        s = jnp.einsum('bhqd,bhkd->bhqk', q, k) / math.sqrt(hd) + bias[:, None]
        p = jax.nn.softmax(s, axis=-1)
        ctx = jnp.einsum('bhqk,bhkd->bhqd', p, v).transpose(0, 2, 1, 3)
        ctx = ctx.reshape(B, S, D)
        attn = ctx @ params['wo'][l].T + params['bo'][l]
        h1 = ln(h + attn, params['ln1w'][l], params['ln1b'][l])
        ff = jnp.maximum(h1 @ params['w1'][l].T + params['b1'][l], 0.0)
        ff = ff @ params['w2'][l].T + params['b2'][l]
        h = ln(h1 + ff, params['ln2w'][l], params['ln2b'][l])
    return h @ params['wout'].T + params['bout']


# ----------------------------------------------------------------------------
if __name__ == "__main__":
    # small config: n_input_tokens=10 -> vocab 12, D=32, 4 heads, 2 layers
    B, S = 2, 8
    n_input_tokens = 10
    state_size, nhead, nlayers, ff_mult = 32, 4, 2, 4
    max_len = 64

    key = jax.random.PRNGKey(0)
    kp, kt = jax.random.split(key)

    params = init_params(kp, n_input_tokens=n_input_tokens,
                         state_size=state_size, nhead=nhead,
                         nlayers=nlayers, ff_multiplier=ff_mult,
                         max_len=max_len, use_sos=True)
    prep = prepare_params(params, nhead=nhead)

    src = jax.random.randint(kt, (B, S), 0, n_input_tokens + 2, dtype=jnp.int32)
    src_len = jnp.array([8, 5], dtype=jnp.int32)

    logits, out_len = transformer_decoder_lm_forward(src, src_len, prep)
    logits = jax.block_until_ready(logits)

    assert logits.shape == (B, S, n_input_tokens + 2)
    assert bool(jnp.all(jnp.isfinite(logits)))

    ref = reference_forward(src, src_len, params, nhead=nhead)
    err = float(jnp.max(jnp.abs(logits - ref)))
    assert err < 0.3, f"mismatch vs f32 reference: {err}"

    print("KERNEL_OK")
</pallas_src>

<mosaic_0001>
module attributes {stable_mosaic.version = 11 : i64} {
  func.func @kernel(%arg0: i32, %arg1: i32, %arg2: memref<2xi32, #tpu.memory_space<smem>>, %arg3: memref<2x8x32xf32, #tpu.memory_space<vmem>>, %arg4: memref<1x32x96xbf16, #tpu.memory_space<vmem>>, %arg5: memref<1x1x96xf32, #tpu.memory_space<vmem>>, %arg6: memref<1x32x32xbf16, #tpu.memory_space<vmem>>, %arg7: memref<1x1x32xf32, #tpu.memory_space<vmem>>, %arg8: memref<1x1x32xf32, #tpu.memory_space<vmem>>, %arg9: memref<1x1x32xf32, #tpu.memory_space<vmem>>, %arg10: memref<1x32x128xbf16, #tpu.memory_space<vmem>>, %arg11: memref<1x1x128xf32, #tpu.memory_space<vmem>>, %arg12: memref<1x128x32xbf16, #tpu.memory_space<vmem>>, %arg13: memref<1x1x32xf32, #tpu.memory_space<vmem>>, %arg14: memref<1x1x32xf32, #tpu.memory_space<vmem>>, %arg15: memref<1x1x32xf32, #tpu.memory_space<vmem>>, %arg16: memref<2x8x32xbf16, #tpu.memory_space<vmem>>, %arg17: memref<2x8x8xf32, #tpu.memory_space<vmem>>, %arg18: memref<2x8x32xf32, #tpu.memory_space<vmem>>) attributes {dimension_semantics = [#tpu.dimension_semantics<parallel>, #tpu.dimension_semantics<arbitrary>], iteration_bounds = array<i64: 1, 2>, scalar_prefetch = 1 : i64, scratch_operands = 2 : i64, tpu.core_type = #tpu.core_type<tc>, window_params = [{transform_indices = @transform_0, window_bounds = array<i64: 2, 8, 32>}, {transform_indices = @transform_1, window_bounds = array<i64: 1, 32, 96>}, {transform_indices = @transform_2, window_bounds = array<i64: 1, 1, 96>}, {transform_indices = @transform_3, window_bounds = array<i64: 1, 32, 32>}, {transform_indices = @transform_4, window_bounds = array<i64: 1, 1, 32>}, {transform_indices = @transform_5, window_bounds = array<i64: 1, 1, 32>}, {transform_indices = @transform_6, window_bounds = array<i64: 1, 1, 32>}, {transform_indices = @transform_7, window_bounds = array<i64: 1, 32, 128>}, {transform_indices = @transform_8, window_bounds = array<i64: 1, 1, 128>}, {transform_indices = @transform_9, window_bounds = array<i64: 1, 128, 32>}, {transform_indices = @transform_10, window_bounds = array<i64: 1, 1, 32>}, {transform_indices = @transform_11, window_bounds = array<i64: 1, 1, 32>}, {transform_indices = @transform_12, window_bounds = array<i64: 1, 1, 32>}, {transform_indices = @transform_13, window_bounds = array<i64: 2, 8, 32>}]} {
    %c0_i32 = arith.constant 0 : i32
    %0 = arith.cmpi eq, %arg1, %c0_i32 : i32
    %1 = arith.extui %0 : i1 to i32
    %c0_i32_0 = arith.constant 0 : i32
    %2 = arith.cmpi ne, %1, %c0_i32_0 : i32
    scf.if %2 {
      %c0_65 = arith.constant 0 : index
      %c0_66 = arith.constant 0 : index
      %c0_67 = arith.constant 0 : index
      %133 = vector.load %arg3[%c0_65, %c0_66, %c0_67] : memref<2x8x32xf32, #tpu.memory_space<vmem>>, vector<2x8x32xf32>
      %c0_68 = arith.constant 0 : index
      %c0_69 = arith.constant 0 : index
      %c0_70 = arith.constant 0 : index
      %134 = vector.load %arg18[%c0_68, %c0_69, %c0_70] : memref<2x8x32xf32, #tpu.memory_space<vmem>>, vector<2x8x32xf32>
      tpu.vector_store %arg18[%c0_68, %c0_69, %c0_70], %133 {strides = array<i32>} : memref<2x8x32xf32, #tpu.memory_space<vmem>>, vector<2x8x32xf32>,
      %135 = tpu.iota {dimensions = array<i32: 0>} : vector<8x8xi32>
      %136 = tpu.iota {dimensions = array<i32: 1>} : vector<8x8xi32>
      %137 = arith.cmpi sle, %136, %135 : vector<8x8xi32>
      %c2_i32 = arith.constant 2 : i32
      %138 = arith.muli %arg0, %c2_i32 : i32
      %c0_i32_71 = arith.constant 0 : i32
      %139 = arith.addi %138, %c0_i32_71 : i32
      %140 = arith.index_cast %139 : i32 to index
      %141 = memref.load %arg2[%140] : memref<2xi32, #tpu.memory_space<smem>>
      %142 = vector.broadcast %141 : i32 to vector<8x8xi32>
      %143 = arith.cmpi slt, %136, %142 : vector<8x8xi32>
      %144 = arith.andi %137, %143 : vector<8x8xi1>
      %cst_72 = arith.constant 0.000000e+00 : f32
      %cst_73 = arith.constant -1.000000e+30 : f32
      %145 = vector.broadcast %cst_72 : f32 to vector<8x8xf32>
      %146 = vector.broadcast %cst_73 : f32 to vector<8x8xf32>
      %147 = arith.select %144, %145, %146 : vector<8x8xi1>, vector<8x8xf32>
      %c0_74 = arith.constant 0 : index
      %c0_75 = arith.constant 0 : index
      %c0_76 = arith.constant 0 : index
      %148 = vector.load %arg17[%c0_74, %c0_75, %c0_76] : memref<2x8x8xf32, #tpu.memory_space<vmem>>, vector<1x8x8xf32>
      %149 = vector.shape_cast %148 : vector<1x8x8xf32> to vector<8x8xf32>
      %150 = vector.shape_cast %147 : vector<8x8xf32> to vector<1x8x8xf32>
      tpu.vector_store %arg17[%c0_74, %c0_75, %c0_76], %150 {strides = array<i32>} : memref<2x8x8xf32, #tpu.memory_space<vmem>>, vector<1x8x8xf32>,
      %c2_i32_77 = arith.constant 2 : i32
      %151 = arith.muli %arg0, %c2_i32_77 : i32
      %c1_i32_78 = arith.constant 1 : i32
      %152 = arith.addi %151, %c1_i32_78 : i32
      %153 = arith.index_cast %152 : i32 to index
      %154 = memref.load %arg2[%153] : memref<2xi32, #tpu.memory_space<smem>>
      %155 = vector.broadcast %154 : i32 to vector<8x8xi32>
      %156 = arith.cmpi slt, %136, %155 : vector<8x8xi32>
      %157 = arith.andi %137, %156 : vector<8x8xi1>
      %cst_79 = arith.constant 0.000000e+00 : f32
      %cst_80 = arith.constant -1.000000e+30 : f32
      %158 = vector.broadcast %cst_79 : f32 to vector<8x8xf32>
      %159 = vector.broadcast %cst_80 : f32 to vector<8x8xf32>
      %160 = arith.select %157, %158, %159 : vector<8x8xi1>, vector<8x8xf32>
      %c1 = arith.constant 1 : index
      %c0_81 = arith.constant 0 : index
      %c0_82 = arith.constant 0 : index
      %161 = vector.load %arg17[%c1, %c0_81, %c0_82] : memref<2x8x8xf32, #tpu.memory_space<vmem>>, vector<1x8x8xf32>
      %162 = vector.shape_cast %161 : vector<1x8x8xf32> to vector<8x8xf32>
      %163 = vector.shape_cast %160 : vector<8x8xf32> to vector<1x8x8xf32>
      tpu.vector_store %arg17[%c1, %c0_81, %c0_82], %163 {strides = array<i32>} : memref<2x8x8xf32, #tpu.memory_space<vmem>>, vector<1x8x8xf32>,
    } else {
    }
    %c0 = arith.constant 0 : index
    %c0_1 = arith.constant 0 : index
    %c0_2 = arith.constant 0 : index
    %3 = vector.load %arg18[%c0, %c0_1, %c0_2] : memref<2x8x32xf32, #tpu.memory_space<vmem>>, vector<2x8x32xf32>
    %4 = vector.shape_cast %3 : vector<2x8x32xf32> to vector<16x32xf32>
    %c0_3 = arith.constant 0 : index
    %c0_4 = arith.constant 0 : index
    %c0_5 = arith.constant 0 : index
    %5 = vector.load %arg17[%c0_3, %c0_4, %c0_5] : memref<2x8x8xf32, #tpu.memory_space<vmem>>, vector<2x8x8xf32>
    %6 = arith.truncf %4 : vector<16x32xf32> to vector<16x32xbf16>
    %c0_6 = arith.constant 0 : index
    %c0_7 = arith.constant 0 : index
    %c0_8 = arith.constant 0 : index
    %7 = vector.load %arg4[%c0_6, %c0_7, %c0_8] : memref<1x32x96xbf16, #tpu.memory_space<vmem>>, vector<1x32x96xbf16>
    %8 = vector.shape_cast %7 : vector<1x32x96xbf16> to vector<32x96xbf16>
    %cst = arith.constant dense<0.000000e+00> : vector<16x96xf32>
    %9 = tpu.matmul %6, %8, %cst {dimension_numbers = #tpu.dot_dimension_numbers<[1], [0], [0], [1], [0, 0, 1, 1], [], []>} : vector<16x32xbf16>, vector<32x96xbf16>, vector<16x96xf32> -> vector<16x96xf32>
    %c0_9 = arith.constant 0 : index
    %c0_10 = arith.constant 0 : index
    %c0_11 = arith.constant 0 : index
    %10 = vector.load %arg5[%c0_9, %c0_10, %c0_11] : memref<1x1x96xf32, #tpu.memory_space<vmem>>, vector<1x1x96xf32>
    %11 = vector.shape_cast %10 : vector<1x1x96xf32> to vector<1x96xf32>
    %12 = vector.broadcast %11 : vector<1x96xf32> to vector<16x96xf32>
    %13 = arith.addf %9, %12 : vector<16x96xf32>
    %14 = vector.shape_cast %13 : vector<16x96xf32> to vector<2x8x12x8xf32>
    %15 = tpu.transpose %14, [0, 2, 1, 3] : vector<2x8x12x8xf32> -> vector<2x12x8x8xf32>
    %16 = vector.extract_strided_slice %15 {offsets = [0, 0, 0, 0], sizes = [2, 4, 8, 8], strides = [1, 1, 1, 1]} : vector<2x12x8x8xf32> to vector<2x4x8x8xf32>
    %17 = vector.shape_cast %16 : vector<2x4x8x8xf32> to vector<8x8x8xf32>
    %18 = arith.truncf %17 : vector<8x8x8xf32> to vector<8x8x8xbf16>
    %19 = vector.extract_strided_slice %15 {offsets = [0, 4, 0, 0], sizes = [2, 4, 8, 8], strides = [1, 1, 1, 1]} : vector<2x12x8x8xf32> to vector<2x4x8x8xf32>
    %20 = vector.shape_cast %19 : vector<2x4x8x8xf32> to vector<8x8x8xf32>
    %21 = arith.truncf %20 : vector<8x8x8xf32> to vector<8x8x8xbf16>
    %22 = vector.extract_strided_slice %15 {offsets = [0, 8, 0, 0], sizes = [2, 4, 8, 8], strides = [1, 1, 1, 1]} : vector<2x12x8x8xf32> to vector<2x4x8x8xf32>
    %23 = vector.shape_cast %22 : vector<2x4x8x8xf32> to vector<8x8x8xf32>
    %24 = arith.truncf %23 : vector<8x8x8xf32> to vector<8x8x8xbf16>
    "tpu.trace_start"() <{level = 10 : i32, message = "bqd,bkd->bqk"}> : () -> ()
    %cst_12 = arith.constant dense<0.000000e+00> : vector<8x8x8xf32>
    %25 = tpu.matmul %18, %21, %cst_12 {dimension_numbers = #tpu.dot_dimension_numbers<[2], [2], [1], [1], [0, 0, 0, 1, 1, 1], [0], [0]>} : vector<8x8x8xbf16>, vector<8x8x8xbf16>, vector<8x8x8xf32> -> vector<8x8x8xf32>
    "tpu.trace_stop"() : () -> ()
    %cst_13 = arith.constant 0.353553385 : f32
    %26 = vector.broadcast %cst_13 : f32 to vector<8x8x8xf32>
    %27 = arith.mulf %25, %26 : vector<8x8x8xf32>
    %28 = vector.shape_cast %27 : vector<8x8x8xf32> to vector<2x4x8x8xf32>
    %29 = vector.shape_cast %5 : vector<2x8x8xf32> to vector<2x1x8x8xf32>
    %30 = vector.broadcast %29 : vector<2x1x8x8xf32> to vector<2x4x8x8xf32>
    %31 = arith.addf %28, %30 : vector<2x4x8x8xf32>
    %32 = vector.shape_cast %31 : vector<2x4x8x8xf32> to vector<8x8x8xf32>
    %cst_14 = arith.constant dense<0xFF800000> : vector<8x8xf32>
    %33 = vector.multi_reduction <maximumf>, %32, %cst_14 [2] : vector<8x8x8xf32> to vector<8x8xf32>
    %34 = vector.shape_cast %33 : vector<8x8xf32> to vector<8x8x1xf32>
    %35 = vector.broadcast %34 : vector<8x8x1xf32> to vector<8x8x8xf32>
    %36 = arith.subf %32, %35 : vector<8x8x8xf32>
    %37 = math.exp %36 : vector<8x8x8xf32>
    %cst_15 = arith.constant dense<0.000000e+00> : vector<8x8xf32>
    %38 = vector.multi_reduction <add>, %37, %cst_15 [2] : vector<8x8x8xf32> to vector<8x8xf32>
    %39 = vector.shape_cast %38 : vector<8x8xf32> to vector<8x8x1xf32>
    %40 = arith.truncf %37 : vector<8x8x8xf32> to vector<8x8x8xbf16>
    "tpu.trace_start"() <{level = 10 : i32, message = "bqk,bkd->bqd"}> : () -> ()
    %cst_16 = arith.constant dense<0.000000e+00> : vector<8x8x8xf32>
    %41 = tpu.matmul %40, %24, %cst_16 {dimension_numbers = #tpu.dot_dimension_numbers<[2], [1], [1], [2], [0, 0, 0, 1, 1, 2], [0], [0]>} : vector<8x8x8xbf16>, vector<8x8x8xbf16>, vector<8x8x8xf32> -> vector<8x8x8xf32>
    "tpu.trace_stop"() : () -> ()
    %42 = tpu.reciprocal %39 {approx = true} : vector<8x8x1xf32> -> vector<8x8x1xf32>
    %43 = vector.broadcast %42 : vector<8x8x1xf32> to vector<8x8x8xf32>
    %44 = arith.mulf %41, %43 : vector<8x8x8xf32>
    %45 = vector.shape_cast %44 : vector<8x8x8xf32> to vector<2x4x8x8xf32>
    %46 = tpu.transpose %45, [0, 2, 1, 3] : vector<2x4x8x8xf32> -> vector<2x8x4x8xf32>
    %47 = vector.shape_cast %46 : vector<2x8x4x8xf32> to vector<16x32xf32>
    %48 = arith.truncf %47 : vector<16x32xf32> to vector<16x32xbf16>
    %c0_17 = arith.constant 0 : index
    %c0_18 = arith.constant 0 : index
    %c0_19 = arith.constant 0 : index
    %49 = vector.load %arg6[%c0_17, %c0_18, %c0_19] : memref<1x32x32xbf16, #tpu.memory_space<vmem>>, vector<1x32x32xbf16>
    %50 = vector.shape_cast %49 : vector<1x32x32xbf16> to vector<32x32xbf16>
    %cst_20 = arith.constant dense<0.000000e+00> : vector<16x32xf32>
    %51 = tpu.matmul %48, %50, %cst_20 {dimension_numbers = #tpu.dot_dimension_numbers<[1], [0], [0], [1], [0, 0, 1, 1], [], []>} : vector<16x32xbf16>, vector<32x32xbf16>, vector<16x32xf32> -> vector<16x32xf32>
    %c0_21 = arith.constant 0 : index
    %c0_22 = arith.constant 0 : index
    %c0_23 = arith.constant 0 : index
    %52 = vector.load %arg7[%c0_21, %c0_22, %c0_23] : memref<1x1x32xf32, #tpu.memory_space<vmem>>, vector<1x1x32xf32>
    %53 = vector.shape_cast %52 : vector<1x1x32xf32> to vector<1x32xf32>
    %54 = vector.broadcast %53 : vector<1x32xf32> to vector<16x32xf32>
    %55 = arith.addf %51, %54 : vector<16x32xf32>
    %56 = arith.addf %4, %55 : vector<16x32xf32>
    %c0_24 = arith.constant 0 : index
    %c0_25 = arith.constant 0 : index
    %c0_26 = arith.constant 0 : index
    %57 = vector.load %arg8[%c0_24, %c0_25, %c0_26] : memref<1x1x32xf32, #tpu.memory_space<vmem>>, vector<1x1x32xf32>
    %58 = vector.shape_cast %57 : vector<1x1x32xf32> to vector<1x32xf32>
    %c0_27 = arith.constant 0 : index
    %c0_28 = arith.constant 0 : index
    %c0_29 = arith.constant 0 : index
    %59 = vector.load %arg9[%c0_27, %c0_28, %c0_29] : memref<1x1x32xf32, #tpu.memory_space<vmem>>, vector<1x1x32xf32>
    %60 = vector.shape_cast %59 : vector<1x1x32xf32> to vector<1x32xf32>
    %cst_30 = arith.constant dense<0.000000e+00> : vector<16xf32>
    %61 = vector.multi_reduction <add>, %56, %cst_30 [1] : vector<16x32xf32> to vector<16xf32>
    %62 = vector.shape_cast %61 : vector<16xf32> to vector<16x1xf32>
    %cst_31 = arith.constant 3.200000e+01 : f32
    %63 = vector.broadcast %cst_31 : f32 to vector<16x1xf32>
    %64 = arith.divf %62, %63 : vector<16x1xf32>
    %65 = vector.broadcast %64 : vector<16x1xf32> to vector<16x32xf32>
    %66 = arith.subf %56, %65 : vector<16x32xf32>
    %67 = arith.mulf %66, %66 : vector<16x32xf32>
    %cst_32 = arith.constant dense<0.000000e+00> : vector<16xf32>
    %68 = vector.multi_reduction <add>, %67, %cst_32 [1] : vector<16x32xf32> to vector<16xf32>
    %69 = vector.shape_cast %68 : vector<16xf32> to vector<16x1xf32>
    %cst_33 = arith.constant 3.200000e+01 : f32
    %70 = vector.broadcast %cst_33 : f32 to vector<16x1xf32>
    %71 = arith.divf %69, %70 : vector<16x1xf32>
    %72 = vector.broadcast %64 : vector<16x1xf32> to vector<16x32xf32>
    %73 = arith.subf %56, %72 : vector<16x32xf32>
    %cst_34 = arith.constant 9.99999974E-6 : f32
    %74 = vector.broadcast %cst_34 : f32 to vector<16x1xf32>
    %75 = arith.addf %71, %74 : vector<16x1xf32>
    %76 = math.rsqrt %75 : vector<16x1xf32>
    %77 = vector.broadcast %76 : vector<16x1xf32> to vector<16x32xf32>
    %78 = arith.mulf %73, %77 : vector<16x32xf32>
    %79 = vector.broadcast %58 : vector<1x32xf32> to vector<16x32xf32>
    %80 = arith.mulf %78, %79 : vector<16x32xf32>
    %81 = vector.broadcast %60 : vector<1x32xf32> to vector<16x32xf32>
    %82 = arith.addf %80, %81 : vector<16x32xf32>
    %83 = arith.truncf %82 : vector<16x32xf32> to vector<16x32xbf16>
    %c0_35 = arith.constant 0 : index
    %c0_36 = arith.constant 0 : index
    %c0_37 = arith.constant 0 : index
    %84 = vector.load %arg10[%c0_35, %c0_36, %c0_37] : memref<1x32x128xbf16, #tpu.memory_space<vmem>>, vector<1x32x128xbf16>
    %85 = vector.shape_cast %84 : vector<1x32x128xbf16> to vector<32x128xbf16>
    %cst_38 = arith.constant dense<0.000000e+00> : vector<16x128xf32>
    %86 = tpu.matmul %83, %85, %cst_38 {dimension_numbers = #tpu.dot_dimension_numbers<[1], [0], [0], [1], [0, 0, 1, 1], [], []>} : vector<16x32xbf16>, vector<32x128xbf16>, vector<16x128xf32> -> vector<16x128xf32>
    %c0_39 = arith.constant 0 : index
    %c0_40 = arith.constant 0 : index
    %c0_41 = arith.constant 0 : index
    %87 = vector.load %arg11[%c0_39, %c0_40, %c0_41] : memref<1x1x128xf32, #tpu.memory_space<vmem>>, vector<1x1x128xf32>
    %88 = vector.shape_cast %87 : vector<1x1x128xf32> to vector<1x128xf32>
    %89 = vector.broadcast %88 : vector<1x128xf32> to vector<16x128xf32>
    %90 = arith.addf %86, %89 : vector<16x128xf32>
    %cst_42 = arith.constant 0.000000e+00 : f32
    %91 = vector.broadcast %cst_42 : f32 to vector<16x128xf32>
    %92 = arith.maximumf %90, %91 : vector<16x128xf32>
    %93 = arith.truncf %92 : vector<16x128xf32> to vector<16x128xbf16>
    %c0_43 = arith.constant 0 : index
    %c0_44 = arith.constant 0 : index
    %c0_45 = arith.constant 0 : index
    %94 = vector.load %arg12[%c0_43, %c0_44, %c0_45] : memref<1x128x32xbf16, #tpu.memory_space<vmem>>, vector<1x128x32xbf16>
    %95 = vector.shape_cast %94 : vector<1x128x32xbf16> to vector<128x32xbf16>
    %cst_46 = arith.constant dense<0.000000e+00> : vector<16x32xf32>
    %96 = tpu.matmul %93, %95, %cst_46 {dimension_numbers = #tpu.dot_dimension_numbers<[1], [0], [0], [1], [0, 0, 1, 1], [], []>} : vector<16x128xbf16>, vector<128x32xbf16>, vector<16x32xf32> -> vector<16x32xf32>
    %c0_47 = arith.constant 0 : index
    %c0_48 = arith.constant 0 : index
    %c0_49 = arith.constant 0 : index
    %97 = vector.load %arg13[%c0_47, %c0_48, %c0_49] : memref<1x1x32xf32, #tpu.memory_space<vmem>>, vector<1x1x32xf32>
    %98 = vector.shape_cast %97 : vector<1x1x32xf32> to vector<1x32xf32>
    %99 = vector.broadcast %98 : vector<1x32xf32> to vector<16x32xf32>
    %100 = arith.addf %96, %99 : vector<16x32xf32>
    %101 = arith.addf %82, %100 : vector<16x32xf32>
    %c0_50 = arith.constant 0 : index
    %c0_51 = arith.constant 0 : index
    %c0_52 = arith.constant 0 : index
    %102 = vector.load %arg14[%c0_50, %c0_51, %c0_52] : memref<1x1x32xf32, #tpu.memory_space<vmem>>, vector<1x1x32xf32>
    %103 = vector.shape_cast %102 : vector<1x1x32xf32> to vector<1x32xf32>
    %c0_53 = arith.constant 0 : index
    %c0_54 = arith.constant 0 : index
    %c0_55 = arith.constant 0 : index
    %104 = vector.load %arg15[%c0_53, %c0_54, %c0_55] : memref<1x1x32xf32, #tpu.memory_space<vmem>>, vector<1x1x32xf32>
    %105 = vector.shape_cast %104 : vector<1x1x32xf32> to vector<1x32xf32>
    %cst_56 = arith.constant dense<0.000000e+00> : vector<16xf32>
    %106 = vector.multi_reduction <add>, %101, %cst_56 [1] : vector<16x32xf32> to vector<16xf32>
    %107 = vector.shape_cast %106 : vector<16xf32> to vector<16x1xf32>
    %cst_57 = arith.constant 3.200000e+01 : f32
    %108 = vector.broadcast %cst_57 : f32 to vector<16x1xf32>
    %109 = arith.divf %107, %108 : vector<16x1xf32>
    %110 = vector.broadcast %109 : vector<16x1xf32> to vector<16x32xf32>
    %111 = arith.subf %101, %110 : vector<16x32xf32>
    %112 = arith.mulf %111, %111 : vector<16x32xf32>
    %cst_58 = arith.constant dense<0.000000e+00> : vector<16xf32>
    %113 = vector.multi_reduction <add>, %112, %cst_58 [1] : vector<16x32xf32> to vector<16xf32>
    %114 = vector.shape_cast %113 : vector<16xf32> to vector<16x1xf32>
    %cst_59 = arith.constant 3.200000e+01 : f32
    %115 = vector.broadcast %cst_59 : f32 to vector<16x1xf32>
    %116 = arith.divf %114, %115 : vector<16x1xf32>
    %117 = vector.broadcast %109 : vector<16x1xf32> to vector<16x32xf32>
    %118 = arith.subf %101, %117 : vector<16x32xf32>
    %cst_60 = arith.constant 9.99999974E-6 : f32
    %119 = vector.broadcast %cst_60 : f32 to vector<16x1xf32>
    %120 = arith.addf %116, %119 : vector<16x1xf32>
    %121 = math.rsqrt %120 : vector<16x1xf32>
    %122 = vector.broadcast %121 : vector<16x1xf32> to vector<16x32xf32>
    %123 = arith.mulf %118, %122 : vector<16x32xf32>
    %124 = vector.broadcast %103 : vector<1x32xf32> to vector<16x32xf32>
    %125 = arith.mulf %123, %124 : vector<16x32xf32>
    %126 = vector.broadcast %105 : vector<1x32xf32> to vector<16x32xf32>
    %127 = arith.addf %125, %126 : vector<16x32xf32>
    %128 = vector.shape_cast %127 : vector<16x32xf32> to vector<2x8x32xf32>
    %c0_61 = arith.constant 0 : index
    %c0_62 = arith.constant 0 : index
    %c0_63 = arith.constant 0 : index
    %129 = vector.load %arg18[%c0_61, %c0_62, %c0_63] : memref<2x8x32xf32, #tpu.memory_space<vmem>>, vector<2x8x32xf32>
    tpu.vector_store %arg18[%c0_61, %c0_62, %c0_63], %128 {strides = array<i32>} : memref<2x8x32xf32, #tpu.memory_space<vmem>>, vector<2x8x32xf32>,
    %c1_i32 = arith.constant 1 : i32
    %130 = arith.cmpi eq, %arg1, %c1_i32 : i32
    %131 = arith.extui %130 : i1 to i32
    %c0_i32_64 = arith.constant 0 : i32
    %132 = arith.cmpi ne, %131, %c0_i32_64 : i32
    scf.if %132 {
      %c0_65 = arith.constant 0 : index
      %c0_66 = arith.constant 0 : index
      %c0_67 = arith.constant 0 : index
      %133 = vector.load %arg18[%c0_65, %c0_66, %c0_67] : memref<2x8x32xf32, #tpu.memory_space<vmem>>, vector<2x8x32xf32>
      %134 = arith.truncf %133 : vector<2x8x32xf32> to vector<2x8x32xbf16>
      %c0_68 = arith.constant 0 : index
      %c0_69 = arith.constant 0 : index
      %c0_70 = arith.constant 0 : index
      %135 = vector.load %arg16[%c0_68, %c0_69, %c0_70] : memref<2x8x32xbf16, #tpu.memory_space<vmem>>, vector<2x8x32xbf16>
      tpu.vector_store %arg16[%c0_68, %c0_69, %c0_70], %134 {strides = array<i32>} : memref<2x8x32xbf16, #tpu.memory_space<vmem>>, vector<2x8x32xbf16>,
    } else {
    }
    return
  }
  func.func @transform_0(%arg0: i32, %arg1: i32, %arg2: memref<2xi32, #tpu.memory_space<smem>>) -> (i32, i32, i32) {
    %c0_i32 = arith.constant 0 : i32
    %c0_i32_0 = arith.constant 0 : i32
    %c0_i32_1 = arith.constant 0 : i32
    return %arg0, %c0_i32, %c0_i32_0 : i32, i32, i32
  }
  func.func @transform_1(%arg0: i32, %arg1: i32, %arg2: memref<2xi32, #tpu.memory_space<smem>>) -> (i32, i32, i32) {
    %c0_i32 = arith.constant 0 : i32
    %c0_i32_0 = arith.constant 0 : i32
    %c0_i32_1 = arith.constant 0 : i32
    return %arg1, %c0_i32, %c0_i32_0 : i32, i32, i32
  }
  func.func @transform_2(%arg0: i32, %arg1: i32, %arg2: memref<2xi32, #tpu.memory_space<smem>>) -> (i32, i32, i32) {
    %c0_i32 = arith.constant 0 : i32
    %c0_i32_0 = arith.constant 0 : i32
    %c0_i32_1 = arith.constant 0 : i32
    return %arg1, %c0_i32, %c0_i32_0 : i32, i32, i32
  }
  func.func @transform_3(%arg0: i32, %arg1: i32, %arg2: memref<2xi32, #tpu.memory_space<smem>>) -> (i32, i32, i32) {
    %c0_i32 = arith.constant 0 : i32
    %c0_i32_0 = arith.constant 0 : i32
    %c0_i32_1 = arith.constant 0 : i32
    return %arg1, %c0_i32, %c0_i32_0 : i32, i32, i32
  }
  func.func @transform_4(%arg0: i32, %arg1: i32, %arg2: memref<2xi32, #tpu.memory_space<smem>>) -> (i32, i32, i32) {
    %c0_i32 = arith.constant 0 : i32
    %c0_i32_0 = arith.constant 0 : i32
    %c0_i32_1 = arith.constant 0 : i32
    return %arg1, %c0_i32, %c0_i32_0 : i32, i32, i32
  }
  func.func @transform_5(%arg0: i32, %arg1: i32, %arg2: memref<2xi32, #tpu.memory_space<smem>>) -> (i32, i32, i32) {
    %c0_i32 = arith.constant 0 : i32
    %c0_i32_0 = arith.constant 0 : i32
    %c0_i32_1 = arith.constant 0 : i32
    return %arg1, %c0_i32, %c0_i32_0 : i32, i32, i32
  }
  func.func @transform_6(%arg0: i32, %arg1: i32, %arg2: memref<2xi32, #tpu.memory_space<smem>>) -> (i32, i32, i32) {
    %c0_i32 = arith.constant 0 : i32
    %c0_i32_0 = arith.constant 0 : i32
    %c0_i32_1 = arith.constant 0 : i32
    return %arg1, %c0_i32, %c0_i32_0 : i32, i32, i32
  }
  func.func @transform_7(%arg0: i32, %arg1: i32, %arg2: memref<2xi32, #tpu.memory_space<smem>>) -> (i32, i32, i32) {
    %c0_i32 = arith.constant 0 : i32
    %c0_i32_0 = arith.constant 0 : i32
    %c0_i32_1 = arith.constant 0 : i32
    return %arg1, %c0_i32, %c0_i32_0 : i32, i32, i32
  }
  func.func @transform_8(%arg0: i32, %arg1: i32, %arg2: memref<2xi32, #tpu.memory_space<smem>>) -> (i32, i32, i32) {
    %c0_i32 = arith.constant 0 : i32
    %c0_i32_0 = arith.constant 0 : i32
    %c0_i32_1 = arith.constant 0 : i32
    return %arg1, %c0_i32, %c0_i32_0 : i32, i32, i32
  }
  func.func @transform_9(%arg0: i32, %arg1: i32, %arg2: memref<2xi32, #tpu.memory_space<smem>>) -> (i32, i32, i32) {
    %c0_i32 = arith.constant 0 : i32
    %c0_i32_0 = arith.constant 0 : i32
    %c0_i32_1 = arith.constant 0 : i32
    return %arg1, %c0_i32, %c0_i32_0 : i32, i32, i32
  }
  func.func @transform_10(%arg0: i32, %arg1: i32, %arg2: memref<2xi32, #tpu.memory_space<smem>>) -> (i32, i32, i32) {
    %c0_i32 = arith.constant 0 : i32
    %c0_i32_0 = arith.constant 0 : i32
    %c0_i32_1 = arith.constant 0 : i32
    return %arg1, %c0_i32, %c0_i32_0 : i32, i32, i32
  }
  func.func @transform_11(%arg0: i32, %arg1: i32, %arg2: memref<2xi32, #tpu.memory_space<smem>>) -> (i32, i32, i32) {
    %c0_i32 = arith.constant 0 : i32
    %c0_i32_0 = arith.constant 0 : i32
    %c0_i32_1 = arith.constant 0 : i32
    return %arg1, %c0_i32, %c0_i32_0 : i32, i32, i32
  }
  func.func @transform_12(%arg0: i32, %arg1: i32, %arg2: memref<2xi32, #tpu.memory_space<smem>>) -> (i32, i32, i32) {
    %c0_i32 = arith.constant 0 : i32
    %c0_i32_0 = arith.constant 0 : i32
    %c0_i32_1 = arith.constant 0 : i32
    return %arg1, %c0_i32, %c0_i32_0 : i32, i32, i32
  }
  func.func @transform_13(%arg0: i32, %arg1: i32, %arg2: memref<2xi32, #tpu.memory_space<smem>>) -> (i32, i32, i32) {
    %c0_i32 = arith.constant 0 : i32
    %c0_i32_0 = arith.constant 0 : i32
    %c0_i32_1 = arith.constant 0 : i32
    return %arg0, %c0_i32, %c0_i32_0 : i32, i32, i32
  }
}

</mosaic_0001>

<llo_original>
// kernel: tpu_custom_call.1
$region0: #{tpu_custom_call.1}
  #allocation0 [shape = 'u32[]', space=smem, size = 0x4, offset = 0x4, fixed_abs, tag = 'smem constant byte address 0x4 - core index']
  #allocation1 [shape = 'u32[144,128]{1,0:T(1,128)}', space=vmem, size = 0x12000, scoped, tag = 'internal scratch']
  #allocation2 [shape = 'f32[2,8,8]{2,1,0:T(8,128)}', space=vmem, size = 0x2000, scoped, tag = 'scratch operand']
  #allocation3 [shape = 'f32[2,8,32]{2,1,0:T(8,128)}', space=vmem, size = 0x2000, scoped, tag = 'scratch operand']
  #allocation4 [shape = 's32[1]{0}', space=sflag, size = 0x4, scoped, tag = 'scoped memory for tpu_custom_call.1']
  #allocation5 [shape = 'u8[512]{0}', space=smem, size = 0x200, scoped, tag = 'prefetched SMEM operand 0']
  %s0 = inlined_call_operand.vmem [shape: s32[2], index: 0, kind: input, shape index: {}]
  %s1 = inlined_call_operand.vmem [shape: f32[2,8,32], index: 1, kind: input, shape index: {}]
  %s2 = inlined_call_operand.vmem [shape: bf16[2,32,96], index: 2, kind: input, shape index: {}]
  %s3 = inlined_call_operand.vmem [shape: f32[2,1,96], index: 3, kind: input, shape index: {}]
  %s4 = inlined_call_operand.vmem [shape: bf16[2,32,32], index: 4, kind: input, shape index: {}]
  %s5 = inlined_call_operand.vmem [shape: f32[2,1,32], index: 5, kind: input, shape index: {}]
  %s6 = inlined_call_operand.vmem [shape: f32[2,1,32], index: 6, kind: input, shape index: {}]
  %s7 = inlined_call_operand.vmem [shape: f32[2,1,32], index: 7, kind: input, shape index: {}]
  %s8 = inlined_call_operand.vmem [shape: bf16[2,32,128], index: 8, kind: input, shape index: {}]
  %s9 = inlined_call_operand.vmem [shape: f32[2,1,128], index: 9, kind: input, shape index: {}]
  %s10 = inlined_call_operand.vmem [shape: bf16[2,128,32], index: 10, kind: input, shape index: {}]
  %s11 = inlined_call_operand.vmem [shape: f32[2,1,32], index: 11, kind: input, shape index: {}]
  %s12 = inlined_call_operand.vmem [shape: f32[2,1,32], index: 12, kind: input, shape index: {}]
  %s13 = inlined_call_operand.vmem [shape: f32[2,1,32], index: 13, kind: input, shape index: {}]
  %s14 = inlined_call_operand.hbm [shape: bf16[2,8,32], index: 14, kind: output, shape index: {}]
  %s15 = sld [smem:[#allocation0]]
  $region93: #{tpu_custom_call.1} parent=0
    _
  %s17 = ssub.s32 1, %s15
  %s18 = scalar_select 0, %s17, %s15
  %s19 = sshll.u32 %s0, 4
  %s20 = int_to_ptr.vmem [resolvable:$true] %s19
  %22 = dma.vmem_to_smem %s20, 16, [#allocation5], [#allocation4]
  %23 = dma.done [#allocation4], 16
  %24 = sfence
  $region1: #{tpu_custom_call.1} parent=0
    #allocation6 [shape = 'u8[4096]{0}', space=vmem, size = 0x1000, scoped, tag = 'output window, operand 0, single buffered']
    #allocation7 [shape = 's32[2]{0}', space=sflag, size = 0x8, scoped, tag = 'scoped memory for tpu_custom_call.1']
    %25 = vsyncpa [#allocation7], 0
    loop: start=0, step=1, limit=4
    $region2: #{tpu_custom_call.1} parent=1 // loop_pre_header
      _
    $region3: #{tpu_custom_call.1} parent=1 // loop_header
      %s27 = sphi 0, %s31
      %p28 = scmp.ge.s32.totalorder %s27, 4
      %s34 = sphi 0, %s46
      %s35 = sphi 0, %s42
      %s36 = sphi 0, %s34
      %s37 = sphi 0, %s35
      %s38 = sphi 0, %s36
      %s39 = sphi 0, %s37
      %s49 = sphi 0, %s51
      %s52 = sphi 0, %s49
      %s53 = sphi 0, %s52
      %s69 = sphi 0, %s53
      %s75 = sphi 0, %s77
      %s78 = sphi 0, %s75
      %s79 = sphi 0, %s78
      %s95 = sphi 0, %s79
      %s101 = sphi 0, %s103
      %s104 = sphi 0, %s101
      %s105 = sphi 0, %s104
      %s121 = sphi 0, %s105
      %s127 = sphi 0, %s129
      %s130 = sphi 0, %s127
      %s131 = sphi 0, %s130
      %s147 = sphi 0, %s131
      %s153 = sphi 0, %s155
      %s156 = sphi 0, %s153
      %s157 = sphi 0, %s156
      %s173 = sphi 0, %s157
      %s179 = sphi 0, %s181
      %s182 = sphi 0, %s179
      %s183 = sphi 0, %s182
      %s199 = sphi 0, %s183
      %s205 = sphi 0, %s207
      %s208 = sphi 0, %s205
      %s209 = sphi 0, %s208
      %s225 = sphi 0, %s209
      %s231 = sphi 0, %s233
      %s234 = sphi 0, %s231
      %s235 = sphi 0, %s234
      %s251 = sphi 0, %s235
      %s257 = sphi 0, %s259
      %s260 = sphi 0, %s257
      %s261 = sphi 0, %s260
      %s277 = sphi 0, %s261
      %s283 = sphi 0, %s285
      %s286 = sphi 0, %s283
      %s287 = sphi 0, %s286
      %s303 = sphi 0, %s287
      %s309 = sphi 0, %s311
      %s312 = sphi 0, %s309
      %s313 = sphi 0, %s312
      %s329 = sphi 0, %s313
      %s335 = sphi 0, %s337
      %s338 = sphi 0, %s335
      %s339 = sphi 0, %s338
      %s355 = sphi 0, %s339
      %s361 = sphi 0, %s363
      %s364 = sphi 0, %s361
      %s365 = sphi 0, %s364
      %s381 = sphi 0, %s365
      %s387 = sphi 0, %s389
      %s390 = sphi 0, %s387
      %s391 = sphi 0, %s390
      %s407 = sphi 0, %s391
    $region4: #{tpu_custom_call.1} parent=1 // loop_header_branch
      %30 = sbr.rel (%p28) target = $region8
    $region5: #{tpu_custom_call.1} parent=1 // loop_body
      %s32 = ssub.s32 %s27, 1
      %s33 = ssub.s32 %s27, 2
      %s40 = sadd.s32 1, %s35
      %p41 = scmp.ge.s32.totalorder %s40, 2
      %s42 = scalar_select %p41, 0, %s40
      %s43 = sadd.s32 1, %s34
      %s44 = scalar_select %p41, %s43, %s34
      %p45 = scmp.ge.s32.totalorder %s44, 1
      %s46 = scalar_select %p45, 0, %s44
      %s47 = ssub.s32 %s34, %s46
      %p48 = scmp.eq.s32.totalorder %s47, 0
      %s50 = sadd.s32 %s49, 1
      %s51 = scalar_select %p48, %s49, %s50
      %p54 = pneg %p48
      %p55 = scmp.eq.s32.totalorder %s27, 1
      %p56 = por %p54, %p55
      %p57 = scmp.ne.s32.totalorder %s49, %s52
      %p58 = scmp.eq.s32.totalorder %s27, 0
      %p59 = por %p57, %p58
      %p60 = scmp.ne.s32.totalorder %s49, %s52
      %p61 = scmp.eq.s32.totalorder %s32, 1
      %p62 = por %p60, %p61
      %p63 = scmp.ne.s32.totalorder %s52, %s53
      %p64 = scmp.eq.s32.totalorder %s32, 0
      %p65 = por %p63, %p64
      %p66 = scmp.ne.s32.totalorder %s52, %s53
      %p67 = scmp.eq.s32.totalorder %s33, 1
      %p68 = por %p66, %p67
      %p70 = scmp.ne.s32.totalorder %s53, %s69
      %p71 = scmp.eq.s32.totalorder %s33, 0
      %p72 = por %p70, %p71
      %s73 = ssub.s32 %s35, %s42
      %p74 = scmp.eq.s32.totalorder %s73, 0
      %s76 = sadd.s32 %s75, 1
      %s77 = scalar_select %p74, %s75, %s76
      %p80 = pneg %p74
      %p81 = scmp.eq.s32.totalorder %s27, 1
      %p82 = por %p80, %p81
      %p83 = scmp.ne.s32.totalorder %s75, %s78
      %p84 = scmp.eq.s32.totalorder %s27, 0
      %p85 = por %p83, %p84
      %p86 = scmp.ne.s32.totalorder %s75, %s78
      %p87 = scmp.eq.s32.totalorder %s32, 1
      %p88 = por %p86, %p87
      %p89 = scmp.ne.s32.totalorder %s78, %s79
      %p90 = scmp.eq.s32.totalorder %s32, 0
      %p91 = por %p89, %p90
      %p92 = scmp.ne.s32.totalorder %s78, %s79
      %p93 = scmp.eq.s32.totalorder %s33, 1
      %p94 = por %p92, %p93
      %p96 = scmp.ne.s32.totalorder %s79, %s95
      %p97 = scmp.eq.s32.totalorder %s33, 0
      %p98 = por %p96, %p97
      %s99 = ssub.s32 %s35, %s42
      %p100 = scmp.eq.s32.totalorder %s99, 0
      %s102 = sadd.s32 %s101, 1
      %s103 = scalar_select %p100, %s101, %s102
      %p106 = pneg %p100
      %p107 = scmp.eq.s32.totalorder %s27, 1
      %p108 = por %p106, %p107
      %p109 = scmp.ne.s32.totalorder %s101, %s104
      %p110 = scmp.eq.s32.totalorder %s27, 0
      %p111 = por %p109, %p110
      %p112 = scmp.ne.s32.totalorder %s101, %s104
      %p113 = scmp.eq.s32.totalorder %s32, 1
      %p114 = por %p112, %p113
      %p115 = scmp.ne.s32.totalorder %s104, %s105
      %p116 = scmp.eq.s32.totalorder %s32, 0
      %p117 = por %p115, %p116
      %p118 = scmp.ne.s32.totalorder %s104, %s105
      %p119 = scmp.eq.s32.totalorder %s33, 1
      %p120 = por %p118, %p119
      %p122 = scmp.ne.s32.totalorder %s105, %s121
      %p123 = scmp.eq.s32.totalorder %s33, 0
      %p124 = por %p122, %p123
      %s125 = ssub.s32 %s35, %s42
      %p126 = scmp.eq.s32.totalorder %s125, 0
      %s128 = sadd.s32 %s127, 1
      %s129 = scalar_select %p126, %s127, %s128
      %p132 = pneg %p126
      %p133 = scmp.eq.s32.totalorder %s27, 1
      %p134 = por %p132, %p133
      %p135 = scmp.ne.s32.totalorder %s127, %s130
      %p136 = scmp.eq.s32.totalorder %s27, 0
      %p137 = por %p135, %p136
      %p138 = scmp.ne.s32.totalorder %s127, %s130
      %p139 = scmp.eq.s32.totalorder %s32, 1
      %p140 = por %p138, %p139
      %p141 = scmp.ne.s32.totalorder %s130, %s131
      %p142 = scmp.eq.s32.totalorder %s32, 0
      %p143 = por %p141, %p142
      %p144 = scmp.ne.s32.totalorder %s130, %s131
      %p145 = scmp.eq.s32.totalorder %s33, 1
      %p146 = por %p144, %p145
      %p148 = scmp.ne.s32.totalorder %s131, %s147
      %p149 = scmp.eq.s32.totalorder %s33, 0
      %p150 = por %p148, %p149
      %s151 = ssub.s32 %s35, %s42
      %p152 = scmp.eq.s32.totalorder %s151, 0
      %s154 = sadd.s32 %s153, 1
      %s155 = scalar_select %p152, %s153, %s154
      %p158 = pneg %p152
      %p159 = scmp.eq.s32.totalorder %s27, 1
      %p160 = por %p158, %p159
      %p161 = scmp.ne.s32.totalorder %s153, %s156
      %p162 = scmp.eq.s32.totalorder %s27, 0
      %p163 = por %p161, %p162
      %p164 = scmp.ne.s32.totalorder %s153, %s156
      %p165 = scmp.eq.s32.totalorder %s32, 1
      %p166 = por %p164, %p165
      %p167 = scmp.ne.s32.totalorder %s156, %s157
      %p168 = scmp.eq.s32.totalorder %s32, 0
      %p169 = por %p167, %p168
      %p170 = scmp.ne.s32.totalorder %s156, %s157
      %p171 = scmp.eq.s32.totalorder %s33, 1
      %p172 = por %p170, %p171
      %p174 = scmp.ne.s32.totalorder %s157, %s173
      %p175 = scmp.eq.s32.totalorder %s33, 0
      %p176 = por %p174, %p175
      %s177 = ssub.s32 %s35, %s42
      %p178 = scmp.eq.s32.totalorder %s177, 0
      %s180 = sadd.s32 %s179, 1
      %s181 = scalar_select %p178, %s179, %s180
      %p184 = pneg %p178
      %p185 = scmp.eq.s32.totalorder %s27, 1
      %p186 = por %p184, %p185
      %p187 = scmp.ne.s32.totalorder %s179, %s182
      %p188 = scmp.eq.s32.totalorder %s27, 0
      %p189 = por %p187, %p188
      %p190 = scmp.ne.s32.totalorder %s179, %s182
      %p191 = scmp.eq.s32.totalorder %s32, 1
      %p192 = por %p190, %p191
      %p193 = scmp.ne.s32.totalorder %s182, %s183
      %p194 = scmp.eq.s32.totalorder %s32, 0
      %p195 = por %p193, %p194
      %p196 = scmp.ne.s32.totalorder %s182, %s183
      %p197 = scmp.eq.s32.totalorder %s33, 1
      %p198 = por %p196, %p197
      %p200 = scmp.ne.s32.totalorder %s183, %s199
      %p201 = scmp.eq.s32.totalorder %s33, 0
      %p202 = por %p200, %p201
      %s203 = ssub.s32 %s35, %s42
      %p204 = scmp.eq.s32.totalorder %s203, 0
      %s206 = sadd.s32 %s205, 1
      %s207 = scalar_select %p204, %s205, %s206
      %p210 = pneg %p204
      %p211 = scmp.eq.s32.totalorder %s27, 1
      %p212 = por %p210, %p211
      %p213 = scmp.ne.s32.totalorder %s205, %s208
      %p214 = scmp.eq.s32.totalorder %s27, 0
      %p215 = por %p213, %p214
      %p216 = scmp.ne.s32.totalorder %s205, %s208
      %p217 = scmp.eq.s32.totalorder %s32, 1
      %p218 = por %p216, %p217
      %p219 = scmp.ne.s32.totalorder %s208, %s209
      %p220 = scmp.eq.s32.totalorder %s32, 0
      %p221 = por %p219, %p220
      %p222 = scmp.ne.s32.totalorder %s208, %s209
      %p223 = scmp.eq.s32.totalorder %s33, 1
      %p224 = por %p222, %p223
      %p226 = scmp.ne.s32.totalorder %s209, %s225
      %p227 = scmp.eq.s32.totalorder %s33, 0
      %p228 = por %p226, %p227
      %s229 = ssub.s32 %s35, %s42
      %p230 = scmp.eq.s32.totalorder %s229, 0
      %s232 = sadd.s32 %s231, 1
      %s233 = scalar_select %p230, %s231, %s232
      %p236 = pneg %p230
      %p237 = scmp.eq.s32.totalorder %s27, 1
      %p238 = por %p236, %p237
      %p239 = scmp.ne.s32.totalorder %s231, %s234
      %p240 = scmp.eq.s32.totalorder %s27, 0
      %p241 = por %p239, %p240
      %p242 = scmp.ne.s32.totalorder %s231, %s234
      %p243 = scmp.eq.s32.totalorder %s32, 1
      %p244 = por %p242, %p243
      %p245 = scmp.ne.s32.totalorder %s234, %s235
      %p246 = scmp.eq.s32.totalorder %s32, 0
      %p247 = por %p245, %p246
      %p248 = scmp.ne.s32.totalorder %s234, %s235
      %p249 = scmp.eq.s32.totalorder %s33, 1
      %p250 = por %p248, %p249
      %p252 = scmp.ne.s32.totalorder %s235, %s251
      %p253 = scmp.eq.s32.totalorder %s33, 0
      %p254 = por %p252, %p253
      %s255 = ssub.s32 %s35, %s42
      %p256 = scmp.eq.s32.totalorder %s255, 0
      %s258 = sadd.s32 %s257, 1
      %s259 = scalar_select %p256, %s257, %s258
      %p262 = pneg %p256
      %p263 = scmp.eq.s32.totalorder %s27, 1
      %p264 = por %p262, %p263
      %p265 = scmp.ne.s32.totalorder %s257, %s260
      %p266 = scmp.eq.s32.totalorder %s27, 0
      %p267 = por %p265, %p266
      %p268 = scmp.ne.s32.totalorder %s257, %s260
      %p269 = scmp.eq.s32.totalorder %s32, 1
      %p270 = por %p268, %p269
      %p271 = scmp.ne.s32.totalorder %s260, %s261
      %p272 = scmp.eq.s32.totalorder %s32, 0
      %p273 = por %p271, %p272
      %p274 = scmp.ne.s32.totalorder %s260, %s261
      %p275 = scmp.eq.s32.totalorder %s33, 1
      %p276 = por %p274, %p275
      %p278 = scmp.ne.s32.totalorder %s261, %s277
      %p279 = scmp.eq.s32.totalorder %s33, 0
      %p280 = por %p278, %p279
      %s281 = ssub.s32 %s35, %s42
      %p282 = scmp.eq.s32.totalorder %s281, 0
      %s284 = sadd.s32 %s283, 1
      %s285 = scalar_select %p282, %s283, %s284
      %p288 = pneg %p282
      %p289 = scmp.eq.s32.totalorder %s27, 1
      %p290 = por %p288, %p289
      %p291 = scmp.ne.s32.totalorder %s283, %s286
      %p292 = scmp.eq.s32.totalorder %s27, 0
      %p293 = por %p291, %p292
      %p294 = scmp.ne.s32.totalorder %s283, %s286
      %p295 = scmp.eq.s32.totalorder %s32, 1
      %p296 = por %p294, %p295
      %p297 = scmp.ne.s32.totalorder %s286, %s287
      %p298 = scmp.eq.s32.totalorder %s32, 0
      %p299 = por %p297, %p298
      %p300 = scmp.ne.s32.totalorder %s286, %s287
      %p301 = scmp.eq.s32.totalorder %s33, 1
      %p302 = por %p300, %p301
      %p304 = scmp.ne.s32.totalorder %s287, %s303
      %p305 = scmp.eq.s32.totalorder %s33, 0
      %p306 = por %p304, %p305
      %s307 = ssub.s32 %s35, %s42
      %p308 = scmp.eq.s32.totalorder %s307, 0
      %s310 = sadd.s32 %s309, 1
      %s311 = scalar_select %p308, %s309, %s310
      %p314 = pneg %p308
      %p315 = scmp.eq.s32.totalorder %s27, 1
      %p316 = por %p314, %p315
      %p317 = scmp.ne.s32.totalorder %s309, %s312
      %p318 = scmp.eq.s32.totalorder %s27, 0
      %p319 = por %p317, %p318
      %p320 = scmp.ne.s32.totalorder %s309, %s312
      %p321 = scmp.eq.s32.totalorder %s32, 1
      %p322 = por %p320, %p321
      %p323 = scmp.ne.s32.totalorder %s312, %s313
      %p324 = scmp.eq.s32.totalorder %s32, 0
      %p325 = por %p323, %p324
      %p326 = scmp.ne.s32.totalorder %s312, %s313
      %p327 = scmp.eq.s32.totalorder %s33, 1
      %p328 = por %p326, %p327
      %p330 = scmp.ne.s32.totalorder %s313, %s329
      %p331 = scmp.eq.s32.totalorder %s33, 0
      %p332 = por %p330, %p331
      %s333 = ssub.s32 %s35, %s42
      %p334 = scmp.eq.s32.totalorder %s333, 0
      %s336 = sadd.s32 %s335, 1
      %s337 = scalar_select %p334, %s335, %s336
      %p340 = pneg %p334
      %p341 = scmp.eq.s32.totalorder %s27, 1
      %p342 = por %p340, %p341
      %p343 = scmp.ne.s32.totalorder %s335, %s338
      %p344 = scmp.eq.s32.totalorder %s27, 0
      %p345 = por %p343, %p344
      %p346 = scmp.ne.s32.totalorder %s335, %s338
      %p347 = scmp.eq.s32.totalorder %s32, 1
      %p348 = por %p346, %p347
      %p349 = scmp.ne.s32.totalorder %s338, %s339
      %p350 = scmp.eq.s32.totalorder %s32, 0
      %p351 = por %p349, %p350
      %p352 = scmp.ne.s32.totalorder %s338, %s339
      %p353 = scmp.eq.s32.totalorder %s33, 1
      %p354 = por %p352, %p353
      %p356 = scmp.ne.s32.totalorder %s339, %s355
      %p357 = scmp.eq.s32.totalorder %s33, 0
      %p358 = por %p356, %p357
      %s359 = ssub.s32 %s35, %s42
      %p360 = scmp.eq.s32.totalorder %s359, 0
      %s362 = sadd.s32 %s361, 1
      %s363 = scalar_select %p360, %s361, %s362
      %p366 = pneg %p360
      %p367 = scmp.eq.s32.totalorder %s27, 1
      %p368 = por %p366, %p367
      %p369 = scmp.ne.s32.totalorder %s361, %s364
      %p370 = scmp.eq.s32.totalorder %s27, 0
      %p371 = por %p369, %p370
      %p372 = scmp.ne.s32.totalorder %s361, %s364
      %p373 = scmp.eq.s32.totalorder %s32, 1
      %p374 = por %p372, %p373
      %p375 = scmp.ne.s32.totalorder %s364, %s365
      %p376 = scmp.eq.s32.totalorder %s32, 0
      %p377 = por %p375, %p376
      %p378 = scmp.ne.s32.totalorder %s364, %s365
      %p379 = scmp.eq.s32.totalorder %s33, 1
      %p380 = por %p378, %p379
      %p382 = scmp.ne.s32.totalorder %s365, %s381
      %p383 = scmp.eq.s32.totalorder %s33, 0
      %p384 = por %p382, %p383
      %s385 = ssub.s32 %s34, %s46
      %p386 = scmp.eq.s32.totalorder %s385, 0
      %s388 = sadd.s32 %s387, 1
      %s389 = scalar_select %p386, %s387, %s388
      %p392 = pneg %p386
      %p393 = scmp.eq.s32.totalorder %s27, 1
      %p394 = por %p392, %p393
      %p395 = scmp.ne.s32.totalorder %s387, %s390
      %p396 = scmp.eq.s32.totalorder %s27, 0
      %p397 = por %p395, %p396
      %p398 = scmp.ne.s32.totalorder %s387, %s390
      %p399 = scmp.eq.s32.totalorder %s32, 1
      %p400 = por %p398, %p399
      %p401 = scmp.ne.s32.totalorder %s390, %s391
      %p402 = scmp.eq.s32.totalorder %s32, 0
      %p403 = por %p401, %p402
      %p404 = scmp.ne.s32.totalorder %s390, %s391
      %p405 = scmp.eq.s32.totalorder %s33, 1
      %p406 = por %p404, %p405
      %p408 = scmp.ne.s32.totalorder %s391, %s407
      %p409 = scmp.eq.s32.totalorder %s33, 0
      %p410 = por %p408, %p409
      %p411 = scmp.le.s32.totalorder 1, %s27
      %p412 = scmp.lt.s32.totalorder %s27, 3
      %p413 = pnand %p411, %p412
      %p414 = pneg %p413
      // Predicated region
      $region9: #{tpu_custom_call.1} parent=5 // pred_check
        _
      $region10: #{tpu_custom_call.1} parent=5 // pred_check_branch
        %416 = sbr.rel (%p413) target = $region12
      $region11: #{tpu_custom_call.1} parent=5 // pred_region
        %s417 = ssub.s32 %s27, 1
        // Predicated region
        $region13: #{tpu_custom_call.1} parent=11 // pred_check
          %p418 = pneg %p65
        $region14: #{tpu_custom_call.1} parent=11 // pred_check_branch
          %420 = sbr.rel (%p418) target = $region16
        $region15: #{tpu_custom_call.1} parent=11 // pred_region
          %s421 = smul.u32 2, %s36
          %p422 = scmp.lt.s32.totalorder %s421, 1
          %s423 = scalar_select %p422, %s421, 1
          %s424 = smul.addr %s423, 8
          %s425 = scalar_lea.vmem %s1, %s424
          %s426 = smul.u32 2, %s36
        $region16: #{tpu_custom_call.1} parent=11 // pred_fallthru
          _
      $region12: #{tpu_custom_call.1} parent=5 // pred_fallthru
        _
      %p427 = scmp.lt.s32.totalorder %s27, 2
      // Predicated region
      $region17: #{tpu_custom_call.1} parent=5 // pred_check
        %p428 = pneg %p427
      $region18: #{tpu_custom_call.1} parent=5 // pred_check_branch
        %430 = sbr.rel (%p428) target = $region20
      $region19: #{tpu_custom_call.1} parent=5 // pred_region
        // Predicated region
        $region21: #{tpu_custom_call.1} parent=19 // pred_check
          %p431 = pneg %p85
        $region22: #{tpu_custom_call.1} parent=19 // pred_check_branch
          %433 = sbr.rel (%p431) target = $region24
        $region23: #{tpu_custom_call.1} parent=19 // pred_region
          %p434 = scmp.lt.s32.totalorder %s35, 1
          %s435 = scalar_select %p434, %s35, 1
          %s436 = smul.addr %s435, 4
          %s437 = smul.addr %s436, 4
          %s438 = scalar_lea.vmem %s2, %s437
        $region24: #{tpu_custom_call.1} parent=19 // pred_fallthru
          _
        // Predicated region
        $region25: #{tpu_custom_call.1} parent=19 // pred_check
          %p439 = pneg %p111
        $region26: #{tpu_custom_call.1} parent=19 // pred_check_branch
          %441 = sbr.rel (%p439) target = $region28
        $region27: #{tpu_custom_call.1} parent=19 // pred_region
          %p442 = scmp.lt.s32.totalorder %s35, 1
          %s443 = scalar_select %p442, %s35, 1
          %s444 = scalar_lea.vmem %s3, %s443
        $region28: #{tpu_custom_call.1} parent=19 // pred_fallthru
          _
        // Predicated region
        $region29: #{tpu_custom_call.1} parent=19 // pred_check
          %p445 = pneg %p137
        $region30: #{tpu_custom_call.1} parent=19 // pred_check_branch
          %447 = sbr.rel (%p445) target = $region32
        $region31: #{tpu_custom_call.1} parent=19 // pred_region
          %p448 = scmp.lt.s32.totalorder %s35, 1
          %s449 = scalar_select %p448, %s35, 1
          %s450 = smul.addr %s449, 4
          %s451 = smul.addr %s450, 4
          %s452 = scalar_lea.vmem %s4, %s451
        $region32: #{tpu_custom_call.1} parent=19 // pred_fallthru
          _
        // Predicated region
        $region33: #{tpu_custom_call.1} parent=19 // pred_check
          %p453 = pneg %p163
        $region34: #{tpu_custom_call.1} parent=19 // pred_check_branch
          %455 = sbr.rel (%p453) target = $region36
        $region35: #{tpu_custom_call.1} parent=19 // pred_region
          %p456 = scmp.lt.s32.totalorder %s35, 1
          %s457 = scalar_select %p456, %s35, 1
          %s458 = scalar_lea.vmem %s5, %s457
        $region36: #{tpu_custom_call.1} parent=19 // pred_fallthru
          _
        // Predicated region
        $region37: #{tpu_custom_call.1} parent=19 // pred_check
          %p459 = pneg %p189
        $region38: #{tpu_custom_call.1} parent=19 // pred_check_branch
          %461 = sbr.rel (%p459) target = $region40
        $region39: #{tpu_custom_call.1} parent=19 // pred_region
          %p462 = scmp.lt.s32.totalorder %s35, 1
          %s463 = scalar_select %p462, %s35, 1
          %s464 = scalar_lea.vmem %s6, %s463
        $region40: #{tpu_custom_call.1} parent=19 // pred_fallthru
          _
        // Predicated region
        $region41: #{tpu_custom_call.1} parent=19 // pred_check
          %p465 = pneg %p215
        $region42: #{tpu_custom_call.1} parent=19 // pred_check_branch
          %467 = sbr.rel (%p465) target = $region44
        $region43: #{tpu_custom_call.1} parent=19 // pred_region
          %p468 = scmp.lt.s32.totalorder %s35, 1
          %s469 = scalar_select %p468, %s35, 1
          %s470 = scalar_lea.vmem %s7, %s469
        $region44: #{tpu_custom_call.1} parent=19 // pred_fallthru
          _
        // Predicated region
        $region45: #{tpu_custom_call.1} parent=19 // pred_check
          %p471 = pneg %p241
        $region46: #{tpu_custom_call.1} parent=19 // pred_check_branch
          %473 = sbr.rel (%p471) target = $region48
        $region47: #{tpu_custom_call.1} parent=19 // pred_region
          %p474 = scmp.lt.s32.totalorder %s35, 1
          %s475 = scalar_select %p474, %s35, 1
          %s476 = smul.addr %s475, 4
          %s477 = smul.addr %s476, 4
          %s478 = scalar_lea.vmem %s8, %s477
        $region48: #{tpu_custom_call.1} parent=19 // pred_fallthru
          _
        // Predicated region
        $region49: #{tpu_custom_call.1} parent=19 // pred_check
          %p479 = pneg %p267
        $region50: #{tpu_custom_call.1} parent=19 // pred_check_branch
          %481 = sbr.rel (%p479) target = $region52
        $region51: #{tpu_custom_call.1} parent=19 // pred_region
          %p482 = scmp.lt.s32.totalorder %s35, 1
          %s483 = scalar_select %p482, %s35, 1
          %s484 = scalar_lea.vmem %s9, %s483
        $region52: #{tpu_custom_call.1} parent=19 // pred_fallthru
          _
        // Predicated region
        $region53: #{tpu_custom_call.1} parent=19 // pred_check
          %p485 = pneg %p293
        $region54: #{tpu_custom_call.1} parent=19 // pred_check_branch
          %487 = sbr.rel (%p485) target = $region56
        $region55: #{tpu_custom_call.1} parent=19 // pred_region
          %p488 = scmp.lt.s32.totalorder %s35, 1
          %s489 = scalar_select %p488, %s35, 1
          %s490 = smul.addr %s489, 16
          %s491 = smul.addr %s490, 4
          %s492 = scalar_lea.vmem %s10, %s491
        $region56: #{tpu_custom_call.1} parent=19 // pred_fallthru
          _
        // Predicated region
        $region57: #{tpu_custom_call.1} parent=19 // pred_check
          %p493 = pneg %p319
        $region58: #{tpu_custom_call.1} parent=19 // pred_check_branch
          %495 = sbr.rel (%p493) target = $region60
        $region59: #{tpu_custom_call.1} parent=19 // pred_region
          %p496 = scmp.lt.s32.totalorder %s35, 1
          %s497 = scalar_select %p496, %s35, 1
          %s498 = scalar_lea.vmem %s11, %s497
        $region60: #{tpu_custom_call.1} parent=19 // pred_fallthru
          _
        // Predicated region
        $region61: #{tpu_custom_call.1} parent=19 // pred_check
          %p499 = pneg %p345
        $region62: #{tpu_custom_call.1} parent=19 // pred_check_branch
          %501 = sbr.rel (%p499) target = $region64
        $region63: #{tpu_custom_call.1} parent=19 // pred_region
          %p502 = scmp.lt.s32.totalorder %s35, 1
          %s503 = scalar_select %p502, %s35, 1
          %s504 = scalar_lea.vmem %s12, %s503
        $region64: #{tpu_custom_call.1} parent=19 // pred_fallthru
          _
        // Predicated region
        $region65: #{tpu_custom_call.1} parent=19 // pred_check
          %p505 = pneg %p371
        $region66: #{tpu_custom_call.1} parent=19 // pred_check_branch
          %507 = sbr.rel (%p505) target = $region68
        $region67: #{tpu_custom_call.1} parent=19 // pred_region
          %p508 = scmp.lt.s32.totalorder %s35, 1
          %s509 = scalar_select %p508, %s35, 1
          %s510 = scalar_lea.vmem %s13, %s509
        $region68: #{tpu_custom_call.1} parent=19 // pred_fallthru
          _
      $region20: #{tpu_custom_call.1} parent=5 // pred_fallthru
        _
      %p511 = scmp.le.s32.totalorder 1, %s27
      %p512 = scmp.lt.s32.totalorder %s27, 3
      %p513 = pnand %p511, %p512
      %p514 = pneg %p513
      // Predicated region
      $region69: #{tpu_custom_call.1} parent=5 // pred_check
        _
      $region70: #{tpu_custom_call.1} parent=5 // pred_check_branch
        %516 = sbr.rel (%p513) target = $region72
      $region71: #{tpu_custom_call.1} parent=5 // pred_region
        %s517 = ssub.s32 %s27, 1
        %s518 = smul.u32 2, %s36
        %p519 = scmp.lt.s32.totalorder %s518, 1
        %s520 = scalar_select %p519, %s518, 1
        %s521 = smul.addr %s520, 8
        %s522 = scalar_lea.vmem %s1, %s521
        %p523 = pneg %p65
        %p524 = pneg %p62
        %p525 = scmp.lt.s32.totalorder %s37, 1
        %s526 = scalar_select %p525, %s37, 1
        %s527 = smul.addr %s526, 4
        %s528 = smul.addr %s527, 4
        %s529 = scalar_lea.vmem %s2, %s528
        %p530 = pneg %p91
        %p531 = pneg %p88
        %p532 = scmp.lt.s32.totalorder %s37, 1
        %s533 = scalar_select %p532, %s37, 1
        %s534 = scalar_lea.vmem %s3, %s533
        %p535 = pneg %p117
        %p536 = pneg %p114
        %p537 = scmp.lt.s32.totalorder %s37, 1
        %s538 = scalar_select %p537, %s37, 1
        %s539 = smul.addr %s538, 4
        %s540 = smul.addr %s539, 4
        %s541 = scalar_lea.vmem %s4, %s540
        %p542 = pneg %p143
        %p543 = pneg %p140
        %p544 = scmp.lt.s32.totalorder %s37, 1
        %s545 = scalar_select %p544, %s37, 1
        %s546 = scalar_lea.vmem %s5, %s545
        %p547 = pneg %p169
        %p548 = pneg %p166
        %p549 = scmp.lt.s32.totalorder %s37, 1
        %s550 = scalar_select %p549, %s37, 1
        %s551 = scalar_lea.vmem %s6, %s550
        %p552 = pneg %p195
        %p553 = pneg %p192
        %p554 = scmp.lt.s32.totalorder %s37, 1
        %s555 = scalar_select %p554, %s37, 1
        %s556 = scalar_lea.vmem %s7, %s555
        %p557 = pneg %p221
        %p558 = pneg %p218
        %p559 = scmp.lt.s32.totalorder %s37, 1
        %s560 = scalar_select %p559, %s37, 1
        %s561 = smul.addr %s560, 4
        %s562 = smul.addr %s561, 4
        %s563 = scalar_lea.vmem %s8, %s562
        %p564 = pneg %p247
        %p565 = pneg %p244
        %p566 = scmp.lt.s32.totalorder %s37, 1
        %s567 = scalar_select %p566, %s37, 1
        %s568 = scalar_lea.vmem %s9, %s567
        %p569 = pneg %p273
        %p570 = pneg %p270
        %p571 = scmp.lt.s32.totalorder %s37, 1
        %s572 = scalar_select %p571, %s37, 1
        %s573 = smul.addr %s572, 16
        %s574 = smul.addr %s573, 4
        %s575 = scalar_lea.vmem %s10, %s574
        %p576 = pneg %p299
        %p577 = pneg %p296
        %p578 = scmp.lt.s32.totalorder %s37, 1
        %s579 = scalar_select %p578, %s37, 1
        %s580 = scalar_lea.vmem %s11, %s579
        %p581 = pneg %p325
        %p582 = pneg %p322
        %p583 = scmp.lt.s32.totalorder %s37, 1
        %s584 = scalar_select %p583, %s37, 1
        %s585 = scalar_lea.vmem %s12, %s584
        %p586 = pneg %p351
        %p587 = pneg %p348
        %p588 = scmp.lt.s32.totalorder %s37, 1
        %s589 = scalar_select %p588, %s37, 1
        %s590 = scalar_lea.vmem %s13, %s589
        %p591 = pneg %p377
        %p592 = pneg %p374
        %p593 = pneg %p403
        %p594 = pneg %p400
        %s595 = smul.u32 2, %s36
        %p596 = scmp.lt.s32.totalorder %s595, 1
        %s597 = scalar_select %p596, %s595, 1
        %s598 = smul.addr %s597, 8
        %s599 = scalar_lea.vmem %s1, %s598
        %s600 = smul.u32 2, %s36
        %p601 = scmp.lt.s32.totalorder %s37, 1
        %s602 = scalar_select %p601, %s37, 1
        %s603 = smul.addr %s602, 4
        %s604 = smul.addr %s603, 4
        %s605 = scalar_lea.vmem %s2, %s604
        %p606 = scmp.lt.s32.totalorder %s37, 1
        %s607 = scalar_select %p606, %s37, 1
        %s608 = scalar_lea.vmem %s3, %s607
        %p609 = scmp.lt.s32.totalorder %s37, 1
        %s610 = scalar_select %p609, %s37, 1
        %s611 = smul.addr %s610, 4
        %s612 = smul.addr %s611, 4
        %s613 = scalar_lea.vmem %s4, %s612
        %p614 = scmp.lt.s32.totalorder %s37, 1
        %s615 = scalar_select %p614, %s37, 1
        %s616 = scalar_lea.vmem %s5, %s615
        %p617 = scmp.lt.s32.totalorder %s37, 1
        %s618 = scalar_select %p617, %s37, 1
        %s619 = scalar_lea.vmem %s6, %s618
        %p620 = scmp.lt.s32.totalorder %s37, 1
        %s621 = scalar_select %p620, %s37, 1
        %s622 = scalar_lea.vmem %s7, %s621
        %p623 = scmp.lt.s32.totalorder %s37, 1
        %s624 = scalar_select %p623, %s37, 1
        %s625 = smul.addr %s624, 4
        %s626 = smul.addr %s625, 4
        %s627 = scalar_lea.vmem %s8, %s626
        %p628 = scmp.lt.s32.totalorder %s37, 1
        %s629 = scalar_select %p628, %s37, 1
        %s630 = scalar_lea.vmem %s9, %s629
        %p631 = scmp.lt.s32.totalorder %s37, 1
        %s632 = scalar_select %p631, %s37, 1
        %s633 = smul.addr %s632, 16
        %s634 = smul.addr %s633, 4
        %s635 = scalar_lea.vmem %s10, %s634
        %p636 = scmp.lt.s32.totalorder %s37, 1
        %s637 = scalar_select %p636, %s37, 1
        %s638 = scalar_lea.vmem %s11, %s637
        %p639 = scmp.lt.s32.totalorder %s37, 1
        %s640 = scalar_select %p639, %s37, 1
        %s641 = scalar_lea.vmem %s12, %s640
        %p642 = scmp.lt.s32.totalorder %s37, 1
        %s643 = scalar_select %p642, %s37, 1
        %s644 = scalar_lea.vmem %s13, %s643
        %s645 = smul.u32 2, %s36
        %p647 = scmp.eq.s32.totalorder %s37, 0
        // Predicated region
        $region73: #{tpu_custom_call.1} parent=71 // pred_check
          %p648 = pneg %p647
        $region74: #{tpu_custom_call.1} parent=71 // pred_check_branch
          %650 = sbr.rel (%p648) target = $region76
        $region75: #{tpu_custom_call.1} parent=71 // pred_region
          %v651 = vld [vmem:[%s599] sm:$0xff]
          %v652 = vld [vmem:[%s599 + $0x8] sm:$0xff]
          %vm653 = vcmask 261120
          %654 = vst.msk [vmem:[#allocation3] sm:$0xff] %vm653, %v651
          %655 = vst.msk [vmem:[#allocation3 + $0x8] sm:$0xff] %vm653, %v652
          %v656 = vlaneseq
          %v657 = vshrl.u32 %v656, 7
          %v658 = vlaneseq
          %v659 = vand.u32 %v658, 127
          %vm660 = vcmp.le.s32.totalorder %v659, %v657
          %s661 = smul.u32 %s36, 2
          %s662 = sld [smem:[#allocation5 + %s661]]
          %v663 = vstv %s662
          %vm664 = vcmp.lt.s32.totalorder %v659, %v663
          %vm665 = vmand %vm660, %vm664
          %v666 = vsel %vm665, 0.0, -1e+30
          %vm667 = vcmask 64512
          %668 = vst.msk [vmem:[#allocation2] sm:$0xff] %vm667, %v666
          %s669 = sadd.s32 %s661, 1
          %s670 = sld [smem:[#allocation5 + %s669]]
          %v671 = vstv %s670
          %vm672 = vcmp.lt.s32.totalorder %v659, %v671
          %vm673 = vmand %vm660, %vm672
          %v674 = vsel %vm673, 0.0, -1e+30
          %s675 = scalar_lea.vmem [#allocation2], 8
          %676 = vst.msk [vmem:[%s675] sm:$0xff] %vm667, %v674
        $region76: #{tpu_custom_call.1} parent=71 // pred_fallthru
          _
        %v677 = vld [vmem:[#allocation3] sm:$0xff]
        %v678 = vld [vmem:[#allocation3 + $0x8] sm:$0xff]
        %v679 = vld [vmem:[#allocation2] sm:$0xff]
        %v680 = vld [vmem:[#allocation2 + $0x8] sm:$0xff]
        %v681 = vpack.c.bf16 %v678, %v677
        %v682 = vld [vmem:[%s605] sm:$0xf]
        %v683 = vld [vmem:[%s605 + $0x4] sm:$0xf]
        %v684 = vld [vmem:[%s605 + $0x8] sm:$0xf]
        %v685 = vld [vmem:[%s605 + $0xc] sm:$0xf]
        %v686 = vld [vmem:[%s608] sm:$0x1]
        %v688 = vlaneseq
        %v689 = vshrl.u32 %v688, 7
        %v690 = vsub.s32 0, %v689
        %v691 = vrot.slane %v686, %v690
        %v697 = vunpack.c.l.b16 %v682
        %v698 = vunpack.c.l.b16 %v683
        %v699 = vunpack.c.l.b16 %v684
        %v700 = vunpack.c.l.b16 %v685
        %v701 = vpack.c.b16 %v698, %v697
        %v702 = vpack.c.b16 %v700, %v699
        %vm705 = vcmask 261120
        %v707 = vsel %vm705, %v681, 0
        %709 = vmatprep.subr.bf16.mxu0 0
        %710 = vmatpush1.bf16.msra.mxu0 %v701
        %711 = vmatprep.subr.bf16.mxu0 0
        %712 = vmatpush1.bf16.msra.mxu0 %v702
        %713 = vmatprep.subr.bf16.mxu0 0
        %714 = vmatpush1.bf16.msra.mxu0 0
        %715 = vmatprep.subr.bf16.mxu0 0
        %716 = vmatpush1.bf16.msra.mxu0 0
        %717 = vmatprep.subr.bf16.mxu0 0
        %718 = vmatpush1.bf16.msra.mxu0 0
        %719 = vmatprep.subr.bf16.mxu0 0
        %720 = vmatpush1.bf16.msra.mxu0 0
        %721 = vmatprep.subr.bf16.mxu0 0
        %722 = vmatpush1.bf16.msra.mxu0 0
        %723 = vmatprep.subr.bf16.mxu0 0
        %724 = vmatpush1.bf16.msra.mxu0 0
        %725 = vmatprep.subr.bf16.mxu0 0
        %726 = vmatpush1.bf16.msra.mxu0 0
        %727 = vmatprep.subr.bf16.mxu0 0
        %728 = vmatpush1.bf16.msra.mxu0 0
        %729 = vmatprep.subr.bf16.mxu0 0
        %730 = vmatpush1.bf16.msra.mxu0 0
        %731 = vmatprep.subr.bf16.mxu0 0
        %732 = vmatpush1.bf16.msra.mxu0 0
        %733 = vmatprep.subr.bf16.mxu0 0
        %734 = vmatpush1.bf16.msra.mxu0 0
        %735 = vmatprep.subr.bf16.mxu0 0
        %736 = vmatpush1.bf16.msra.mxu0 0
        %737 = vmatprep.subr.bf16.mxu0 0
        %738 = vmatpush1.bf16.msra.mxu0 0
        %739 = vmatprep.subr.bf16.mxu0 0
        %740 = vmatpush1.bf16.msra.mxu0 0
        %741 = vmatprep.mubr.bf16.mxu0 0
        %742 = vmatmul.mubr.bf16.gmra.mrb[0].mxu0 %v707
        %v743 = vpop.f32.mrb[0].mxu0
        %v744 = vadd.f32 %v691, %v743
        %v745 = vpop.f32.mrb[0].mxu0
        %v746 = vpop.f32.mrb[0].mxu0
        %v747 = vadd.f32 %v691, %v746
        %v748 = vpop.f32.mrb[0].mxu0
        %749 = vdwg.mxu0
        %752 = vrot.lane.b32.xlu0 %v744, 120
        %v753 = vpop.permute.xlu0 %752
        %754 = vrot.lane.b32.xlu0 %v747, 120
        %v755 = vpop.permute.xlu0 %754
        %758 = vrot.lane.b32.xlu0 %v744, 112
        %v759 = vpop.permute.xlu0 %758
        %760 = vrot.lane.b32.xlu0 %v747, 112
        %v761 = vpop.permute.xlu0 %760
        %764 = vrot.lane.b32.xlu0 %v744, 104
        %v765 = vpop.permute.xlu0 %764
        %766 = vrot.lane.b32.xlu0 %v747, 104
        %v767 = vpop.permute.xlu0 %766
        %770 = vrot.lane.b32.xlu0 %v744, 96
        %v771 = vpop.permute.xlu0 %770
        %772 = vrot.lane.b32.xlu0 %v747, 96
        %v773 = vpop.permute.xlu0 %772
        %776 = vrot.lane.b32.xlu0 %v744, 88
        %v777 = vpop.permute.xlu0 %776
        %778 = vrot.lane.b32.xlu0 %v747, 88
        %v779 = vpop.permute.xlu0 %778
        %782 = vrot.lane.b32.xlu0 %v744, 80
        %v783 = vpop.permute.xlu0 %782
        %784 = vrot.lane.b32.xlu0 %v747, 80
        %v785 = vpop.permute.xlu0 %784
        %788 = vrot.lane.b32.xlu0 %v744, 72
        %v789 = vpop.permute.xlu0 %788
        %790 = vrot.lane.b32.xlu0 %v747, 72
        %v791 = vpop.permute.xlu0 %790
        %794 = vrot.lane.b32.xlu0 %v744, 64
        %v795 = vpop.permute.xlu0 %794
        %796 = vrot.lane.b32.xlu0 %v747, 64
        %v797 = vpop.permute.xlu0 %796
        %800 = vrot.lane.b32.xlu0 %v744, 56
        %v801 = vpop.permute.xlu0 %800
        %802 = vrot.lane.b32.xlu0 %v747, 56
        %v803 = vpop.permute.xlu0 %802
        %806 = vrot.lane.b32.xlu0 %v744, 48
        %v807 = vpop.permute.xlu0 %806
        %808 = vrot.lane.b32.xlu0 %v747, 48
        %v809 = vpop.permute.xlu0 %808
        %812 = vrot.lane.b32.xlu0 %v744, 40
        %v813 = vpop.permute.xlu0 %812
        %814 = vrot.lane.b32.xlu0 %v747, 40
        %v815 = vpop.permute.xlu0 %814
        %v818 = vcombine.low %v744, %v759
        %v819 = vcombine.high %v744, %v759
        %v821 = vunpack.c.l.s4 1983009808
        %v822 = vunpack.c.0.s8 %v821
        %v823 = vlaneseq
        %v824 = vshrl.u32 %v823, 7
        %v825 = vsub.s32 %v822, %v824
        %v826 = vrot.slane %v818, %v825
        %v828 = vunpack.c.l.s4 1983009808
        %v829 = vunpack.c.0.s8 %v828
        %v830 = vlaneseq
        %v831 = vshrl.u32 %v830, 7
        %v832 = vsub.s32 %v829, %v831
        %v833 = vrot.slane %v819, %v832
        %v834 = vcombine.low %v753, %v765
        %v835 = vcombine.high %v753, %v765
        %v837 = vunpack.c.l.s4 1983009808
        %v838 = vunpack.c.0.s8 %v837
        %v839 = vlaneseq
        %v840 = vshrl.u32 %v839, 7
        %v841 = vsub.s32 %v838, %v840
        %v842 = vrot.slane %v834, %v841
        %v844 = vunpack.c.l.s4 1983009808
        %v845 = vunpack.c.0.s8 %v844
        %v846 = vlaneseq
        %v847 = vshrl.u32 %v846, 7
        %v848 = vsub.s32 %v845, %v847
        %v849 = vrot.slane %v835, %v848
        %v850 = vcombine.low %v771, %v783
        %v851 = vcombine.high %v771, %v783
        %v853 = vunpack.c.l.s4 1983009808
        %v854 = vunpack.c.0.s8 %v853
        %v855 = vlaneseq
        %v856 = vshrl.u32 %v855, 7
        %v857 = vsub.s32 %v854, %v856
        %v858 = vrot.slane %v850, %v857
        %v860 = vunpack.c.l.s4 1983009808
        %v861 = vunpack.c.0.s8 %v860
        %v862 = vlaneseq
        %v863 = vshrl.u32 %v862, 7
        %v864 = vsub.s32 %v861, %v863
        %v865 = vrot.slane %v851, %v864
        %v866 = vcombine.low %v777, %v789
        %v867 = vcombine.high %v777, %v789
        %v869 = vunpack.c.l.s4 1983009808
        %v870 = vunpack.c.0.s8 %v869
        %v871 = vlaneseq
        %v872 = vshrl.u32 %v871, 7
        %v873 = vsub.s32 %v870, %v872
        %v874 = vrot.slane %v866, %v873
        %v876 = vunpack.c.l.s4 1983009808
        %v877 = vunpack.c.0.s8 %v876
        %v878 = vlaneseq
        %v879 = vshrl.u32 %v878, 7
        %v880 = vsub.s32 %v877, %v879
        %v881 = vrot.slane %v867, %v880
        %v882 = vcombine.low %v826, %v842
        %v883 = vcombine.high %v826, %v842
        %v885 = vunpack.c.l.s4 1934713408
        %v886 = vunpack.c.0.s8 %v885
        %v887 = vlaneseq
        %v888 = vshrl.u32 %v887, 7
        %v889 = vsub.s32 %v886, %v888
        %v890 = vrot.slane %v882, %v889
        %v892 = vunpack.c.l.s4 1934713408
        %v893 = vunpack.c.0.s8 %v892
        %v894 = vlaneseq
        %v895 = vshrl.u32 %v894, 7
        %v896 = vsub.s32 %v893, %v895
        %v897 = vrot.slane %v883, %v896
        %v898 = vcombine.low %v833, %v849
        %v899 = vcombine.high %v833, %v849
        %v901 = vunpack.c.l.s4 1934713408
        %v902 = vunpack.c.0.s8 %v901
        %v903 = vlaneseq
        %v904 = vshrl.u32 %v903, 7
        %v905 = vsub.s32 %v902, %v904
        %v906 = vrot.slane %v898, %v905
        %v908 = vunpack.c.l.s4 1934713408
        %v909 = vunpack.c.0.s8 %v908
        %v910 = vlaneseq
        %v911 = vshrl.u32 %v910, 7
        %v912 = vsub.s32 %v909, %v911
        %v913 = vrot.slane %v899, %v912
        %v914 = vcombine.low %v858, %v874
        %v915 = vcombine.high %v858, %v874
        %v917 = vunpack.c.l.s4 1934713408
        %v918 = vunpack.c.0.s8 %v917
        %v919 = vlaneseq
        %v920 = vshrl.u32 %v919, 7
        %v921 = vsub.s32 %v918, %v920
        %v922 = vrot.slane %v914, %v921
        %v924 = vunpack.c.l.s4 1934713408
        %v925 = vunpack.c.0.s8 %v924
        %v926 = vlaneseq
        %v927 = vshrl.u32 %v926, 7
        %v928 = vsub.s32 %v925, %v927
        %v929 = vrot.slane %v915, %v928
        %v930 = vcombine.low %v865, %v881
        %v931 = vcombine.high %v865, %v881
        %v933 = vunpack.c.l.s4 1934713408
        %v934 = vunpack.c.0.s8 %v933
        %v935 = vlaneseq
        %v936 = vshrl.u32 %v935, 7
        %v937 = vsub.s32 %v934, %v936
        %v938 = vrot.slane %v930, %v937
        %v940 = vunpack.c.l.s4 1934713408
        %v941 = vunpack.c.0.s8 %v940
        %v942 = vlaneseq
        %v943 = vshrl.u32 %v942, 7
        %v944 = vsub.s32 %v941, %v943
        %v945 = vrot.slane %v931, %v944
        %v946 = vcombine.low %v890, %v922
        %v947 = vcombine.high %v890, %v922
        %v948 = vcombine.low %v897, %v929
        %v949 = vcombine.high %v897, %v929
        %v950 = vcombine.low %v906, %v938
        %v951 = vcombine.high %v906, %v938
        %v952 = vcombine.low %v913, %v945
        %v953 = vcombine.high %v913, %v945
        %v954 = vcombine.low %v795, %v807
        %v955 = vcombine.high %v795, %v807
        %v957 = vunpack.c.l.s4 1983009808
        %v958 = vunpack.c.0.s8 %v957
        %v959 = vlaneseq
        %v960 = vshrl.u32 %v959, 7
        %v961 = vsub.s32 %v958, %v960
        %v962 = vrot.slane %v954, %v961
        %v964 = vunpack.c.l.s4 1983009808
        %v965 = vunpack.c.0.s8 %v964
        %v966 = vlaneseq
        %v967 = vshrl.u32 %v966, 7
        %v968 = vsub.s32 %v965, %v967
        %v969 = vrot.slane %v955, %v968
        %v970 = vcombine.low %v801, %v813
        %v971 = vcombine.high %v801, %v813
        %v973 = vunpack.c.l.s4 1983009808
        %v974 = vunpack.c.0.s8 %v973
        %v975 = vlaneseq
        %v976 = vshrl.u32 %v975, 7
        %v977 = vsub.s32 %v974, %v976
        %v978 = vrot.slane %v970, %v977
        %v980 = vunpack.c.l.s4 1983009808
        %v981 = vunpack.c.0.s8 %v980
        %v982 = vlaneseq
        %v983 = vshrl.u32 %v982, 7
        %v984 = vsub.s32 %v981, %v983
        %v985 = vrot.slane %v971, %v984
        %v986 = vcombine.low %v962, %v978
        %v987 = vcombine.high %v962, %v978
        %v989 = vunpack.c.l.s4 1934713408
        %v990 = vunpack.c.0.s8 %v989
        %v991 = vlaneseq
        %v992 = vshrl.u32 %v991, 7
        %v993 = vsub.s32 %v990, %v992
        %v994 = vrot.slane %v986, %v993
        %v996 = vunpack.c.l.s4 1934713408
        %v997 = vunpack.c.0.s8 %v996
        %v998 = vlaneseq
        %v999 = vshrl.u32 %v998, 7
        %v1000 = vsub.s32 %v997, %v999
        %v1001 = vrot.slane %v987, %v1000
        %v1002 = vcombine.low %v969, %v985
        %v1003 = vcombine.high %v969, %v985
        %v1005 = vunpack.c.l.s4 1934713408
        %v1006 = vunpack.c.0.s8 %v1005
        %v1007 = vlaneseq
        %v1008 = vshrl.u32 %v1007, 7
        %v1009 = vsub.s32 %v1006, %v1008
        %v1010 = vrot.slane %v1002, %v1009
        %v1012 = vunpack.c.l.s4 1934713408
        %v1013 = vunpack.c.0.s8 %v1012
        %v1014 = vlaneseq
        %v1015 = vshrl.u32 %v1014, 7
        %v1016 = vsub.s32 %v1013, %v1015
        %v1017 = vrot.slane %v1003, %v1016
        %v1018 = vcombine.high %v994, 0.0
        %v1019 = vcombine.high %v1001, 0.0
        %v1020 = vcombine.high %v1010, 0.0
        %v1021 = vcombine.high %v1017, 0.0
        %v1022 = vcombine.low %v747, %v761
        %v1023 = vcombine.high %v747, %v761
        %v1025 = vunpack.c.l.s4 1983009808
        %v1026 = vunpack.c.0.s8 %v1025
        %v1027 = vlaneseq
        %v1028 = vshrl.u32 %v1027, 7
        %v1029 = vsub.s32 %v1026, %v1028
        %v1030 = vrot.slane %v1022, %v1029
        %v1032 = vunpack.c.l.s4 1983009808
        %v1033 = vunpack.c.0.s8 %v1032
        %v1034 = vlaneseq
        %v1035 = vshrl.u32 %v1034, 7
        %v1036 = vsub.s32 %v1033, %v1035
        %v1037 = vrot.slane %v1023, %v1036
        %v1038 = vcombine.low %v755, %v767
        %v1039 = vcombine.high %v755, %v767
        %v1041 = vunpack.c.l.s4 1983009808
        %v1042 = vunpack.c.0.s8 %v1041
        %v1043 = vlaneseq
        %v1044 = vshrl.u32 %v1043, 7
        %v1045 = vsub.s32 %v1042, %v1044
        %v1046 = vrot.slane %v1038, %v1045
        %v1048 = vunpack.c.l.s4 1983009808
        %v1049 = vunpack.c.0.s8 %v1048
        %v1050 = vlaneseq
        %v1051 = vshrl.u32 %v1050, 7
        %v1052 = vsub.s32 %v1049, %v1051
        %v1053 = vrot.slane %v1039, %v1052
        %v1054 = vcombine.low %v773, %v785
        %v1055 = vcombine.high %v773, %v785
        %v1057 = vunpack.c.l.s4 1983009808
        %v1058 = vunpack.c.0.s8 %v1057
        %v1059 = vlaneseq
        %v1060 = vshrl.u32 %v1059, 7
        %v1061 = vsub.s32 %v1058, %v1060
        %v1062 = vrot.slane %v1054, %v1061
        %v1064 = vunpack.c.l.s4 1983009808
        %v1065 = vunpack.c.0.s8 %v1064
        %v1066 = vlaneseq
        %v1067 = vshrl.u32 %v1066, 7
        %v1068 = vsub.s32 %v1065, %v1067
        %v1069 = vrot.slane %v1055, %v1068
        %v1070 = vcombine.low %v779, %v791
        %v1071 = vcombine.high %v779, %v791
        %v1073 = vunpack.c.l.s4 1983009808
        %v1074 = vunpack.c.0.s8 %v1073
        %v1075 = vlaneseq
        %v1076 = vshrl.u32 %v1075, 7
        %v1077 = vsub.s32 %v1074, %v1076
        %v1078 = vrot.slane %v1070, %v1077
        %v1080 = vunpack.c.l.s4 1983009808
        %v1081 = vunpack.c.0.s8 %v1080
        %v1082 = vlaneseq
        %v1083 = vshrl.u32 %v1082, 7
        %v1084 = vsub.s32 %v1081, %v1083
        %v1085 = vrot.slane %v1071, %v1084
        %v1086 = vcombine.low %v1030, %v1046
        %v1087 = vcombine.high %v1030, %v1046
        %v1089 = vunpack.c.l.s4 1934713408
        %v1090 = vunpack.c.0.s8 %v1089
        %v1091 = vlaneseq
        %v1092 = vshrl.u32 %v1091, 7
        %v1093 = vsub.s32 %v1090, %v1092
        %v1094 = vrot.slane %v1086, %v1093
        %v1096 = vunpack.c.l.s4 1934713408
        %v1097 = vunpack.c.0.s8 %v1096
        %v1098 = vlaneseq
        %v1099 = vshrl.u32 %v1098, 7
        %v1100 = vsub.s32 %v1097, %v1099
        %v1101 = vrot.slane %v1087, %v1100
        %v1102 = vcombine.low %v1037, %v1053
        %v1103 = vcombine.high %v1037, %v1053
        %v1105 = vunpack.c.l.s4 1934713408
        %v1106 = vunpack.c.0.s8 %v1105
        %v1107 = vlaneseq
        %v1108 = vshrl.u32 %v1107, 7
        %v1109 = vsub.s32 %v1106, %v1108
        %v1110 = vrot.slane %v1102, %v1109
        %v1112 = vunpack.c.l.s4 1934713408
        %v1113 = vunpack.c.0.s8 %v1112
        %v1114 = vlaneseq
        %v1115 = vshrl.u32 %v1114, 7
        %v1116 = vsub.s32 %v1113, %v1115
        %v1117 = vrot.slane %v1103, %v1116
        %v1118 = vcombine.low %v1062, %v1078
        %v1119 = vcombine.high %v1062, %v1078
        %v1121 = vunpack.c.l.s4 1934713408
        %v1122 = vunpack.c.0.s8 %v1121
        %v1123 = vlaneseq
        %v1124 = vshrl.u32 %v1123, 7
        %v1125 = vsub.s32 %v1122, %v1124
        %v1126 = vrot.slane %v1118, %v1125
        %v1128 = vunpack.c.l.s4 1934713408
        %v1129 = vunpack.c.0.s8 %v1128
        %v1130 = vlaneseq
        %v1131 = vshrl.u32 %v1130, 7
        %v1132 = vsub.s32 %v1129, %v1131
        %v1133 = vrot.slane %v1119, %v1132
        %v1134 = vcombine.low %v1069, %v1085
        %v1135 = vcombine.high %v1069, %v1085
        %v1137 = vunpack.c.l.s4 1934713408
        %v1138 = vunpack.c.0.s8 %v1137
        %v1139 = vlaneseq
        %v1140 = vshrl.u32 %v1139, 7
        %v1141 = vsub.s32 %v1138, %v1140
        %v1142 = vrot.slane %v1134, %v1141
        %v1144 = vunpack.c.l.s4 1934713408
        %v1145 = vunpack.c.0.s8 %v1144
        %v1146 = vlaneseq
        %v1147 = vshrl.u32 %v1146, 7
        %v1148 = vsub.s32 %v1145, %v1147
        %v1149 = vrot.slane %v1135, %v1148
        %v1150 = vcombine.low %v1094, %v1126
        %v1151 = vcombine.high %v1094, %v1126
        %v1152 = vcombine.low %v1101, %v1133
        %v1153 = vcombine.high %v1101, %v1133
        %v1154 = vcombine.low %v1110, %v1142
        %v1155 = vcombine.high %v1110, %v1142
        %v1156 = vcombine.low %v1117, %v1149
        %v1157 = vcombine.high %v1117, %v1149
        %v1158 = vcombine.low %v797, %v809
        %v1159 = vcombine.high %v797, %v809
        %v1161 = vunpack.c.l.s4 1983009808
        %v1162 = vunpack.c.0.s8 %v1161
        %v1163 = vlaneseq
        %v1164 = vshrl.u32 %v1163, 7
        %v1165 = vsub.s32 %v1162, %v1164
        %v1166 = vrot.slane %v1158, %v1165
        %v1168 = vunpack.c.l.s4 1983009808
        %v1169 = vunpack.c.0.s8 %v1168
        %v1170 = vlaneseq
        %v1171 = vshrl.u32 %v1170, 7
        %v1172 = vsub.s32 %v1169, %v1171
        %v1173 = vrot.slane %v1159, %v1172
        %v1174 = vcombine.low %v803, %v815
        %v1175 = vcombine.high %v803, %v815
        %v1177 = vunpack.c.l.s4 1983009808
        %v1178 = vunpack.c.0.s8 %v1177
        %v1179 = vlaneseq
        %v1180 = vshrl.u32 %v1179, 7
        %v1181 = vsub.s32 %v1178, %v1180
        %v1182 = vrot.slane %v1174, %v1181
        %v1184 = vunpack.c.l.s4 1983009808
        %v1185 = vunpack.c.0.s8 %v1184
        %v1186 = vlaneseq
        %v1187 = vshrl.u32 %v1186, 7
        %v1188 = vsub.s32 %v1185, %v1187
        %v1189 = vrot.slane %v1175, %v1188
        %v1190 = vcombine.low %v1166, %v1182
        %v1191 = vcombine.high %v1166, %v1182
        %v1193 = vunpack.c.l.s4 1934713408
        %v1194 = vunpack.c.0.s8 %v1193
        %v1195 = vlaneseq
        %v1196 = vshrl.u32 %v1195, 7
        %v1197 = vsub.s32 %v1194, %v1196
        %v1198 = vrot.slane %v1190, %v1197
        %v1200 = vunpack.c.l.s4 1934713408
        %v1201 = vunpack.c.0.s8 %v1200
        %v1202 = vlaneseq
        %v1203 = vshrl.u32 %v1202, 7
        %v1204 = vsub.s32 %v1201, %v1203
        %v1205 = vrot.slane %v1191, %v1204
        %v1206 = vcombine.low %v1173, %v1189
        %v1207 = vcombine.high %v1173, %v1189
        %v1209 = vunpack.c.l.s4 1934713408
        %v1210 = vunpack.c.0.s8 %v1209
        %v1211 = vlaneseq
        %v1212 = vshrl.u32 %v1211, 7
        %v1213 = vsub.s32 %v1210, %v1212
        %v1214 = vrot.slane %v1206, %v1213
        %v1216 = vunpack.c.l.s4 1934713408
        %v1217 = vunpack.c.0.s8 %v1216
        %v1218 = vlaneseq
        %v1219 = vshrl.u32 %v1218, 7
        %v1220 = vsub.s32 %v1217, %v1219
        %v1221 = vrot.slane %v1207, %v1220
        %v1222 = vcombine.high %v1198, 0.0
        %v1223 = vcombine.high %v1205, 0.0
        %v1224 = vcombine.high %v1214, 0.0
        %v1225 = vcombine.high %v1221, 0.0
        %v1226 = vcombine.low %v946, %v948
        %v1227 = vcombine.high %v946, %v948
        %v1229 = vunpack.c.l.s4 1983009808
        %v1230 = vunpack.c.0.s8 %v1229
        %v1231 = vlaneseq
        %v1232 = vshrl.u32 %v1231, 7
        %v1233 = vsub.s32 %v1230, %v1232
        %v1234 = vrot.slane %v1226, %v1233
        %v1236 = vunpack.c.l.s4 1983009808
        %v1237 = vunpack.c.0.s8 %v1236
        %v1238 = vlaneseq
        %v1239 = vshrl.u32 %v1238, 7
        %v1240 = vsub.s32 %v1237, %v1239
        %v1241 = vrot.slane %v1227, %v1240
        %v1242 = vcombine.low %v947, %v949
        %v1243 = vcombine.high %v947, %v949
        %v1245 = vunpack.c.l.s4 1983009808
        %v1246 = vunpack.c.0.s8 %v1245
        %v1247 = vlaneseq
        %v1248 = vshrl.u32 %v1247, 7
        %v1249 = vsub.s32 %v1246, %v1248
        %v1250 = vrot.slane %v1242, %v1249
        %v1252 = vunpack.c.l.s4 1983009808
        %v1253 = vunpack.c.0.s8 %v1252
        %v1254 = vlaneseq
        %v1255 = vshrl.u32 %v1254, 7
        %v1256 = vsub.s32 %v1253, %v1255
        %v1257 = vrot.slane %v1243, %v1256
        %v1258 = vcombine.low %v950, %v952
        %v1259 = vcombine.high %v950, %v952
        %v1261 = vunpack.c.l.s4 1983009808
        %v1262 = vunpack.c.0.s8 %v1261
        %v1263 = vlaneseq
        %v1264 = vshrl.u32 %v1263, 7
        %v1265 = vsub.s32 %v1262, %v1264
        %v1266 = vrot.slane %v1258, %v1265
        %v1268 = vunpack.c.l.s4 1983009808
        %v1269 = vunpack.c.0.s8 %v1268
        %v1270 = vlaneseq
        %v1271 = vshrl.u32 %v1270, 7
        %v1272 = vsub.s32 %v1269, %v1271
        %v1273 = vrot.slane %v1259, %v1272
        %v1274 = vcombine.low %v951, %v953
        %v1275 = vcombine.high %v951, %v953
        %v1277 = vunpack.c.l.s4 1983009808
        %v1278 = vunpack.c.0.s8 %v1277
        %v1279 = vlaneseq
        %v1280 = vshrl.u32 %v1279, 7
        %v1281 = vsub.s32 %v1278, %v1280
        %v1282 = vrot.slane %v1274, %v1281
        %v1284 = vunpack.c.l.s4 1983009808
        %v1285 = vunpack.c.0.s8 %v1284
        %v1286 = vlaneseq
        %v1287 = vshrl.u32 %v1286, 7
        %v1288 = vsub.s32 %v1285, %v1287
        %v1289 = vrot.slane %v1275, %v1288
        %v1290 = vcombine.low %v1234, %v1250
        %v1291 = vcombine.high %v1234, %v1250
        %v1293 = vunpack.c.l.s4 1934713408
        %v1294 = vunpack.c.0.s8 %v1293
        %v1295 = vlaneseq
        %v1296 = vshrl.u32 %v1295, 7
        %v1297 = vsub.s32 %v1294, %v1296
        %v1298 = vrot.slane %v1290, %v1297
        %v1300 = vunpack.c.l.s4 1934713408
        %v1301 = vunpack.c.0.s8 %v1300
        %v1302 = vlaneseq
        %v1303 = vshrl.u32 %v1302, 7
        %v1304 = vsub.s32 %v1301, %v1303
        %v1305 = vrot.slane %v1291, %v1304
        %v1306 = vcombine.low %v1241, %v1257
        %v1307 = vcombine.high %v1241, %v1257
        %v1309 = vunpack.c.l.s4 1934713408
        %v1310 = vunpack.c.0.s8 %v1309
        %v1311 = vlaneseq
        %v1312 = vshrl.u32 %v1311, 7
        %v1313 = vsub.s32 %v1310, %v1312
        %v1314 = vrot.slane %v1306, %v1313
        %v1316 = vunpack.c.l.s4 1934713408
        %v1317 = vunpack.c.0.s8 %v1316
        %v1318 = vlaneseq
        %v1319 = vshrl.u32 %v1318, 7
        %v1320 = vsub.s32 %v1317, %v1319
        %v1321 = vrot.slane %v1307, %v1320
        %v1322 = vcombine.low %v1266, %v1282
        %v1323 = vcombine.high %v1266, %v1282
        %v1325 = vunpack.c.l.s4 1934713408
        %v1326 = vunpack.c.0.s8 %v1325
        %v1327 = vlaneseq
        %v1328 = vshrl.u32 %v1327, 7
        %v1329 = vsub.s32 %v1326, %v1328
        %v1330 = vrot.slane %v1322, %v1329
        %v1332 = vunpack.c.l.s4 1934713408
        %v1333 = vunpack.c.0.s8 %v1332
        %v1334 = vlaneseq
        %v1335 = vshrl.u32 %v1334, 7
        %v1336 = vsub.s32 %v1333, %v1335
        %v1337 = vrot.slane %v1323, %v1336
        %v1338 = vcombine.low %v1273, %v1289
        %v1339 = vcombine.high %v1273, %v1289
        %v1341 = vunpack.c.l.s4 1934713408
        %v1342 = vunpack.c.0.s8 %v1341
        %v1343 = vlaneseq
        %v1344 = vshrl.u32 %v1343, 7
        %v1345 = vsub.s32 %v1342, %v1344
        %v1346 = vrot.slane %v1338, %v1345
        %v1348 = vunpack.c.l.s4 1934713408
        %v1349 = vunpack.c.0.s8 %v1348
        %v1350 = vlaneseq
        %v1351 = vshrl.u32 %v1350, 7
        %v1352 = vsub.s32 %v1349, %v1351
        %v1353 = vrot.slane %v1339, %v1352
        %v1354 = vcombine.low %v1298, %v1330
        %v1355 = vcombine.high %v1298, %v1330
        %v1356 = vcombine.low %v1305, %v1337
        %v1357 = vcombine.high %v1305, %v1337
        %v1358 = vcombine.low %v1314, %v1346
        %v1359 = vcombine.high %v1314, %v1346
        %v1360 = vcombine.low %v1321, %v1353
        %v1361 = vcombine.high %v1321, %v1353
        %v1362 = vcombine.low %v994, %v1001
        %v1364 = vunpack.c.l.s4 1983009808
        %v1365 = vunpack.c.0.s8 %v1364
        %v1366 = vlaneseq
        %v1367 = vshrl.u32 %v1366, 7
        %v1368 = vsub.s32 %v1365, %v1367
        %v1369 = vrot.slane %v1362, %v1368
        %v1370 = vcombine.low %v1018, %v1019
        %v1372 = vunpack.c.l.s4 1983009808
        %v1373 = vunpack.c.0.s8 %v1372
        %v1374 = vlaneseq
        %v1375 = vshrl.u32 %v1374, 7
        %v1376 = vsub.s32 %v1373, %v1375
        %v1377 = vrot.slane %v1370, %v1376
        %v1378 = vcombine.low %v1010, %v1017
        %v1380 = vunpack.c.l.s4 1983009808
        %v1381 = vunpack.c.0.s8 %v1380
        %v1382 = vlaneseq
        %v1383 = vshrl.u32 %v1382, 7
        %v1384 = vsub.s32 %v1381, %v1383
        %v1385 = vrot.slane %v1378, %v1384
        %v1386 = vcombine.low %v1020, %v1021
        %v1388 = vunpack.c.l.s4 1983009808
        %v1389 = vunpack.c.0.s8 %v1388
        %v1390 = vlaneseq
        %v1391 = vshrl.u32 %v1390, 7
        %v1392 = vsub.s32 %v1389, %v1391
        %v1393 = vrot.slane %v1386, %v1392
        %v1394 = vcombine.low %v1369, %v1377
        %v1395 = vcombine.high %v1369, %v1377
        %v1397 = vunpack.c.l.s4 1934713408
        %v1398 = vunpack.c.0.s8 %v1397
        %v1399 = vlaneseq
        %v1400 = vshrl.u32 %v1399, 7
        %v1401 = vsub.s32 %v1398, %v1400
        %v1402 = vrot.slane %v1394, %v1401
        %v1404 = vunpack.c.l.s4 1934713408
        %v1405 = vunpack.c.0.s8 %v1404
        %v1406 = vlaneseq
        %v1407 = vshrl.u32 %v1406, 7
        %v1408 = vsub.s32 %v1405, %v1407
        %v1409 = vrot.slane %v1395, %v1408
        %v1410 = vcombine.low %v1385, %v1393
        %v1411 = vcombine.high %v1385, %v1393
        %v1413 = vunpack.c.l.s4 1934713408
        %v1414 = vunpack.c.0.s8 %v1413
        %v1415 = vlaneseq
        %v1416 = vshrl.u32 %v1415, 7
        %v1417 = vsub.s32 %v1414, %v1416
        %v1418 = vrot.slane %v1410, %v1417
        %v1420 = vunpack.c.l.s4 1934713408
        %v1421 = vunpack.c.0.s8 %v1420
        %v1422 = vlaneseq
        %v1423 = vshrl.u32 %v1422, 7
        %v1424 = vsub.s32 %v1421, %v1423
        %v1425 = vrot.slane %v1411, %v1424
        %v1426 = vcombine.low %v1402, %v1418
        %v1427 = vcombine.high %v1402, %v1418
        %v1428 = vcombine.low %v1409, %v1425
        %v1429 = vcombine.high %v1409, %v1425
        %v1430 = vcombine.low %v1150, %v1152
        %v1431 = vcombine.high %v1150, %v1152
        %v1433 = vunpack.c.l.s4 1983009808
        %v1434 = vunpack.c.0.s8 %v1433
        %v1435 = vlaneseq
        %v1436 = vshrl.u32 %v1435, 7
        %v1437 = vsub.s32 %v1434, %v1436
        %v1438 = vrot.slane %v1430, %v1437
        %v1440 = vunpack.c.l.s4 1983009808
        %v1441 = vunpack.c.0.s8 %v1440
        %v1442 = vlaneseq
        %v1443 = vshrl.u32 %v1442, 7
        %v1444 = vsub.s32 %v1441, %v1443
        %v1445 = vrot.slane %v1431, %v1444
        %v1446 = vcombine.low %v1151, %v1153
        %v1447 = vcombine.high %v1151, %v1153
        %v1449 = vunpack.c.l.s4 1983009808
        %v1450 = vunpack.c.0.s8 %v1449
        %v1451 = vlaneseq
        %v1452 = vshrl.u32 %v1451, 7
        %v1453 = vsub.s32 %v1450, %v1452
        %v1454 = vrot.slane %v1446, %v1453
        %v1456 = vunpack.c.l.s4 1983009808
        %v1457 = vunpack.c.0.s8 %v1456
        %v1458 = vlaneseq
        %v1459 = vshrl.u32 %v1458, 7
        %v1460 = vsub.s32 %v1457, %v1459
        %v1461 = vrot.slane %v1447, %v1460
        %v1462 = vcombine.low %v1154, %v1156
        %v1463 = vcombine.high %v1154, %v1156
        %v1465 = vunpack.c.l.s4 1983009808
        %v1466 = vunpack.c.0.s8 %v1465
        %v1467 = vlaneseq
        %v1468 = vshrl.u32 %v1467, 7
        %v1469 = vsub.s32 %v1466, %v1468
        %v1470 = vrot.slane %v1462, %v1469
        %v1472 = vunpack.c.l.s4 1983009808
        %v1473 = vunpack.c.0.s8 %v1472
        %v1474 = vlaneseq
        %v1475 = vshrl.u32 %v1474, 7
        %v1476 = vsub.s32 %v1473, %v1475
        %v1477 = vrot.slane %v1463, %v1476
        %v1478 = vcombine.low %v1155, %v1157
        %v1479 = vcombine.high %v1155, %v1157
        %v1481 = vunpack.c.l.s4 1983009808
        %v1482 = vunpack.c.0.s8 %v1481
        %v1483 = vlaneseq
        %v1484 = vshrl.u32 %v1483, 7
        %v1485 = vsub.s32 %v1482, %v1484
        %v1486 = vrot.slane %v1478, %v1485
        %v1488 = vunpack.c.l.s4 1983009808
        %v1489 = vunpack.c.0.s8 %v1488
        %v1490 = vlaneseq
        %v1491 = vshrl.u32 %v1490, 7
        %v1492 = vsub.s32 %v1489, %v1491
        %v1493 = vrot.slane %v1479, %v1492
        %v1494 = vcombine.low %v1438, %v1454
        %v1495 = vcombine.high %v1438, %v1454
        %v1497 = vunpack.c.l.s4 1934713408
        %v1498 = vunpack.c.0.s8 %v1497
        %v1499 = vlaneseq
        %v1500 = vshrl.u32 %v1499, 7
        %v1501 = vsub.s32 %v1498, %v1500
        %v1502 = vrot.slane %v1494, %v1501
        %v1504 = vunpack.c.l.s4 1934713408
        %v1505 = vunpack.c.0.s8 %v1504
        %v1506 = vlaneseq
        %v1507 = vshrl.u32 %v1506, 7
        %v1508 = vsub.s32 %v1505, %v1507
        %v1509 = vrot.slane %v1495, %v1508
        %v1510 = vcombine.low %v1445, %v1461
        %v1511 = vcombine.high %v1445, %v1461
        %v1513 = vunpack.c.l.s4 1934713408
        %v1514 = vunpack.c.0.s8 %v1513
        %v1515 = vlaneseq
        %v1516 = vshrl.u32 %v1515, 7
        %v1517 = vsub.s32 %v1514, %v1516
        %v1518 = vrot.slane %v1510, %v1517
        %v1520 = vunpack.c.l.s4 1934713408
        %v1521 = vunpack.c.0.s8 %v1520
        %v1522 = vlaneseq
        %v1523 = vshrl.u32 %v1522, 7
        %v1524 = vsub.s32 %v1521, %v1523
        %v1525 = vrot.slane %v1511, %v1524
        %v1526 = vcombine.low %v1470, %v1486
        %v1527 = vcombine.high %v1470, %v1486
        %v1529 = vunpack.c.l.s4 1934713408
        %v1530 = vunpack.c.0.s8 %v1529
        %v1531 = vlaneseq
        %v1532 = vshrl.u32 %v1531, 7
        %v1533 = vsub.s32 %v1530, %v1532
        %v1534 = vrot.slane %v1526, %v1533
        %v1536 = vunpack.c.l.s4 1934713408
        %v1537 = vunpack.c.0.s8 %v1536
        %v1538 = vlaneseq
        %v1539 = vshrl.u32 %v1538, 7
        %v1540 = vsub.s32 %v1537, %v1539
        %v1541 = vrot.slane %v1527, %v1540
        %v1542 = vcombine.low %v1477, %v1493
        %v1543 = vcombine.high %v1477, %v1493
        %v1545 = vunpack.c.l.s4 1934713408
        %v1546 = vunpack.c.0.s8 %v1545
        %v1547 = vlaneseq
        %v1548 = vshrl.u32 %v1547, 7
        %v1549 = vsub.s32 %v1546, %v1548
        %v1550 = vrot.slane %v1542, %v1549
        %v1552 = vunpack.c.l.s4 1934713408
        %v1553 = vunpack.c.0.s8 %v1552
        %v1554 = vlaneseq
        %v1555 = vshrl.u32 %v1554, 7
        %v1556 = vsub.s32 %v1553, %v1555
        %v1557 = vrot.slane %v1543, %v1556
        %v1558 = vcombine.low %v1502, %v1534
        %v1559 = vcombine.high %v1502, %v1534
        %v1560 = vcombine.low %v1509, %v1541
        %v1561 = vcombine.high %v1509, %v1541
        %v1562 = vcombine.low %v1518, %v1550
        %v1563 = vcombine.high %v1518, %v1550
        %v1564 = vcombine.low %v1525, %v1557
        %v1565 = vcombine.high %v1525, %v1557
        %v1566 = vcombine.low %v1198, %v1205
        %v1568 = vunpack.c.l.s4 1983009808
        %v1569 = vunpack.c.0.s8 %v1568
        %v1570 = vlaneseq
        %v1571 = vshrl.u32 %v1570, 7
        %v1572 = vsub.s32 %v1569, %v1571
        %v1573 = vrot.slane %v1566, %v1572
        %v1574 = vcombine.low %v1222, %v1223
        %v1576 = vunpack.c.l.s4 1983009808
        %v1577 = vunpack.c.0.s8 %v1576
        %v1578 = vlaneseq
        %v1579 = vshrl.u32 %v1578, 7
        %v1580 = vsub.s32 %v1577, %v1579
        %v1581 = vrot.slane %v1574, %v1580
        %v1582 = vcombine.low %v1214, %v1221
        %v1584 = vunpack.c.l.s4 1983009808
        %v1585 = vunpack.c.0.s8 %v1584
        %v1586 = vlaneseq
        %v1587 = vshrl.u32 %v1586, 7
        %v1588 = vsub.s32 %v1585, %v1587
        %v1589 = vrot.slane %v1582, %v1588
        %v1590 = vcombine.low %v1224, %v1225
        %v1592 = vunpack.c.l.s4 1983009808
        %v1593 = vunpack.c.0.s8 %v1592
        %v1594 = vlaneseq
        %v1595 = vshrl.u32 %v1594, 7
        %v1596 = vsub.s32 %v1593, %v1595
        %v1597 = vrot.slane %v1590, %v1596
        %v1598 = vcombine.low %v1573, %v1581
        %v1599 = vcombine.high %v1573, %v1581
        %v1601 = vunpack.c.l.s4 1934713408
        %v1602 = vunpack.c.0.s8 %v1601
        %v1603 = vlaneseq
        %v1604 = vshrl.u32 %v1603, 7
        %v1605 = vsub.s32 %v1602, %v1604
        %v1606 = vrot.slane %v1598, %v1605
        %v1608 = vunpack.c.l.s4 1934713408
        %v1609 = vunpack.c.0.s8 %v1608
        %v1610 = vlaneseq
        %v1611 = vshrl.u32 %v1610, 7
        %v1612 = vsub.s32 %v1609, %v1611
        %v1613 = vrot.slane %v1599, %v1612
        %v1614 = vcombine.low %v1589, %v1597
        %v1615 = vcombine.high %v1589, %v1597
        %v1617 = vunpack.c.l.s4 1934713408
        %v1618 = vunpack.c.0.s8 %v1617
        %v1619 = vlaneseq
        %v1620 = vshrl.u32 %v1619, 7
        %v1621 = vsub.s32 %v1618, %v1620
        %v1622 = vrot.slane %v1614, %v1621
        %v1624 = vunpack.c.l.s4 1934713408
        %v1625 = vunpack.c.0.s8 %v1624
        %v1626 = vlaneseq
        %v1627 = vshrl.u32 %v1626, 7
        %v1628 = vsub.s32 %v1625, %v1627
        %v1629 = vrot.slane %v1615, %v1628
        %v1630 = vcombine.low %v1606, %v1622
        %v1631 = vcombine.high %v1606, %v1622
        %v1632 = vcombine.low %v1613, %v1629
        %v1633 = vcombine.high %v1613, %v1629
        %v1634 = vpack.c.bf16 %v1354, %v1354
        %v1635 = vpack.c.bf16 %v1355, %v1355
        %v1636 = vpack.c.bf16 %v1356, %v1356
        %v1637 = vpack.c.bf16 %v1357, %v1357
        %v1638 = vpack.c.bf16 %v1558, %v1558
        %v1639 = vpack.c.bf16 %v1559, %v1559
        %v1640 = vpack.c.bf16 %v1560, %v1560
        %v1641 = vpack.c.bf16 %v1561, %v1561
        %v1642 = vpack.c.bf16 %v1358, %v1358
        %v1643 = vpack.c.bf16 %v1359, %v1359
        %v1644 = vpack.c.bf16 %v1360, %v1360
        %v1645 = vpack.c.bf16 %v1361, %v1361
        %v1646 = vpack.c.bf16 %v1562, %v1562
        %v1647 = vpack.c.bf16 %v1563, %v1563
        %v1648 = vpack.c.bf16 %v1564, %v1564
        %v1649 = vpack.c.bf16 %v1565, %v1565
        %v1650 = vpack.c.bf16 %v1426, %v1426
        %v1651 = vpack.c.bf16 %v1427, %v1427
        %v1652 = vpack.c.bf16 %v1428, %v1428
        %v1653 = vpack.c.bf16 %v1429, %v1429
        %v1654 = vpack.c.bf16 %v1630, %v1630
        %v1655 = vpack.c.bf16 %v1631, %v1631
        %v1656 = vpack.c.bf16 %v1632, %v1632
        %v1657 = vpack.c.bf16 %v1633, %v1633
        %vm1658 = vcmask 64512
        %v1660 = vsel %vm1658, %v1634, 0
        %v1663 = vsel %vm1658, %v1642, 0
        %1665 = vmatprep.subr.bf16.mxu0 0
        %1666 = vmatpush1.bf16.xpose.msra.mxu0 %v1663
        %1667 = vmatprep.subr.bf16.mxu0 0
        %1668 = vmatpush1.bf16.xpose.msra.mxu0 0
        %1669 = vmatprep.subr.bf16.mxu0 0
        %1670 = vmatpush1.bf16.xpose.msra.mxu0 0
        %1671 = vmatprep.subr.bf16.mxu0 0
        %1672 = vmatpush1.bf16.xpose.msra.mxu0 0
        %1673 = vmatprep.subr.bf16.mxu0 0
        %1674 = vmatpush1.bf16.xpose.msra.mxu0 0
        %1675 = vmatprep.subr.bf16.mxu0 0
        %1676 = vmatpush1.bf16.xpose.msra.mxu0 0
        %1677 = vmatprep.subr.bf16.mxu0 0
        %1678 = vmatpush1.bf16.xpose.msra.mxu0 0
        %1679 = vmatprep.subr.bf16.mxu0 0
        %1680 = vmatpush1.bf16.xpose.msra.mxu0 0
        %1681 = vmatprep.subr.bf16.mxu0 0
        %1682 = vmatpush1.bf16.xpose.msra.mxu0 0
        %1683 = vmatprep.subr.bf16.mxu0 0
        %1684 = vmatpush1.bf16.xpose.msra.mxu0 0
        %1685 = vmatprep.subr.bf16.mxu0 0
        %1686 = vmatpush1.bf16.xpose.msra.mxu0 0
        %1687 = vmatprep.subr.bf16.mxu0 0
        %1688 = vmatpush1.bf16.xpose.msra.mxu0 0
        %1689 = vmatprep.subr.bf16.mxu0 0
        %1690 = vmatpush1.bf16.xpose.msra.mxu0 0
        %1691 = vmatprep.subr.bf16.mxu0 0
        %1692 = vmatpush1.bf16.xpose.msra.mxu0 0
        %1693 = vmatprep.subr.bf16.mxu0 0
        %1694 = vmatpush1.bf16.xpose.msra.mxu0 0
        %1695 = vmatprep.subr.bf16.mxu0 0
        %1696 = vmatpush1.bf16.xpose.msra.mxu0 0
        %1697 = vmatprep.mubr.bf16.mxu0 0
        %1698 = vmatmul.mubr.bf16.gmra.mrb[0].mxu0 %v1660
        %v1699 = vpop.f32.mrb[0].mxu0
        %v1700 = vadd.f32 0.0, %v1699
        %v1701 = vpop.f32.mrb[0].mxu0
        %v1702 = vpop.f32.mrb[0].mxu0
        %v1703 = vpop.f32.mrb[0].mxu0
        %1704 = vdwg.mxu0
        %v1706 = vsel %vm1658, %v1635, 0
        %v1709 = vsel %vm1658, %v1643, 0
        %1711 = vmatprep.subr.bf16.mxu0 0
        %1712 = vmatpush1.bf16.xpose.msra.mxu0 %v1709
        %1713 = vmatprep.subr.bf16.mxu0 0
        %1714 = vmatpush1.bf16.xpose.msra.mxu0 0
        %1715 = vmatprep.subr.bf16.mxu0 0
        %1716 = vmatpush1.bf16.xpose.msra.mxu0 0
        %1717 = vmatprep.subr.bf16.mxu0 0
        %1718 = vmatpush1.bf16.xpose.msra.mxu0 0
        %1719 = vmatprep.subr.bf16.mxu0 0
        %1720 = vmatpush1.bf16.xpose.msra.mxu0 0
        %1721 = vmatprep.subr.bf16.mxu0 0
        %1722 = vmatpush1.bf16.xpose.msra.mxu0 0
        %1723 = vmatprep.subr.bf16.mxu0 0
        %1724 = vmatpush1.bf16.xpose.msra.mxu0 0
        %1725 = vmatprep.subr.bf16.mxu0 0
        %1726 = vmatpush1.bf16.xpose.msra.mxu0 0
        %1727 = vmatprep.subr.bf16.mxu0 0
        %1728 = vmatpush1.bf16.xpose.msra.mxu0 0
        %1729 = vmatprep.subr.bf16.mxu0 0
        %1730 = vmatpush1.bf16.xpose.msra.mxu0 0
        %1731 = vmatprep.subr.bf16.mxu0 0
        %1732 = vmatpush1.bf16.xpose.msra.mxu0 0
        %1733 = vmatprep.subr.bf16.mxu0 0
        %1734 = vmatpush1.bf16.xpose.msra.mxu0 0
        %1735 = vmatprep.subr.bf16.mxu0 0
        %1736 = vmatpush1.bf16.xpose.msra.mxu0 0
        %1737 = vmatprep.subr.bf16.mxu0 0
        %1738 = vmatpush1.bf16.xpose.msra.mxu0 0
        %1739 = vmatprep.subr.bf16.mxu0 0
        %1740 = vmatpush1.bf16.xpose.msra.mxu0 0
        %1741 = vmatprep.subr.bf16.mxu0 0
        %1742 = vmatpush1.bf16.xpose.msra.mxu0 0
        %1743 = vmatprep.mubr.bf16.mxu0 0
        %1744 = vmatmul.mubr.bf16.gmra.mrb[0].mxu0 %v1706
        %v1745 = vpop.f32.mrb[0].mxu0
        %v1746 = vadd.f32 0.0, %v1745
        %v1747 = vpop.f32.mrb[0].mxu0
        %v1748 = vpop.f32.mrb[0].mxu0
        %v1749 = vpop.f32.mrb[0].mxu0
        %1750 = vdwg.mxu0
        %v1752 = vsel %vm1658, %v1636, 0
        %v1755 = vsel %vm1658, %v1644, 0
        %1757 = vmatprep.subr.bf16.mxu0 0
        %1758 = vmatpush1.bf16.xpose.msra.mxu0 %v1755
        %1759 = vmatprep.subr.bf16.mxu0 0
        %1760 = vmatpush1.bf16.xpose.msra.mxu0 0
        %1761 = vmatprep.subr.bf16.mxu0 0
        %1762 = vmatpush1.bf16.xpose.msra.mxu0 0
        %1763 = vmatprep.subr.bf16.mxu0 0
        %1764 = vmatpush1.bf16.xpose.msra.mxu0 0
        %1765 = vmatprep.subr.bf16.mxu0 0
        %1766 = vmatpush1.bf16.xpose.msra.mxu0 0
        %1767 = vmatprep.subr.bf16.mxu0 0
        %1768 = vmatpush1.bf16.xpose.msra.mxu0 0
        %1769 = vmatprep.subr.bf16.mxu0 0
        %1770 = vmatpush1.bf16.xpose.msra.mxu0 0
        %1771 = vmatprep.subr.bf16.mxu0 0
        %1772 = vmatpush1.bf16.xpose.msra.mxu0 0
        %1773 = vmatprep.subr.bf16.mxu0 0
        %1774 = vmatpush1.bf16.xpose.msra.mxu0 0
        %1775 = vmatprep.subr.bf16.mxu0 0
        %1776 = vmatpush1.bf16.xpose.msra.mxu0 0
        %1777 = vmatprep.subr.bf16.mxu0 0
        %1778 = vmatpush1.bf16.xpose.msra.mxu0 0
        %1779 = vmatprep.subr.bf16.mxu0 0
        %1780 = vmatpush1.bf16.xpose.msra.mxu0 0
        %1781 = vmatprep.subr.bf16.mxu0 0
        %1782 = vmatpush1.bf16.xpose.msra.mxu0 0
        %1783 = vmatprep.subr.bf16.mxu0 0
        %1784 = vmatpush1.bf16.xpose.msra.mxu0 0
        %1785 = vmatprep.subr.bf16.mxu0 0
        %1786 = vmatpush1.bf16.xpose.msra.mxu0 0
        %1787 = vmatprep.subr.bf16.mxu0 0
        %1788 = vmatpush1.bf16.xpose.msra.mxu0 0
        %1789 = vmatprep.mubr.bf16.mxu0 0
        %1790 = vmatmul.mubr.bf16.gmra.mrb[0].mxu0 %v1752
        %v1791 = vpop.f32.mrb[0].mxu0
        %v1792 = vadd.f32 0.0, %v1791
        %v1793 = vpop.f32.mrb[0].mxu0
        %v1794 = vpop.f32.mrb[0].mxu0
        %v1795 = vpop.f32.mrb[0].mxu0
        %1796 = vdwg.mxu0
        %v1798 = vsel %vm1658, %v1637, 0
        %v1801 = vsel %vm1658, %v1645, 0
        %1803 = vmatprep.subr.bf16.mxu0 0
        %1804 = vmatpush1.bf16.xpose.msra.mxu0 %v1801
        %1805 = vmatprep.subr.bf16.mxu0 0
        %1806 = vmatpush1.bf16.xpose.msra.mxu0 0
        %1807 = vmatprep.subr.bf16.mxu0 0
        %1808 = vmatpush1.bf16.xpose.msra.mxu0 0
        %1809 = vmatprep.subr.bf16.mxu0 0
        %1810 = vmatpush1.bf16.xpose.msra.mxu0 0
        %1811 = vmatprep.subr.bf16.mxu0 0
        %1812 = vmatpush1.bf16.xpose.msra.mxu0 0
        %1813 = vmatprep.subr.bf16.mxu0 0
        %1814 = vmatpush1.bf16.xpose.msra.mxu0 0
        %1815 = vmatprep.subr.bf16.mxu0 0
        %1816 = vmatpush1.bf16.xpose.msra.mxu0 0
        %1817 = vmatprep.subr.bf16.mxu0 0
        %1818 = vmatpush1.bf16.xpose.msra.mxu0 0
        %1819 = vmatprep.subr.bf16.mxu0 0
        %1820 = vmatpush1.bf16.xpose.msra.mxu0 0
        %1821 = vmatprep.subr.bf16.mxu0 0
        %1822 = vmatpush1.bf16.xpose.msra.mxu0 0
        %1823 = vmatprep.subr.bf16.mxu0 0
        %1824 = vmatpush1.bf16.xpose.msra.mxu0 0
        %1825 = vmatprep.subr.bf16.mxu0 0
        %1826 = vmatpush1.bf16.xpose.msra.mxu0 0
        %1827 = vmatprep.subr.bf16.mxu0 0
        %1828 = vmatpush1.bf16.xpose.msra.mxu0 0
        %1829 = vmatprep.subr.bf16.mxu0 0
        %1830 = vmatpush1.bf16.xpose.msra.mxu0 0
        %1831 = vmatprep.subr.bf16.mxu0 0
        %1832 = vmatpush1.bf16.xpose.msra.mxu0 0
        %1833 = vmatprep.subr.bf16.mxu0 0
        %1834 = vmatpush1.bf16.xpose.msra.mxu0 0
        %1835 = vmatprep.mubr.bf16.mxu0 0
        %1836 = vmatmul.mubr.bf16.gmra.mrb[0].mxu0 %v1798
        %v1837 = vpop.f32.mrb[0].mxu0
        %v1838 = vadd.f32 0.0, %v1837
        %v1839 = vpop.f32.mrb[0].mxu0
        %v1840 = vpop.f32.mrb[0].mxu0
        %v1841 = vpop.f32.mrb[0].mxu0
        %1842 = vdwg.mxu0
        %v1844 = vsel %vm1658, %v1638, 0
        %v1847 = vsel %vm1658, %v1646, 0
        %1849 = vmatprep.subr.bf16.mxu0 0
        %1850 = vmatpush1.bf16.xpose.msra.mxu0 %v1847
        %1851 = vmatprep.subr.bf16.mxu0 0
        %1852 = vmatpush1.bf16.xpose.msra.mxu0 0
        %1853 = vmatprep.subr.bf16.mxu0 0
        %1854 = vmatpush1.bf16.xpose.msra.mxu0 0
        %1855 = vmatprep.subr.bf16.mxu0 0
        %1856 = vmatpush1.bf16.xpose.msra.mxu0 0
        %1857 = vmatprep.subr.bf16.mxu0 0
        %1858 = vmatpush1.bf16.xpose.msra.mxu0 0
        %1859 = vmatprep.subr.bf16.mxu0 0
        %1860 = vmatpush1.bf16.xpose.msra.mxu0 0
        %1861 = vmatprep.subr.bf16.mxu0 0
        %1862 = vmatpush1.bf16.xpose.msra.mxu0 0
        %1863 = vmatprep.subr.bf16.mxu0 0
        %1864 = vmatpush1.bf16.xpose.msra.mxu0 0
        %1865 = vmatprep.subr.bf16.mxu0 0
        %1866 = vmatpush1.bf16.xpose.msra.mxu0 0
        %1867 = vmatprep.subr.bf16.mxu0 0
        %1868 = vmatpush1.bf16.xpose.msra.mxu0 0
        %1869 = vmatprep.subr.bf16.mxu0 0
        %1870 = vmatpush1.bf16.xpose.msra.mxu0 0
        %1871 = vmatprep.subr.bf16.mxu0 0
        %1872 = vmatpush1.bf16.xpose.msra.mxu0 0
        %1873 = vmatprep.subr.bf16.mxu0 0
        %1874 = vmatpush1.bf16.xpose.msra.mxu0 0
        %1875 = vmatprep.subr.bf16.mxu0 0
        %1876 = vmatpush1.bf16.xpose.msra.mxu0 0
        %1877 = vmatprep.subr.bf16.mxu0 0
        %1878 = vmatpush1.bf16.xpose.msra.mxu0 0
        %1879 = vmatprep.subr.bf16.mxu0 0
        %1880 = vmatpush1.bf16.xpose.msra.mxu0 0
        %1881 = vmatprep.mubr.bf16.mxu0 0
        %1882 = vmatmul.mubr.bf16.gmra.mrb[0].mxu0 %v1844
        %v1883 = vpop.f32.mrb[0].mxu0
        %v1884 = vadd.f32 0.0, %v1883
        %v1885 = vpop.f32.mrb[0].mxu0
        %v1886 = vpop.f32.mrb[0].mxu0
        %v1887 = vpop.f32.mrb[0].mxu0
        %1888 = vdwg.mxu0
        %v1890 = vsel %vm1658, %v1639, 0
        %v1893 = vsel %vm1658, %v1647, 0
        %1895 = vmatprep.subr.bf16.mxu0 0
        %1896 = vmatpush1.bf16.xpose.msra.mxu0 %v1893
        %1897 = vmatprep.subr.bf16.mxu0 0
        %1898 = vmatpush1.bf16.xpose.msra.mxu0 0
        %1899 = vmatprep.subr.bf16.mxu0 0
        %1900 = vmatpush1.bf16.xpose.msra.mxu0 0
        %1901 = vmatprep.subr.bf16.mxu0 0
        %1902 = vmatpush1.bf16.xpose.msra.mxu0 0
        %1903 = vmatprep.subr.bf16.mxu0 0
        %1904 = vmatpush1.bf16.xpose.msra.mxu0 0
        %1905 = vmatprep.subr.bf16.mxu0 0
        %1906 = vmatpush1.bf16.xpose.msra.mxu0 0
        %1907 = vmatprep.subr.bf16.mxu0 0
        %1908 = vmatpush1.bf16.xpose.msra.mxu0 0
        %1909 = vmatprep.subr.bf16.mxu0 0
        %1910 = vmatpush1.bf16.xpose.msra.mxu0 0
        %1911 = vmatprep.subr.bf16.mxu0 0
        %1912 = vmatpush1.bf16.xpose.msra.mxu0 0
        %1913 = vmatprep.subr.bf16.mxu0 0
        %1914 = vmatpush1.bf16.xpose.msra.mxu0 0
        %1915 = vmatprep.subr.bf16.mxu0 0
        %1916 = vmatpush1.bf16.xpose.msra.mxu0 0
        %1917 = vmatprep.subr.bf16.mxu0 0
        %1918 = vmatpush1.bf16.xpose.msra.mxu0 0
        %1919 = vmatprep.subr.bf16.mxu0 0
        %1920 = vmatpush1.bf16.xpose.msra.mxu0 0
        %1921 = vmatprep.subr.bf16.mxu0 0
        %1922 = vmatpush1.bf16.xpose.msra.mxu0 0
        %1923 = vmatprep.subr.bf16.mxu0 0
        %1924 = vmatpush1.bf16.xpose.msra.mxu0 0
        %1925 = vmatprep.subr.bf16.mxu0 0
        %1926 = vmatpush1.bf16.xpose.msra.mxu0 0
        %1927 = vmatprep.mubr.bf16.mxu0 0
        %1928 = vmatmul.mubr.bf16.gmra.mrb[0].mxu0 %v1890
        %v1929 = vpop.f32.mrb[0].mxu0
        %v1930 = vadd.f32 0.0, %v1929
        %v1931 = vpop.f32.mrb[0].mxu0
        %v1932 = vpop.f32.mrb[0].mxu0
        %v1933 = vpop.f32.mrb[0].mxu0
        %1934 = vdwg.mxu0
        %v1936 = vsel %vm1658, %v1640, 0
        %v1939 = vsel %vm1658, %v1648, 0
        %1941 = vmatprep.subr.bf16.mxu0 0
        %1942 = vmatpush1.bf16.xpose.msra.mxu0 %v1939
        %1943 = vmatprep.subr.bf16.mxu0 0
        %1944 = vmatpush1.bf16.xpose.msra.mxu0 0
        %1945 = vmatprep.subr.bf16.mxu0 0
        %1946 = vmatpush1.bf16.xpose.msra.mxu0 0
        %1947 = vmatprep.subr.bf16.mxu0 0
        %1948 = vmatpush1.bf16.xpose.msra.mxu0 0
        %1949 = vmatprep.subr.bf16.mxu0 0
        %1950 = vmatpush1.bf16.xpose.msra.mxu0 0
        %1951 = vmatprep.subr.bf16.mxu0 0
        %1952 = vmatpush1.bf16.xpose.msra.mxu0 0
        %1953 = vmatprep.subr.bf16.mxu0 0
        %1954 = vmatpush1.bf16.xpose.msra.mxu0 0
        %1955 = vmatprep.subr.bf16.mxu0 0
        %1956 = vmatpush1.bf16.xpose.msra.mxu0 0
        %1957 = vmatprep.subr.bf16.mxu0 0
        %1958 = vmatpush1.bf16.xpose.msra.mxu0 0
        %1959 = vmatprep.subr.bf16.mxu0 0
        %1960 = vmatpush1.bf16.xpose.msra.mxu0 0
        %1961 = vmatprep.subr.bf16.mxu0 0
        %1962 = vmatpush1.bf16.xpose.msra.mxu0 0
        %1963 = vmatprep.subr.bf16.mxu0 0
        %1964 = vmatpush1.bf16.xpose.msra.mxu0 0
        %1965 = vmatprep.subr.bf16.mxu0 0
        %1966 = vmatpush1.bf16.xpose.msra.mxu0 0
        %1967 = vmatprep.subr.bf16.mxu0 0
        %1968 = vmatpush1.bf16.xpose.msra.mxu0 0
        %1969 = vmatprep.subr.bf16.mxu0 0
        %1970 = vmatpush1.bf16.xpose.msra.mxu0 0
        %1971 = vmatprep.subr.bf16.mxu0 0
        %1972 = vmatpush1.bf16.xpose.msra.mxu0 0
        %1973 = vmatprep.mubr.bf16.mxu0 0
        %1974 = vmatmul.mubr.bf16.gmra.mrb[0].mxu0 %v1936
        %v1975 = vpop.f32.mrb[0].mxu0
        %v1976 = vadd.f32 0.0, %v1975
        %v1977 = vpop.f32.mrb[0].mxu0
        %v1978 = vpop.f32.mrb[0].mxu0
        %v1979 = vpop.f32.mrb[0].mxu0
        %1980 = vdwg.mxu0
        %v1982 = vsel %vm1658, %v1641, 0
        %v1985 = vsel %vm1658, %v1649, 0
        %1987 = vmatprep.subr.bf16.mxu0 0
        %1988 = vmatpush1.bf16.xpose.msra.mxu0 %v1985
        %1989 = vmatprep.subr.bf16.mxu0 0
        %1990 = vmatpush1.bf16.xpose.msra.mxu0 0
        %1991 = vmatprep.subr.bf16.mxu0 0
        %1992 = vmatpush1.bf16.xpose.msra.mxu0 0
        %1993 = vmatprep.subr.bf16.mxu0 0
        %1994 = vmatpush1.bf16.xpose.msra.mxu0 0
        %1995 = vmatprep.subr.bf16.mxu0 0
        %1996 = vmatpush1.bf16.xpose.msra.mxu0 0
        %1997 = vmatprep.subr.bf16.mxu0 0
        %1998 = vmatpush1.bf16.xpose.msra.mxu0 0
        %1999 = vmatprep.subr.bf16.mxu0 0
        %2000 = vmatpush1.bf16.xpose.msra.mxu0 0
        %2001 = vmatprep.subr.bf16.mxu0 0
        %2002 = vmatpush1.bf16.xpose.msra.mxu0 0
        %2003 = vmatprep.subr.bf16.mxu0 0
        %2004 = vmatpush1.bf16.xpose.msra.mxu0 0
        %2005 = vmatprep.subr.bf16.mxu0 0
        %2006 = vmatpush1.bf16.xpose.msra.mxu0 0
        %2007 = vmatprep.subr.bf16.mxu0 0
        %2008 = vmatpush1.bf16.xpose.msra.mxu0 0
        %2009 = vmatprep.subr.bf16.mxu0 0
        %2010 = vmatpush1.bf16.xpose.msra.mxu0 0
        %2011 = vmatprep.subr.bf16.mxu0 0
        %2012 = vmatpush1.bf16.xpose.msra.mxu0 0
        %2013 = vmatprep.subr.bf16.mxu0 0
        %2014 = vmatpush1.bf16.xpose.msra.mxu0 0
        %2015 = vmatprep.subr.bf16.mxu0 0
        %2016 = vmatpush1.bf16.xpose.msra.mxu0 0
        %2017 = vmatprep.subr.bf16.mxu0 0
        %2018 = vmatpush1.bf16.xpose.msra.mxu0 0
        %2019 = vmatprep.mubr.bf16.mxu0 0
        %2020 = vmatmul.mubr.bf16.gmra.mrb[0].mxu0 %v1982
        %v2021 = vpop.f32.mrb[0].mxu0
        %v2022 = vadd.f32 0.0, %v2021
        %v2023 = vpop.f32.mrb[0].mxu0
        %v2024 = vpop.f32.mrb[0].mxu0
        %v2025 = vpop.f32.mrb[0].mxu0
        %2026 = vdwg.mxu0
        %v2027 = vmul.f32 %v1700, 0.35355338
        %v2028 = vmul.f32 %v1746, 0.35355338
        %v2029 = vmul.f32 %v1792, 0.35355338
        %v2030 = vmul.f32 %v1838, 0.35355338
        %v2031 = vmul.f32 %v1884, 0.35355338
        %v2032 = vmul.f32 %v1930, 0.35355338
        %v2033 = vmul.f32 %v1976, 0.35355338
        %v2034 = vmul.f32 %v2022, 0.35355338
        %v2035 = vadd.f32 %v2027, %v679
        %v2036 = vadd.f32 %v2028, %v679
        %v2037 = vadd.f32 %v2029, %v679
        %v2038 = vadd.f32 %v2030, %v679
        %v2039 = vadd.f32 %v2031, %v680
        %v2040 = vadd.f32 %v2032, %v680
        %v2041 = vadd.f32 %v2033, %v680
        %v2042 = vadd.f32 %v2034, %v680
        %v2043 = vsel %vm1658, %v2035, -inf
        %2044 = vmax.xlane.f32.xlu0 %v2043
        %v2045 = vpop.xlane.xlu0 %2044
        %v2046 = vsel %vm1658, %v2036, -inf
        %2047 = vmax.xlane.f32.xlu0 %v2046
        %v2048 = vpop.xlane.xlu0 %2047
        %v2049 = vsel %vm1658, %v2037, -inf
        %2050 = vmax.xlane.f32.xlu0 %v2049
        %v2051 = vpop.xlane.xlu0 %2050
        %v2052 = vsel %vm1658, %v2038, -inf
        %2053 = vmax.xlane.f32.xlu0 %v2052
        %v2054 = vpop.xlane.xlu0 %2053
        %v2055 = vsel %vm1658, %v2039, -inf
        %2056 = vmax.xlane.f32.xlu0 %v2055
        %v2057 = vpop.xlane.xlu0 %2056
        %v2058 = vsel %vm1658, %v2040, -inf
        %2059 = vmax.xlane.f32.xlu0 %v2058
        %v2060 = vpop.xlane.xlu0 %2059
        %v2061 = vsel %vm1658, %v2041, -inf
        %2062 = vmax.xlane.f32.xlu0 %v2061
        %v2063 = vpop.xlane.xlu0 %2062
        %v2064 = vsel %vm1658, %v2042, -inf
        %2065 = vmax.xlane.f32.xlu0 %v2064
        %v2066 = vpop.xlane.xlu0 %2065
        %v2067 = vsub.f32 %v2035, %v2045
        %v2068 = vsub.f32 %v2036, %v2048
        %v2069 = vsub.f32 %v2037, %v2051
        %v2070 = vsub.f32 %v2038, %v2054
        %v2071 = vsub.f32 %v2039, %v2057
        %v2072 = vsub.f32 %v2040, %v2060
        %v2073 = vsub.f32 %v2041, %v2063
        %v2074 = vsub.f32 %v2042, %v2066
        %v2075 = vmul.f32 %v2067, 1.442695
        %v2076 = vpow.pop %v2075
        %v2077 = vmul.f32 %v2068, 1.442695
        %v2078 = vpow.pop %v2077
        %v2079 = vmul.f32 %v2069, 1.442695
        %v2080 = vpow.pop %v2079
        %v2081 = vmul.f32 %v2070, 1.442695
        %v2082 = vpow.pop %v2081
        %v2083 = vmul.f32 %v2071, 1.442695
        %v2084 = vpow.pop %v2083
        %v2085 = vmul.f32 %v2072, 1.442695
        %v2086 = vpow.pop %v2085
        %v2087 = vmul.f32 %v2073, 1.442695
        %v2088 = vpow.pop %v2087
        %v2089 = vmul.f32 %v2074, 1.442695
        %v2090 = vpow.pop %v2089
        %v2091 = vsel %vm1658, %v2076, 0.0
        %2092 = vadd.xlane.f32.xlu0 %v2091
        %v2093 = vpop.xlane.xlu0 %2092
        %v2094 = vsel %vm1658, %v2078, 0.0
        %2095 = vadd.xlane.f32.xlu0 %v2094
        %v2096 = vpop.xlane.xlu0 %2095
        %v2097 = vsel %vm1658, %v2080, 0.0
        %2098 = vadd.xlane.f32.xlu0 %v2097
        %v2099 = vpop.xlane.xlu0 %2098
        %v2100 = vsel %vm1658, %v2082, 0.0
        %2101 = vadd.xlane.f32.xlu0 %v2100
        %v2102 = vpop.xlane.xlu0 %2101
        %v2103 = vsel %vm1658, %v2084, 0.0
        %2104 = vadd.xlane.f32.xlu0 %v2103
        %v2105 = vpop.xlane.xlu0 %2104
        %v2106 = vsel %vm1658, %v2086, 0.0
        %2107 = vadd.xlane.f32.xlu0 %v2106
        %v2108 = vpop.xlane.xlu0 %2107
        %v2109 = vsel %vm1658, %v2088, 0.0
        %2110 = vadd.xlane.f32.xlu0 %v2109
        %v2111 = vpop.xlane.xlu0 %2110
        %v2112 = vsel %vm1658, %v2090, 0.0
        %2113 = vadd.xlane.f32.xlu0 %v2112
        %v2114 = vpop.xlane.xlu0 %2113
        %v2115 = vpack.c.bf16 %v2076, %v2076
        %v2116 = vpack.c.bf16 %v2078, %v2078
        %v2117 = vpack.c.bf16 %v2080, %v2080
        %v2118 = vpack.c.bf16 %v2082, %v2082
        %v2119 = vpack.c.bf16 %v2084, %v2084
        %v2120 = vpack.c.bf16 %v2086, %v2086
        %v2121 = vpack.c.bf16 %v2088, %v2088
        %v2122 = vpack.c.bf16 %v2090, %v2090
        %v2124 = vsel %vm1658, %v2115, 0
        %vm2126 = vcmask 1043456
        %v2128 = vsel %vm2126, %v1650, 0
        %2130 = vmatprep.subr.bf16.mxu0 0
        %2131 = vmatpush1.bf16.msra.mxu0 %v2128
        %2132 = vmatprep.subr.bf16.mxu0 0
        %2133 = vmatpush1.bf16.msra.mxu0 0
        %2134 = vmatprep.subr.bf16.mxu0 0
        %2135 = vmatpush1.bf16.msra.mxu0 0
        %2136 = vmatprep.subr.bf16.mxu0 0
        %2137 = vmatpush1.bf16.msra.mxu0 0
        %2138 = vmatprep.subr.bf16.mxu0 0
        %2139 = vmatpush1.bf16.msra.mxu0 0
        %2140 = vmatprep.subr.bf16.mxu0 0
        %2141 = vmatpush1.bf16.msra.mxu0 0
        %2142 = vmatprep.subr.bf16.mxu0 0
        %2143 = vmatpush1.bf16.msra.mxu0 0
        %2144 = vmatprep.subr.bf16.mxu0 0
        %2145 = vmatpush1.bf16.msra.mxu0 0
        %2146 = vmatprep.subr.bf16.mxu0 0
        %2147 = vmatpush1.bf16.msra.mxu0 0
        %2148 = vmatprep.subr.bf16.mxu0 0
        %2149 = vmatpush1.bf16.msra.mxu0 0
        %2150 = vmatprep.subr.bf16.mxu0 0
        %2151 = vmatpush1.bf16.msra.mxu0 0
        %2152 = vmatprep.subr.bf16.mxu0 0
        %2153 = vmatpush1.bf16.msra.mxu0 0
        %2154 = vmatprep.subr.bf16.mxu0 0
        %2155 = vmatpush1.bf16.msra.mxu0 0
        %2156 = vmatprep.subr.bf16.mxu0 0
        %2157 = vmatpush1.bf16.msra.mxu0 0
        %2158 = vmatprep.subr.bf16.mxu0 0
        %2159 = vmatpush1.bf16.msra.mxu0 0
        %2160 = vmatprep.subr.bf16.mxu0 0
        %2161 = vmatpush1.bf16.msra.mxu0 0
        %2162 = vmatprep.mubr.bf16.mxu0 0
        %2163 = vmatmul.mubr.bf16.gmra.mrb[0].mxu0 %v2124
        %v2164 = vpop.f32.mrb[0].mxu0
        %v2165 = vadd.f32 0.0, %v2164
        %v2166 = vpop.f32.mrb[0].mxu0
        %v2167 = vpop.f32.mrb[0].mxu0
        %v2168 = vpop.f32.mrb[0].mxu0
        %2169 = vdwg.mxu0
        %v2171 = vsel %vm1658, %v2116, 0
        %v2174 = vsel %vm2126, %v1651, 0
        %2176 = vmatprep.subr.bf16.mxu0 0
        %2177 = vmatpush1.bf16.msra.mxu0 %v2174
        %2178 = vmatprep.subr.bf16.mxu0 0
        %2179 = vmatpush1.bf16.msra.mxu0 0
        %2180 = vmatprep.subr.bf16.mxu0 0
        %2181 = vmatpush1.bf16.msra.mxu0 0
        %2182 = vmatprep.subr.bf16.mxu0 0
        %2183 = vmatpush1.bf16.msra.mxu0 0
        %2184 = vmatprep.subr.bf16.mxu0 0
        %2185 = vmatpush1.bf16.msra.mxu0 0
        %2186 = vmatprep.subr.bf16.mxu0 0
        %2187 = vmatpush1.bf16.msra.mxu0 0
        %2188 = vmatprep.subr.bf16.mxu0 0
        %2189 = vmatpush1.bf16.msra.mxu0 0
        %2190 = vmatprep.subr.bf16.mxu0 0
        %2191 = vmatpush1.bf16.msra.mxu0 0
        %2192 = vmatprep.subr.bf16.mxu0 0
        %2193 = vmatpush1.bf16.msra.mxu0 0
        %2194 = vmatprep.subr.bf16.mxu0 0
        %2195 = vmatpush1.bf16.msra.mxu0 0
        %2196 = vmatprep.subr.bf16.mxu0 0
        %2197 = vmatpush1.bf16.msra.mxu0 0
        %2198 = vmatprep.subr.bf16.mxu0 0
        %2199 = vmatpush1.bf16.msra.mxu0 0
        %2200 = vmatprep.subr.bf16.mxu0 0
        %2201 = vmatpush1.bf16.msra.mxu0 0
        %2202 = vmatprep.subr.bf16.mxu0 0
        %2203 = vmatpush1.bf16.msra.mxu0 0
        %2204 = vmatprep.subr.bf16.mxu0 0
        %2205 = vmatpush1.bf16.msra.mxu0 0
        %2206 = vmatprep.subr.bf16.mxu0 0
        %2207 = vmatpush1.bf16.msra.mxu0 0
        %2208 = vmatprep.mubr.bf16.mxu0 0
        %2209 = vmatmul.mubr.bf16.gmra.mrb[0].mxu0 %v2171
        %v2210 = vpop.f32.mrb[0].mxu0
        %v2211 = vadd.f32 0.0, %v2210
        %v2212 = vpop.f32.mrb[0].mxu0
        %v2213 = vpop.f32.mrb[0].mxu0
        %v2214 = vpop.f32.mrb[0].mxu0
        %2215 = vdwg.mxu0
        %v2217 = vsel %vm1658, %v2117, 0
        %v2220 = vsel %vm2126, %v1652, 0
        %2222 = vmatprep.subr.bf16.mxu0 0
        %2223 = vmatpush1.bf16.msra.mxu0 %v2220
        %2224 = vmatprep.subr.bf16.mxu0 0
        %2225 = vmatpush1.bf16.msra.mxu0 0
        %2226 = vmatprep.subr.bf16.mxu0 0
        %2227 = vmatpush1.bf16.msra.mxu0 0
        %2228 = vmatprep.subr.bf16.mxu0 0
        %2229 = vmatpush1.bf16.msra.mxu0 0
        %2230 = vmatprep.subr.bf16.mxu0 0
        %2231 = vmatpush1.bf16.msra.mxu0 0
        %2232 = vmatprep.subr.bf16.mxu0 0
        %2233 = vmatpush1.bf16.msra.mxu0 0
        %2234 = vmatprep.subr.bf16.mxu0 0
        %2235 = vmatpush1.bf16.msra.mxu0 0
        %2236 = vmatprep.subr.bf16.mxu0 0
        %2237 = vmatpush1.bf16.msra.mxu0 0
        %2238 = vmatprep.subr.bf16.mxu0 0
        %2239 = vmatpush1.bf16.msra.mxu0 0
        %2240 = vmatprep.subr.bf16.mxu0 0
        %2241 = vmatpush1.bf16.msra.mxu0 0
        %2242 = vmatprep.subr.bf16.mxu0 0
        %2243 = vmatpush1.bf16.msra.mxu0 0
        %2244 = vmatprep.subr.bf16.mxu0 0
        %2245 = vmatpush1.bf16.msra.mxu0 0
        %2246 = vmatprep.subr.bf16.mxu0 0
        %2247 = vmatpush1.bf16.msra.mxu0 0
        %2248 = vmatprep.subr.bf16.mxu0 0
        %2249 = vmatpush1.bf16.msra.mxu0 0
        %2250 = vmatprep.subr.bf16.mxu0 0
        %2251 = vmatpush1.bf16.msra.mxu0 0
        %2252 = vmatprep.subr.bf16.mxu0 0
        %2253 = vmatpush1.bf16.msra.mxu0 0
        %2254 = vmatprep.mubr.bf16.mxu0 0
        %2255 = vmatmul.mubr.bf16.gmra.mrb[0].mxu0 %v2217
        %v2256 = vpop.f32.mrb[0].mxu0
        %v2257 = vadd.f32 0.0, %v2256
        %v2258 = vpop.f32.mrb[0].mxu0
        %v2259 = vpop.f32.mrb[0].mxu0
        %v2260 = vpop.f32.mrb[0].mxu0
        %2261 = vdwg.mxu0
        %v2263 = vsel %vm1658, %v2118, 0
        %v2266 = vsel %vm2126, %v1653, 0
        %2268 = vmatprep.subr.bf16.mxu0 0
        %2269 = vmatpush1.bf16.msra.mxu0 %v2266
        %2270 = vmatprep.subr.bf16.mxu0 0
        %2271 = vmatpush1.bf16.msra.mxu0 0
        %2272 = vmatprep.subr.bf16.mxu0 0
        %2273 = vmatpush1.bf16.msra.mxu0 0
        %2274 = vmatprep.subr.bf16.mxu0 0
        %2275 = vmatpush1.bf16.msra.mxu0 0
        %2276 = vmatprep.subr.bf16.mxu0 0
        %2277 = vmatpush1.bf16.msra.mxu0 0
        %2278 = vmatprep.subr.bf16.mxu0 0
        %2279 = vmatpush1.bf16.msra.mxu0 0
        %2280 = vmatprep.subr.bf16.mxu0 0
        %2281 = vmatpush1.bf16.msra.mxu0 0
        %2282 = vmatprep.subr.bf16.mxu0 0
        %2283 = vmatpush1.bf16.msra.mxu0 0
        %2284 = vmatprep.subr.bf16.mxu0 0
        %2285 = vmatpush1.bf16.msra.mxu0 0
        %2286 = vmatprep.subr.bf16.mxu0 0
        %2287 = vmatpush1.bf16.msra.mxu0 0
        %2288 = vmatprep.subr.bf16.mxu0 0
        %2289 = vmatpush1.bf16.msra.mxu0 0
        %2290 = vmatprep.subr.bf16.mxu0 0
        %2291 = vmatpush1.bf16.msra.mxu0 0
        %2292 = vmatprep.subr.bf16.mxu0 0
        %2293 = vmatpush1.bf16.msra.mxu0 0
        %2294 = vmatprep.subr.bf16.mxu0 0
        %2295 = vmatpush1.bf16.msra.mxu0 0
        %2296 = vmatprep.subr.bf16.mxu0 0
        %2297 = vmatpush1.bf16.msra.mxu0 0
        %2298 = vmatprep.subr.bf16.mxu0 0
        %2299 = vmatpush1.bf16.msra.mxu0 0
        %2300 = vmatprep.mubr.bf16.mxu0 0
        %2301 = vmatmul.mubr.bf16.gmra.mrb[0].mxu0 %v2263
        %v2302 = vpop.f32.mrb[0].mxu0
        %v2303 = vadd.f32 0.0, %v2302
        %v2304 = vpop.f32.mrb[0].mxu0
        %v2305 = vpop.f32.mrb[0].mxu0
        %v2306 = vpop.f32.mrb[0].mxu0
        %2307 = vdwg.mxu0
        %v2309 = vsel %vm1658, %v2119, 0
        %v2312 = vsel %vm2126, %v1654, 0
        %2314 = vmatprep.subr.bf16.mxu0 0
        %2315 = vmatpush1.bf16.msra.mxu0 %v2312
        %2316 = vmatprep.subr.bf16.mxu0 0
        %2317 = vmatpush1.bf16.msra.mxu0 0
        %2318 = vmatprep.subr.bf16.mxu0 0
        %2319 = vmatpush1.bf16.msra.mxu0 0
        %2320 = vmatprep.subr.bf16.mxu0 0
        %2321 = vmatpush1.bf16.msra.mxu0 0
        %2322 = vmatprep.subr.bf16.mxu0 0
        %2323 = vmatpush1.bf16.msra.mxu0 0
        %2324 = vmatprep.subr.bf16.mxu0 0
        %2325 = vmatpush1.bf16.msra.mxu0 0
        %2326 = vmatprep.subr.bf16.mxu0 0
        %2327 = vmatpush1.bf16.msra.mxu0 0
        %2328 = vmatprep.subr.bf16.mxu0 0
        %2329 = vmatpush1.bf16.msra.mxu0 0
        %2330 = vmatprep.subr.bf16.mxu0 0
        %2331 = vmatpush1.bf16.msra.mxu0 0
        %2332 = vmatprep.subr.bf16.mxu0 0
        %2333 = vmatpush1.bf16.msra.mxu0 0
        %2334 = vmatprep.subr.bf16.mxu0 0
        %2335 = vmatpush1.bf16.msra.mxu0 0
        %2336 = vmatprep.subr.bf16.mxu0 0
        %2337 = vmatpush1.bf16.msra.mxu0 0
        %2338 = vmatprep.subr.bf16.mxu0 0
        %2339 = vmatpush1.bf16.msra.mxu0 0
        %2340 = vmatprep.subr.bf16.mxu0 0
        %2341 = vmatpush1.bf16.msra.mxu0 0
        %2342 = vmatprep.subr.bf16.mxu0 0
        %2343 = vmatpush1.bf16.msra.mxu0 0
        %2344 = vmatprep.subr.bf16.mxu0 0
        %2345 = vmatpush1.bf16.msra.mxu0 0
        %2346 = vmatprep.mubr.bf16.mxu0 0
        %2347 = vmatmul.mubr.bf16.gmra.mrb[0].mxu0 %v2309
        %v2348 = vpop.f32.mrb[0].mxu0
        %v2349 = vadd.f32 0.0, %v2348
        %v2350 = vpop.f32.mrb[0].mxu0
        %v2351 = vpop.f32.mrb[0].mxu0
        %v2352 = vpop.f32.mrb[0].mxu0
        %2353 = vdwg.mxu0
        %v2355 = vsel %vm1658, %v2120, 0
        %v2358 = vsel %vm2126, %v1655, 0
        %2360 = vmatprep.subr.bf16.mxu0 0
        %2361 = vmatpush1.bf16.msra.mxu0 %v2358
        %2362 = vmatprep.subr.bf16.mxu0 0
        %2363 = vmatpush1.bf16.msra.mxu0 0
        %2364 = vmatprep.subr.bf16.mxu0 0
        %2365 = vmatpush1.bf16.msra.mxu0 0
        %2366 = vmatprep.subr.bf16.mxu0 0
        %2367 = vmatpush1.bf16.msra.mxu0 0
        %2368 = vmatprep.subr.bf16.mxu0 0
        %2369 = vmatpush1.bf16.msra.mxu0 0
        %2370 = vmatprep.subr.bf16.mxu0 0
        %2371 = vmatpush1.bf16.msra.mxu0 0
        %2372 = vmatprep.subr.bf16.mxu0 0
        %2373 = vmatpush1.bf16.msra.mxu0 0
        %2374 = vmatprep.subr.bf16.mxu0 0
        %2375 = vmatpush1.bf16.msra.mxu0 0
        %2376 = vmatprep.subr.bf16.mxu0 0
        %2377 = vmatpush1.bf16.msra.mxu0 0
        %2378 = vmatprep.subr.bf16.mxu0 0
        %2379 = vmatpush1.bf16.msra.mxu0 0
        %2380 = vmatprep.subr.bf16.mxu0 0
        %2381 = vmatpush1.bf16.msra.mxu0 0
        %2382 = vmatprep.subr.bf16.mxu0 0
        %2383 = vmatpush1.bf16.msra.mxu0 0
        %2384 = vmatprep.subr.bf16.mxu0 0
        %2385 = vmatpush1.bf16.msra.mxu0 0
        %2386 = vmatprep.subr.bf16.mxu0 0
        %2387 = vmatpush1.bf16.msra.mxu0 0
        %2388 = vmatprep.subr.bf16.mxu0 0
        %2389 = vmatpush1.bf16.msra.mxu0 0
        %2390 = vmatprep.subr.bf16.mxu0 0
        %2391 = vmatpush1.bf16.msra.mxu0 0
        %2392 = vmatprep.mubr.bf16.mxu0 0
        %2393 = vmatmul.mubr.bf16.gmra.mrb[0].mxu0 %v2355
        %v2394 = vpop.f32.mrb[0].mxu0
        %v2395 = vadd.f32 0.0, %v2394
        %v2396 = vpop.f32.mrb[0].mxu0
        %v2397 = vpop.f32.mrb[0].mxu0
        %v2398 = vpop.f32.mrb[0].mxu0
        %2399 = vdwg.mxu0
        %v2401 = vsel %vm1658, %v2121, 0
        %v2404 = vsel %vm2126, %v1656, 0
        %2406 = vmatprep.subr.bf16.mxu0 0
        %2407 = vmatpush1.bf16.msra.mxu0 %v2404
        %2408 = vmatprep.subr.bf16.mxu0 0
        %2409 = vmatpush1.bf16.msra.mxu0 0
        %2410 = vmatprep.subr.bf16.mxu0 0
        %2411 = vmatpush1.bf16.msra.mxu0 0
        %2412 = vmatprep.subr.bf16.mxu0 0
        %2413 = vmatpush1.bf16.msra.mxu0 0
        %2414 = vmatprep.subr.bf16.mxu0 0
        %2415 = vmatpush1.bf16.msra.mxu0 0
        %2416 = vmatprep.subr.bf16.mxu0 0
        %2417 = vmatpush1.bf16.msra.mxu0 0
        %2418 = vmatprep.subr.bf16.mxu0 0
        %2419 = vmatpush1.bf16.msra.mxu0 0
        %2420 = vmatprep.subr.bf16.mxu0 0
        %2421 = vmatpush1.bf16.msra.mxu0 0
        %2422 = vmatprep.subr.bf16.mxu0 0
        %2423 = vmatpush1.bf16.msra.mxu0 0
        %2424 = vmatprep.subr.bf16.mxu0 0
        %2425 = vmatpush1.bf16.msra.mxu0 0
        %2426 = vmatprep.subr.bf16.mxu0 0
        %2427 = vmatpush1.bf16.msra.mxu0 0
        %2428 = vmatprep.subr.bf16.mxu0 0
        %2429 = vmatpush1.bf16.msra.mxu0 0
        %2430 = vmatprep.subr.bf16.mxu0 0
        %2431 = vmatpush1.bf16.msra.mxu0 0
        %2432 = vmatprep.subr.bf16.mxu0 0
        %2433 = vmatpush1.bf16.msra.mxu0 0
        %2434 = vmatprep.subr.bf16.mxu0 0
        %2435 = vmatpush1.bf16.msra.mxu0 0
        %2436 = vmatprep.subr.bf16.mxu0 0
        %2437 = vmatpush1.bf16.msra.mxu0 0
        %2438 = vmatprep.mubr.bf16.mxu0 0
        %2439 = vmatmul.mubr.bf16.gmra.mrb[0].mxu0 %v2401
        %v2440 = vpop.f32.mrb[0].mxu0
        %v2441 = vadd.f32 0.0, %v2440
        %v2442 = vpop.f32.mrb[0].mxu0
        %v2443 = vpop.f32.mrb[0].mxu0
        %v2444 = vpop.f32.mrb[0].mxu0
        %2445 = vdwg.mxu0
        %v2447 = vsel %vm1658, %v2122, 0
        %v2450 = vsel %vm2126, %v1657, 0
        %2452 = vmatprep.subr.bf16.mxu0 0
        %2453 = vmatpush1.bf16.msra.mxu0 %v2450
        %2454 = vmatprep.subr.bf16.mxu0 0
        %2455 = vmatpush1.bf16.msra.mxu0 0
        %2456 = vmatprep.subr.bf16.mxu0 0
        %2457 = vmatpush1.bf16.msra.mxu0 0
        %2458 = vmatprep.subr.bf16.mxu0 0
        %2459 = vmatpush1.bf16.msra.mxu0 0
        %2460 = vmatprep.subr.bf16.mxu0 0
        %2461 = vmatpush1.bf16.msra.mxu0 0
        %2462 = vmatprep.subr.bf16.mxu0 0
        %2463 = vmatpush1.bf16.msra.mxu0 0
        %2464 = vmatprep.subr.bf16.mxu0 0
        %2465 = vmatpush1.bf16.msra.mxu0 0
        %2466 = vmatprep.subr.bf16.mxu0 0
        %2467 = vmatpush1.bf16.msra.mxu0 0
        %2468 = vmatprep.subr.bf16.mxu0 0
        %2469 = vmatpush1.bf16.msra.mxu0 0
        %2470 = vmatprep.subr.bf16.mxu0 0
        %2471 = vmatpush1.bf16.msra.mxu0 0
        %2472 = vmatprep.subr.bf16.mxu0 0
        %2473 = vmatpush1.bf16.msra.mxu0 0
        %2474 = vmatprep.subr.bf16.mxu0 0
        %2475 = vmatpush1.bf16.msra.mxu0 0
        %2476 = vmatprep.subr.bf16.mxu0 0
        %2477 = vmatpush1.bf16.msra.mxu0 0
        %2478 = vmatprep.subr.bf16.mxu0 0
        %2479 = vmatpush1.bf16.msra.mxu0 0
        %2480 = vmatprep.subr.bf16.mxu0 0
        %2481 = vmatpush1.bf16.msra.mxu0 0
        %2482 = vmatprep.subr.bf16.mxu0 0
        %2483 = vmatpush1.bf16.msra.mxu0 0
        %2484 = vmatprep.mubr.bf16.mxu0 0
        %2485 = vmatmul.mubr.bf16.gmra.mrb[0].mxu0 %v2447
        %v2486 = vpop.f32.mrb[0].mxu0
        %v2487 = vadd.f32 0.0, %v2486
        %v2488 = vpop.f32.mrb[0].mxu0
        %v2489 = vpop.f32.mrb[0].mxu0
        %v2490 = vpop.f32.mrb[0].mxu0
        %2491 = vdwg.mxu0
        %v2492 = vrcp.pop %v2093
        %v2493 = vrcp.pop %v2096
        %v2494 = vrcp.pop %v2099
        %v2495 = vrcp.pop %v2102
        %v2496 = vrcp.pop %v2105
        %v2497 = vrcp.pop %v2108
        %v2498 = vrcp.pop %v2111
        %v2499 = vrcp.pop %v2114
        %v2500 = vmul.f32 %v2165, %v2492
        %v2501 = vmul.f32 %v2211, %v2493
        %v2502 = vmul.f32 %v2257, %v2494
        %v2503 = vmul.f32 %v2303, %v2495
        %v2504 = vmul.f32 %v2349, %v2496
        %v2505 = vmul.f32 %v2395, %v2497
        %v2506 = vmul.f32 %v2441, %v2498
        %v2507 = vmul.f32 %v2487, %v2499
        %v2508 = vcombine.low %v2500, %v2502
        %v2509 = vcombine.high %v2500, %v2502
        %v2511 = vunpack.c.l.s4 1983009808
        %v2512 = vunpack.c.0.s8 %v2511
        %v2513 = vlaneseq
        %v2514 = vshrl.u32 %v2513, 7
        %v2515 = vsub.s32 %v2512, %v2514
        %v2516 = vrot.slane %v2508, %v2515
        %v2518 = vunpack.c.l.s4 1983009808
        %v2519 = vunpack.c.0.s8 %v2518
        %v2520 = vlaneseq
        %v2521 = vshrl.u32 %v2520, 7
        %v2522 = vsub.s32 %v2519, %v2521
        %v2523 = vrot.slane %v2509, %v2522
        %v2524 = vcombine.low %v2501, %v2503
        %v2525 = vcombine.high %v2501, %v2503
        %v2527 = vunpack.c.l.s4 1983009808
        %v2528 = vunpack.c.0.s8 %v2527
        %v2529 = vlaneseq
        %v2530 = vshrl.u32 %v2529, 7
        %v2531 = vsub.s32 %v2528, %v2530
        %v2532 = vrot.slane %v2524, %v2531
        %v2534 = vunpack.c.l.s4 1983009808
        %v2535 = vunpack.c.0.s8 %v2534
        %v2536 = vlaneseq
        %v2537 = vshrl.u32 %v2536, 7
        %v2538 = vsub.s32 %v2535, %v2537
        %v2539 = vrot.slane %v2525, %v2538
        %v2540 = vcombine.low %v2516, %v2532
        %v2541 = vcombine.high %v2516, %v2532
        %v2543 = vunpack.c.l.s4 1934713408
        %v2544 = vunpack.c.0.s8 %v2543
        %v2545 = vlaneseq
        %v2546 = vshrl.u32 %v2545, 7
        %v2547 = vsub.s32 %v2544, %v2546
        %v2548 = vrot.slane %v2540, %v2547
        %v2550 = vunpack.c.l.s4 1934713408
        %v2551 = vunpack.c.0.s8 %v2550
        %v2552 = vlaneseq
        %v2553 = vshrl.u32 %v2552, 7
        %v2554 = vsub.s32 %v2551, %v2553
        %v2555 = vrot.slane %v2541, %v2554
        %v2556 = vcombine.low %v2523, %v2539
        %v2557 = vcombine.high %v2523, %v2539
        %v2559 = vunpack.c.l.s4 1934713408
        %v2560 = vunpack.c.0.s8 %v2559
        %v2561 = vlaneseq
        %v2562 = vshrl.u32 %v2561, 7
        %v2563 = vsub.s32 %v2560, %v2562
        %v2564 = vrot.slane %v2556, %v2563
        %v2566 = vunpack.c.l.s4 1934713408
        %v2567 = vunpack.c.0.s8 %v2566
        %v2568 = vlaneseq
        %v2569 = vshrl.u32 %v2568, 7
        %v2570 = vsub.s32 %v2567, %v2569
        %v2571 = vrot.slane %v2557, %v2570
        %v2572 = vcombine.high %v2548, 0.0
        %v2573 = vcombine.high %v2555, 0.0
        %v2574 = vcombine.high %v2564, 0.0
        %v2575 = vcombine.high %v2571, 0.0
        %v2576 = vcombine.low %v2504, %v2506
        %v2577 = vcombine.high %v2504, %v2506
        %v2579 = vunpack.c.l.s4 1983009808
        %v2580 = vunpack.c.0.s8 %v2579
        %v2581 = vlaneseq
        %v2582 = vshrl.u32 %v2581, 7
        %v2583 = vsub.s32 %v2580, %v2582
        %v2584 = vrot.slane %v2576, %v2583
        %v2586 = vunpack.c.l.s4 1983009808
        %v2587 = vunpack.c.0.s8 %v2586
        %v2588 = vlaneseq
        %v2589 = vshrl.u32 %v2588, 7
        %v2590 = vsub.s32 %v2587, %v2589
        %v2591 = vrot.slane %v2577, %v2590
        %v2592 = vcombine.low %v2505, %v2507
        %v2593 = vcombine.high %v2505, %v2507
        %v2595 = vunpack.c.l.s4 1983009808
        %v2596 = vunpack.c.0.s8 %v2595
        %v2597 = vlaneseq
        %v2598 = vshrl.u32 %v2597, 7
        %v2599 = vsub.s32 %v2596, %v2598
        %v2600 = vrot.slane %v2592, %v2599
        %v2602 = vunpack.c.l.s4 1983009808
        %v2603 = vunpack.c.0.s8 %v2602
        %v2604 = vlaneseq
        %v2605 = vshrl.u32 %v2604, 7
        %v2606 = vsub.s32 %v2603, %v2605
        %v2607 = vrot.slane %v2593, %v2606
        %v2608 = vcombine.low %v2584, %v2600
        %v2609 = vcombine.high %v2584, %v2600
        %v2611 = vunpack.c.l.s4 1934713408
        %v2612 = vunpack.c.0.s8 %v2611
        %v2613 = vlaneseq
        %v2614 = vshrl.u32 %v2613, 7
        %v2615 = vsub.s32 %v2612, %v2614
        %v2616 = vrot.slane %v2608, %v2615
        %v2618 = vunpack.c.l.s4 1934713408
        %v2619 = vunpack.c.0.s8 %v2618
        %v2620 = vlaneseq
        %v2621 = vshrl.u32 %v2620, 7
        %v2622 = vsub.s32 %v2619, %v2621
        %v2623 = vrot.slane %v2609, %v2622
        %v2624 = vcombine.low %v2591, %v2607
        %v2625 = vcombine.high %v2591, %v2607
        %v2627 = vunpack.c.l.s4 1934713408
        %v2628 = vunpack.c.0.s8 %v2627
        %v2629 = vlaneseq
        %v2630 = vshrl.u32 %v2629, 7
        %v2631 = vsub.s32 %v2628, %v2630
        %v2632 = vrot.slane %v2624, %v2631
        %v2634 = vunpack.c.l.s4 1934713408
        %v2635 = vunpack.c.0.s8 %v2634
        %v2636 = vlaneseq
        %v2637 = vshrl.u32 %v2636, 7
        %v2638 = vsub.s32 %v2635, %v2637
        %v2639 = vrot.slane %v2625, %v2638
        %v2640 = vcombine.high %v2616, 0.0
        %v2641 = vcombine.high %v2623, 0.0
        %v2642 = vcombine.high %v2632, 0.0
        %v2643 = vcombine.high %v2639, 0.0
        %v2644 = vcombine.low %v2548, %v2555
        %v2646 = vunpack.c.l.s4 1983009808
        %v2647 = vunpack.c.0.s8 %v2646
        %v2648 = vlaneseq
        %v2649 = vshrl.u32 %v2648, 7
        %v2650 = vsub.s32 %v2647, %v2649
        %v2651 = vrot.slane %v2644, %v2650
        %v2652 = vcombine.low %v2572, %v2573
        %v2654 = vunpack.c.l.s4 1983009808
        %v2655 = vunpack.c.0.s8 %v2654
        %v2656 = vlaneseq
        %v2657 = vshrl.u32 %v2656, 7
        %v2658 = vsub.s32 %v2655, %v2657
        %v2659 = vrot.slane %v2652, %v2658
        %v2660 = vcombine.low %v2564, %v2571
        %v2662 = vunpack.c.l.s4 1983009808
        %v2663 = vunpack.c.0.s8 %v2662
        %v2664 = vlaneseq
        %v2665 = vshrl.u32 %v2664, 7
        %v2666 = vsub.s32 %v2663, %v2665
        %v2667 = vrot.slane %v2660, %v2666
        %v2668 = vcombine.low %v2574, %v2575
        %v2670 = vunpack.c.l.s4 1983009808
        %v2671 = vunpack.c.0.s8 %v2670
        %v2672 = vlaneseq
        %v2673 = vshrl.u32 %v2672, 7
        %v2674 = vsub.s32 %v2671, %v2673
        %v2675 = vrot.slane %v2668, %v2674
        %v2676 = vcombine.low %v2651, %v2659
        %v2677 = vcombine.high %v2651, %v2659
        %v2679 = vunpack.c.l.s4 1934713408
        %v2680 = vunpack.c.0.s8 %v2679
        %v2681 = vlaneseq
        %v2682 = vshrl.u32 %v2681, 7
        %v2683 = vsub.s32 %v2680, %v2682
        %v2684 = vrot.slane %v2676, %v2683
        %v2686 = vunpack.c.l.s4 1934713408
        %v2687 = vunpack.c.0.s8 %v2686
        %v2688 = vlaneseq
        %v2689 = vshrl.u32 %v2688, 7
        %v2690 = vsub.s32 %v2687, %v2689
        %v2691 = vrot.slane %v2677, %v2690
        %v2692 = vcombine.low %v2667, %v2675
        %v2693 = vcombine.high %v2667, %v2675
        %v2695 = vunpack.c.l.s4 1934713408
        %v2696 = vunpack.c.0.s8 %v2695
        %v2697 = vlaneseq
        %v2698 = vshrl.u32 %v2697, 7
        %v2699 = vsub.s32 %v2696, %v2698
        %v2700 = vrot.slane %v2692, %v2699
        %v2702 = vunpack.c.l.s4 1934713408
        %v2703 = vunpack.c.0.s8 %v2702
        %v2704 = vlaneseq
        %v2705 = vshrl.u32 %v2704, 7
        %v2706 = vsub.s32 %v2703, %v2705
        %v2707 = vrot.slane %v2693, %v2706
        %v2708 = vcombine.low %v2684, %v2700
        %v2709 = vcombine.high %v2684, %v2700
        %v2710 = vcombine.low %v2691, %v2707
        %v2711 = vcombine.high %v2691, %v2707
        %v2712 = vcombine.low %v2616, %v2623
        %v2714 = vunpack.c.l.s4 1983009808
        %v2715 = vunpack.c.0.s8 %v2714
        %v2716 = vlaneseq
        %v2717 = vshrl.u32 %v2716, 7
        %v2718 = vsub.s32 %v2715, %v2717
        %v2719 = vrot.slane %v2712, %v2718
        %v2720 = vcombine.low %v2640, %v2641
        %v2722 = vunpack.c.l.s4 1983009808
        %v2723 = vunpack.c.0.s8 %v2722
        %v2724 = vlaneseq
        %v2725 = vshrl.u32 %v2724, 7
        %v2726 = vsub.s32 %v2723, %v2725
        %v2727 = vrot.slane %v2720, %v2726
        %v2728 = vcombine.low %v2632, %v2639
        %v2730 = vunpack.c.l.s4 1983009808
        %v2731 = vunpack.c.0.s8 %v2730
        %v2732 = vlaneseq
        %v2733 = vshrl.u32 %v2732, 7
        %v2734 = vsub.s32 %v2731, %v2733
        %v2735 = vrot.slane %v2728, %v2734
        %v2736 = vcombine.low %v2642, %v2643
        %v2738 = vunpack.c.l.s4 1983009808
        %v2739 = vunpack.c.0.s8 %v2738
        %v2740 = vlaneseq
        %v2741 = vshrl.u32 %v2740, 7
        %v2742 = vsub.s32 %v2739, %v2741
        %v2743 = vrot.slane %v2736, %v2742
        %v2744 = vcombine.low %v2719, %v2727
        %v2745 = vcombine.high %v2719, %v2727
        %v2747 = vunpack.c.l.s4 1934713408
        %v2748 = vunpack.c.0.s8 %v2747
        %v2749 = vlaneseq
        %v2750 = vshrl.u32 %v2749, 7
        %v2751 = vsub.s32 %v2748, %v2750
        %v2752 = vrot.slane %v2744, %v2751
        %v2754 = vunpack.c.l.s4 1934713408
        %v2755 = vunpack.c.0.s8 %v2754
        %v2756 = vlaneseq
        %v2757 = vshrl.u32 %v2756, 7
        %v2758 = vsub.s32 %v2755, %v2757
        %v2759 = vrot.slane %v2745, %v2758
        %v2760 = vcombine.low %v2735, %v2743
        %v2761 = vcombine.high %v2735, %v2743
        %v2763 = vunpack.c.l.s4 1934713408
        %v2764 = vunpack.c.0.s8 %v2763
        %v2765 = vlaneseq
        %v2766 = vshrl.u32 %v2765, 7
        %v2767 = vsub.s32 %v2764, %v2766
        %v2768 = vrot.slane %v2760, %v2767
        %v2770 = vunpack.c.l.s4 1934713408
        %v2771 = vunpack.c.0.s8 %v2770
        %v2772 = vlaneseq
        %v2773 = vshrl.u32 %v2772, 7
        %v2774 = vsub.s32 %v2771, %v2773
        %v2775 = vrot.slane %v2761, %v2774
        %v2776 = vcombine.low %v2752, %v2768
        %v2777 = vcombine.high %v2752, %v2768
        %v2778 = vcombine.low %v2759, %v2775
        %v2779 = vcombine.high %v2759, %v2775
        %2782 = vrot.lane.b32.xlu0 %v2709, 8
        %v2783 = vpop.permute.xlu0 %2782
        %2784 = vrot.lane.b32.xlu0 %v2777, 8
        %v2785 = vpop.permute.xlu0 %2784
        %2790 = vrot.lane.b32.xlu0 %v2710, 16
        %v2791 = vpop.permute.xlu0 %2790
        %2792 = vrot.lane.b32.xlu0 %v2778, 16
        %v2793 = vpop.permute.xlu0 %2792
        %2798 = vrot.lane.b32.xlu0 %v2711, 24
        %v2799 = vpop.permute.xlu0 %2798
        %2800 = vrot.lane.b32.xlu0 %v2779, 24
        %v2801 = vpop.permute.xlu0 %2800
        %v2804 = vsel %vm1658, %v2708, %v2783
        %v2805 = vsel %vm1658, %v2776, %v2785
        %vm2806 = vcmask 130048
        %v2807 = vsel %vm2806, %v2804, %v2791
        %v2808 = vsel %vm2806, %v2805, %v2793
        %vm2809 = vcmask 195584
        %v2810 = vsel %vm2809, %v2807, %v2799
        %v2811 = vsel %vm2809, %v2808, %v2801
        %v2812 = vpack.c.bf16 %v2811, %v2810
        %v2813 = vld [vmem:[%s613] sm:$0xf]
        %v2814 = vld [vmem:[%s613 + $0x4] sm:$0xf]
        %v2815 = vld [vmem:[%s613 + $0x8] sm:$0xf]
        %v2816 = vld [vmem:[%s613 + $0xc] sm:$0xf]
        %v2817 = vld [vmem:[%s616] sm:$0x1]
        %v2819 = vlaneseq
        %v2820 = vshrl.u32 %v2819, 7
        %v2821 = vsub.s32 0, %v2820
        %v2822 = vrot.slane %v2817, %v2821
        %v2828 = vunpack.c.l.b16 %v2813
        %v2829 = vunpack.c.l.b16 %v2814
        %v2830 = vunpack.c.l.b16 %v2815
        %v2831 = vunpack.c.l.b16 %v2816
        %v2832 = vpack.c.b16 %v2829, %v2828
        %v2833 = vpack.c.b16 %v2831, %v2830
        %v2837 = vsel %vm705, %v2812, 0
        %2839 = vmatprep.subr.bf16.mxu0 0
        %2840 = vmatpush1.bf16.msra.mxu0 %v2832
        %2841 = vmatprep.subr.bf16.mxu0 0
        %2842 = vmatpush1.bf16.msra.mxu0 %v2833
        %2843 = vmatprep.subr.bf16.mxu0 0
        %2844 = vmatpush1.bf16.msra.mxu0 0
        %2845 = vmatprep.subr.bf16.mxu0 0
        %2846 = vmatpush1.bf16.msra.mxu0 0
        %2847 = vmatprep.subr.bf16.mxu0 0
        %2848 = vmatpush1.bf16.msra.mxu0 0
        %2849 = vmatprep.subr.bf16.mxu0 0
        %2850 = vmatpush1.bf16.msra.mxu0 0
        %2851 = vmatprep.subr.bf16.mxu0 0
        %2852 = vmatpush1.bf16.msra.mxu0 0
        %2853 = vmatprep.subr.bf16.mxu0 0
        %2854 = vmatpush1.bf16.msra.mxu0 0
        %2855 = vmatprep.subr.bf16.mxu0 0
        %2856 = vmatpush1.bf16.msra.mxu0 0
        %2857 = vmatprep.subr.bf16.mxu0 0
        %2858 = vmatpush1.bf16.msra.mxu0 0
        %2859 = vmatprep.subr.bf16.mxu0 0
        %2860 = vmatpush1.bf16.msra.mxu0 0
        %2861 = vmatprep.subr.bf16.mxu0 0
        %2862 = vmatpush1.bf16.msra.mxu0 0
        %2863 = vmatprep.subr.bf16.mxu0 0
        %2864 = vmatpush1.bf16.msra.mxu0 0
        %2865 = vmatprep.subr.bf16.mxu0 0
        %2866 = vmatpush1.bf16.msra.mxu0 0
        %2867 = vmatprep.subr.bf16.mxu0 0
        %2868 = vmatpush1.bf16.msra.mxu0 0
        %2869 = vmatprep.subr.bf16.mxu0 0
        %2870 = vmatpush1.bf16.msra.mxu0 0
        %2871 = vmatprep.mubr.bf16.mxu0 0
        %2872 = vmatmul.mubr.bf16.gmra.mrb[0].mxu0 %v2837
        %v2873 = vpop.f32.mrb[0].mxu0
        %v2874 = vadd.f32 %v2822, %v2873
        %v2875 = vpop.f32.mrb[0].mxu0
        %v2876 = vpop.f32.mrb[0].mxu0
        %v2877 = vadd.f32 %v2822, %v2876
        %v2878 = vpop.f32.mrb[0].mxu0
        %2879 = vdwg.mxu0
        %v2880 = vadd.f32 %v677, %v2874
        %v2881 = vadd.f32 %v678, %v2877
        %v2882 = vld [vmem:[%s619] sm:$0x1]
        %v2883 = vld [vmem:[%s622] sm:$0x1]
        %v2884 = vsel %vm705, %v2880, 0.0
        %2885 = vadd.xlane.f32.xlu0 %v2884
        %v2886 = vpop.xlane.xlu0 %2885
        %v2887 = vsel %vm705, %v2881, 0.0
        %2888 = vadd.xlane.f32.xlu0 %v2887
        %v2889 = vpop.xlane.xlu0 %2888
        %v2890 = vrcp.pop 32.0
        %v2891 = vmul.f32 %v2886, %v2890
        %v2892 = vmul.f32 %v2889, %v2890
        %v2893 = vsub.f32 %v2880, %v2891
        %v2894 = vsub.f32 %v2881, %v2892
        %v2895 = vmul.f32 %v2893, %v2893
        %v2896 = vmul.f32 %v2894, %v2894
        %v2897 = vsel %vm705, %v2895, 0.0
        %2898 = vadd.xlane.f32.xlu0 %v2897
        %v2899 = vpop.xlane.xlu0 %2898
        %v2900 = vsel %vm705, %v2896, 0.0
        %2901 = vadd.xlane.f32.xlu0 %v2900
        %v2902 = vpop.xlane.xlu0 %2901
        %v2903 = vmul.f32 %v2899, %v2890
        %v2904 = vmul.f32 %v2902, %v2890
        %v2905 = vadd.f32 %v2903, 1e-05
        %v2906 = vadd.f32 %v2904, 1e-05
        %v2907 = vrsqrt.pop %v2905
        %v2908 = vrsqrt.pop %v2906
        %v2909 = vmul.f32 %v2893, %v2907
        %v2910 = vmul.f32 %v2894, %v2908
        %v2912 = vlaneseq
        %v2913 = vshrl.u32 %v2912, 7
        %v2914 = vsub.s32 0, %v2913
        %v2915 = vrot.slane %v2882, %v2914
        %v2917 = vmul.f32 %v2909, %v2915
        %v2918 = vmul.f32 %v2910, %v2915
        %v2920 = vlaneseq
        %v2921 = vshrl.u32 %v2920, 7
        %v2922 = vsub.s32 0, %v2921
        %v2923 = vrot.slane %v2883, %v2922
        %v2925 = vadd.f32 %v2917, %v2923
        %v2926 = vadd.f32 %v2918, %v2923
        %v2927 = vpack.c.bf16 %v2926, %v2925
        %v2928 = vld [vmem:[%s627] sm:$0xf]
        %v2929 = vld [vmem:[%s627 + $0x4] sm:$0xf]
        %v2930 = vld [vmem:[%s627 + $0x8] sm:$0xf]
        %v2931 = vld [vmem:[%s627 + $0xc] sm:$0xf]
        %v2932 = vld [vmem:[%s630] sm:$0x1]
        %v2934 = vlaneseq
        %v2935 = vshrl.u32 %v2934, 7
        %v2936 = vsub.s32 0, %v2935
        %v2937 = vrot.slane %v2932, %v2936
        %v2943 = vunpack.c.l.b16 %v2928
        %v2944 = vunpack.c.l.b16 %v2929
        %v2945 = vunpack.c.l.b16 %v2930
        %v2946 = vunpack.c.l.b16 %v2931
        %v2947 = vpack.c.b16 %v2944, %v2943
        %v2948 = vpack.c.b16 %v2946, %v2945
        %v2952 = vsel %vm705, %v2927, 0
        %2954 = vmatprep.subr.bf16.mxu0 0
        %2955 = vmatpush1.bf16.msra.mxu0 %v2947
        %2956 = vmatprep.subr.bf16.mxu0 0
        %2957 = vmatpush1.bf16.msra.mxu0 %v2948
        %2958 = vmatprep.subr.bf16.mxu0 0
        %2959 = vmatpush1.bf16.msra.mxu0 0
        %2960 = vmatprep.subr.bf16.mxu0 0
        %2961 = vmatpush1.bf16.msra.mxu0 0
        %2962 = vmatprep.subr.bf16.mxu0 0
        %2963 = vmatpush1.bf16.msra.mxu0 0
        %2964 = vmatprep.subr.bf16.mxu0 0
        %2965 = vmatpush1.bf16.msra.mxu0 0
        %2966 = vmatprep.subr.bf16.mxu0 0
        %2967 = vmatpush1.bf16.msra.mxu0 0
        %2968 = vmatprep.subr.bf16.mxu0 0
        %2969 = vmatpush1.bf16.msra.mxu0 0
        %2970 = vmatprep.subr.bf16.mxu0 0
        %2971 = vmatpush1.bf16.msra.mxu0 0
        %2972 = vmatprep.subr.bf16.mxu0 0
        %2973 = vmatpush1.bf16.msra.mxu0 0
        %2974 = vmatprep.subr.bf16.mxu0 0
        %2975 = vmatpush1.bf16.msra.mxu0 0
        %2976 = vmatprep.subr.bf16.mxu0 0
        %2977 = vmatpush1.bf16.msra.mxu0 0
        %2978 = vmatprep.subr.bf16.mxu0 0
        %2979 = vmatpush1.bf16.msra.mxu0 0
        %2980 = vmatprep.subr.bf16.mxu0 0
        %2981 = vmatpush1.bf16.msra.mxu0 0
        %2982 = vmatprep.subr.bf16.mxu0 0
        %2983 = vmatpush1.bf16.msra.mxu0 0
        %2984 = vmatprep.subr.bf16.mxu0 0
        %2985 = vmatpush1.bf16.msra.mxu0 0
        %2986 = vmatprep.mubr.bf16.mxu0 0
        %2987 = vmatmul.mubr.bf16.gmra.mrb[0].mxu0 %v2952
        %v2988 = vpop.f32.mrb[0].mxu0
        %v2989 = vadd.f32 %v2937, %v2988
        %v2990 = vpop.f32.mrb[0].mxu0
        %v2991 = vpop.f32.mrb[0].mxu0
        %v2992 = vadd.f32 %v2937, %v2991
        %v2993 = vpop.f32.mrb[0].mxu0
        %2994 = vdwg.mxu0
        %v2995 = vmax.f32 %v2989, 0.0
        %v2996 = vmax.f32 %v2992, 0.0
        %v2997 = vpack.c.bf16 %v2996, %v2995
        %v2998 = vld [vmem:[%s635] sm:$0xf]
        %v2999 = vld [vmem:[%s635 + $0x4] sm:$0xf]
        %v3000 = vld [vmem:[%s635 + $0x8] sm:$0xf]
        %v3001 = vld [vmem:[%s635 + $0xc] sm:$0xf]
        %v3002 = vld [vmem:[%s635 + $0x10] sm:$0xf]
        %v3003 = vld [vmem:[%s635 + $0x14] sm:$0xf]
        %v3004 = vld [vmem:[%s635 + $0x18] sm:$0xf]
        %v3005 = vld [vmem:[%s635 + $0x1c] sm:$0xf]
        %v3006 = vld [vmem:[%s635 + $0x20] sm:$0xf]
        %v3007 = vld [vmem:[%s635 + $0x24] sm:$0xf]
        %v3008 = vld [vmem:[%s635 + $0x28] sm:$0xf]
        %v3009 = vld [vmem:[%s635 + $0x2c] sm:$0xf]
        %v3010 = vld [vmem:[%s635 + $0x30] sm:$0xf]
        %v3011 = vld [vmem:[%s635 + $0x34] sm:$0xf]
        %v3012 = vld [vmem:[%s635 + $0x38] sm:$0xf]
        %v3013 = vld [vmem:[%s635 + $0x3c] sm:$0xf]
        %v3014 = vld [vmem:[%s638] sm:$0x1]
        %v3016 = vlaneseq
        %v3017 = vshrl.u32 %v3016, 7
        %v3018 = vsub.s32 0, %v3017
        %v3019 = vrot.slane %v3014, %v3018
        %v3037 = vunpack.c.l.b16 %v2998
        %v3038 = vunpack.c.l.b16 %v2999
        %v3039 = vunpack.c.l.b16 %v3000
        %v3040 = vunpack.c.l.b16 %v3001
        %v3041 = vunpack.c.l.b16 %v3002
        %v3042 = vunpack.c.l.b16 %v3003
        %v3043 = vunpack.c.l.b16 %v3004
        %v3044 = vunpack.c.l.b16 %v3005
        %v3045 = vunpack.c.l.b16 %v3006
        %v3046 = vunpack.c.l.b16 %v3007
        %v3047 = vunpack.c.l.b16 %v3008
        %v3048 = vunpack.c.l.b16 %v3009
        %v3049 = vunpack.c.l.b16 %v3010
        %v3050 = vunpack.c.l.b16 %v3011
        %v3051 = vunpack.c.l.b16 %v3012
        %v3052 = vunpack.c.l.b16 %v3013
        %v3053 = vpack.c.b16 %v3038, %v3037
        %v3054 = vpack.c.b16 %v3040, %v3039
        %v3055 = vpack.c.b16 %v3042, %v3041
        %v3056 = vpack.c.b16 %v3044, %v3043
        %v3057 = vpack.c.b16 %v3046, %v3045
        %v3058 = vpack.c.b16 %v3048, %v3047
        %v3059 = vpack.c.b16 %v3050, %v3049
        %v3060 = vpack.c.b16 %v3052, %v3051
        %3069 = vmatprep.subr.bf16.mxu0 0
        %3070 = vmatpush1.bf16.msra.mxu0 %v3053
        %3071 = vmatprep.subr.bf16.mxu0 0
        %3072 = vmatpush1.bf16.msra.mxu0 %v3054
        %3073 = vmatprep.subr.bf16.mxu0 0
        %3074 = vmatpush1.bf16.msra.mxu0 %v3055
        %3075 = vmatprep.subr.bf16.mxu0 0
        %3076 = vmatpush1.bf16.msra.mxu0 %v3056
        %3077 = vmatprep.subr.bf16.mxu0 0
        %3078 = vmatpush1.bf16.msra.mxu0 %v3057
        %3079 = vmatprep.subr.bf16.mxu0 0
        %3080 = vmatpush1.bf16.msra.mxu0 %v3058
        %3081 = vmatprep.subr.bf16.mxu0 0
        %3082 = vmatpush1.bf16.msra.mxu0 %v3059
        %3083 = vmatprep.subr.bf16.mxu0 0
        %3084 = vmatpush1.bf16.msra.mxu0 %v3060
        %3085 = vmatprep.subr.bf16.mxu0 0
        %3086 = vmatpush1.bf16.msra.mxu0 0
        %3087 = vmatprep.subr.bf16.mxu0 0
        %3088 = vmatpush1.bf16.msra.mxu0 0
        %3089 = vmatprep.subr.bf16.mxu0 0
        %3090 = vmatpush1.bf16.msra.mxu0 0
        %3091 = vmatprep.subr.bf16.mxu0 0
        %3092 = vmatpush1.bf16.msra.mxu0 0
        %3093 = vmatprep.subr.bf16.mxu0 0
        %3094 = vmatpush1.bf16.msra.mxu0 0
        %3095 = vmatprep.subr.bf16.mxu0 0
        %3096 = vmatpush1.bf16.msra.mxu0 0
        %3097 = vmatprep.subr.bf16.mxu0 0
        %3098 = vmatpush1.bf16.msra.mxu0 0
        %3099 = vmatprep.subr.bf16.mxu0 0
        %3100 = vmatpush1.bf16.msra.mxu0 0
        %3101 = vmatprep.mubr.bf16.mxu0 0
        %3102 = vmatmul.mubr.bf16.gmra.mrb[0].mxu0 %v2997
        %v3103 = vpop.f32.mrb[0].mxu0
        %v3104 = vadd.f32 %v3019, %v3103
        %v3105 = vpop.f32.mrb[0].mxu0
        %v3106 = vpop.f32.mrb[0].mxu0
        %v3107 = vadd.f32 %v3019, %v3106
        %v3108 = vpop.f32.mrb[0].mxu0
        %3109 = vdwg.mxu0
        %v3110 = vadd.f32 %v2925, %v3104
        %v3111 = vadd.f32 %v2926, %v3107
        %v3112 = vld [vmem:[%s641] sm:$0x1]
        %v3113 = vld [vmem:[%s644] sm:$0x1]
        %v3114 = vsel %vm705, %v3110, 0.0
        %3115 = vadd.xlane.f32.xlu0 %v3114
        %v3116 = vpop.xlane.xlu0 %3115
        %v3117 = vsel %vm705, %v3111, 0.0
        %3118 = vadd.xlane.f32.xlu0 %v3117
        %v3119 = vpop.xlane.xlu0 %3118
        %v3120 = vmul.f32 %v3116, %v2890
        %v3121 = vmul.f32 %v3119, %v2890
        %v3122 = vsub.f32 %v3110, %v3120
        %v3123 = vsub.f32 %v3111, %v3121
        %v3124 = vmul.f32 %v3122, %v3122
        %v3125 = vmul.f32 %v3123, %v3123
        %v3126 = vsel %vm705, %v3124, 0.0
        %3127 = vadd.xlane.f32.xlu0 %v3126
        %v3128 = vpop.xlane.xlu0 %3127
        %v3129 = vsel %vm705, %v3125, 0.0
        %3130 = vadd.xlane.f32.xlu0 %v3129
        %v3131 = vpop.xlane.xlu0 %3130
        %v3132 = vmul.f32 %v3128, %v2890
        %v3133 = vmul.f32 %v3131, %v2890
        %v3134 = vadd.f32 %v3132, 1e-05
        %v3135 = vadd.f32 %v3133, 1e-05
        %v3136 = vrsqrt.pop %v3134
        %v3137 = vrsqrt.pop %v3135
        %v3138 = vmul.f32 %v3122, %v3136
        %v3139 = vmul.f32 %v3123, %v3137
        %v3141 = vlaneseq
        %v3142 = vshrl.u32 %v3141, 7
        %v3143 = vsub.s32 0, %v3142
        %v3144 = vrot.slane %v3112, %v3143
        %v3146 = vmul.f32 %v3138, %v3144
        %v3147 = vmul.f32 %v3139, %v3144
        %v3149 = vlaneseq
        %v3150 = vshrl.u32 %v3149, 7
        %v3151 = vsub.s32 0, %v3150
        %v3152 = vrot.slane %v3113, %v3151
        %v3154 = vadd.f32 %v3146, %v3152
        %v3155 = vadd.f32 %v3147, %v3152
        %3156 = vst.msk [vmem:[#allocation3] sm:$0xff] %vm705, %v3154
        %3157 = vst.msk [vmem:[#allocation3 + $0x8] sm:$0xff] %vm705, %v3155
        %p3158 = scmp.eq.s32.totalorder %s37, 1
        // Predicated region
        $region77: #{tpu_custom_call.1} parent=71 // pred_check
          %p3159 = pneg %p3158
        $region78: #{tpu_custom_call.1} parent=71 // pred_check_branch
          %3161 = sbr.rel (%p3159) target = $region80
        $region79: #{tpu_custom_call.1} parent=71 // pred_region
          %v3162 = vld [vmem:[#allocation3] sm:$0xff]
          %v3163 = vld [vmem:[#allocation3 + $0x8] sm:$0xff]
          %v3164 = vpack.c.bf16 %v3162, %v3162
          %v3165 = vpack.c.bf16 %v3163, %v3163
          %vm3166 = vcmask 257024
          %3167 = vst.msk [vmem:[#allocation6] sm:$0xf] %vm3166, %v3164
          %3168 = vst.msk [vmem:[#allocation6 + $0x4] sm:$0xf] %vm3166, %v3165
        $region80: #{tpu_custom_call.1} parent=71 // pred_fallthru
          _
        // Predicated region
        $region81: #{tpu_custom_call.1} parent=71 // pred_check
          %p3169 = pneg %p400
        $region82: #{tpu_custom_call.1} parent=71 // pred_check_branch
          %3171 = sbr.rel (%p3169) target = $region84
        $region83: #{tpu_custom_call.1} parent=71 // pred_region
          %s3172 = smul.u32 2, %s36
          %s3174 = ssub.s32 128, 128
          %3175 = vsyncadd [#allocation7], %s3174
          %s3176 = smul.addr %s3172, 64
          %s3177 = scalar_lea.hbm %s14, %s3176
          %s3178 = sshll.u32 [#allocation6], 4
          %s3179 = int_to_ptr.vmem [resolvable:$true] %s3178
          %3184 = dma.vmem_to_hbm [thread:$0]  %s3179, 128, %s3177, [#allocation7], 64, 64, 4
        $region84: #{tpu_custom_call.1} parent=71 // pred_fallthru
          _
        // Predicated region
        $region85: #{tpu_custom_call.1} parent=71 // pred_check
          %p3185 = pneg %p400
        $region86: #{tpu_custom_call.1} parent=71 // pred_check_branch
          %3187 = sbr.rel (%p3185) target = $region88
        $region87: #{tpu_custom_call.1} parent=71 // pred_region
          %3188 = dma.done [#allocation7], 128
        $region88: #{tpu_custom_call.1} parent=71 // pred_fallthru
          _
      $region72: #{tpu_custom_call.1} parent=5 // pred_fallthru
        _
      %p3189 = scmp.le.s32.totalorder 2, %s27
      // Predicated region
      $region89: #{tpu_custom_call.1} parent=5 // pred_check
        %p3190 = pneg %p3189
      $region90: #{tpu_custom_call.1} parent=5 // pred_check_branch
        %3192 = sbr.rel (%p3190) target = $region92
      $region91: #{tpu_custom_call.1} parent=5 // pred_region
        %s3193 = ssub.s32 %s27, 2
      $region92: #{tpu_custom_call.1} parent=5 // pred_fallthru
        _
    $region6: #{tpu_custom_call.1} parent=1 // loop_footer
      %s31 = sadd.s32 1, %s27
    $region7: #{tpu_custom_call.1} parent=1 // loop_footer_branch
      %26 = sbr.rel target = $region3
    $region8: #{tpu_custom_call.1} parent=1 // loop_exit
      _
    %3194 = vsyncpa [#allocation7], 1
    %s3195 = scalar_lea.sflag [#allocation7], 1
    %3196 = vsyncpa %s3195, 1

</llo_original>
